<compile_context>
chip_gen: v6e
topology: v6e:2x2x1
jax: 0.10.0
libtpu: 0.0.40
codegen_flags: <defaults>
</compile_context>

<pallas_src>
import functools
import math

import jax
import jax.numpy as jnp
from jax.experimental import pallas as pl
from jax.experimental.pallas import tpu as pltpu

IN_CAPS = 8
OUT_CAPS = 10
M_SIZE = (4, 4)
ROUTING_ITERS = 3
EPS = 1e-6
LOG2PI = math.log(2.0 * math.pi)


def _lambda_schedule(t):
    return 0.01 * (1.0 - 0.95 ** (t + 1))


def _em_caps_kernel(x_ref, w_ref, a_ref, bu_ref, ba_ref, pose_ref, act_ref, v_ref,
                    *, out_caps, m, d, n_in, n_iters):
    # x_ref  : (1, M*M, N)     column k = p*M + r holds x[i, p, r]
    # w_ref  : (M, O, M, N)    wr[r, o, q, i] = W[c(i), o, r, q]   (compact, no zero blocks)
    # a_ref  : (1, 1, N)
    # bu_ref, ba_ref : (O, 1, 1)
    # pose_ref : (1, O, D, 1) ; act_ref : (1, O, 1, 1)
    # v_ref  : VMEM scratch (O, D, N) holding the votes
    x_t = x_ref[0]                       # (M*M, N)
    a_in = a_ref[...]                    # (1, 1, N)
    beta_u = bu_ref[...]                 # (O, 1, 1)
    beta_a = ba_ref[...]                 # (O, 1, 1)

    # ---- vote stage: votes[o, p*M+q, i] = sum_r x[i, p, r] * W[c(i), o, r, q] ----
    # Only the nonzero q-block for each (p, r) is touched (no structural zeros).
    for p in range(m):
        acc = None
        for r in range(m):
            xk = x_t[p * m + r:p * m + r + 1, :].reshape(1, 1, n_in)   # (1, 1, N)
            term = xk * w_ref[r]                                       # (O, M, N)
            acc = term if acc is None else acc + term
        v_ref[:, p * m:(p + 1) * m, :] = acc

    # ---- EM routing ----
    r_post = jnp.full((out_caps, 1, n_in), 1.0 / out_caps, jnp.float32)
    mu = jnp.zeros((out_caps, d, 1), jnp.float32)
    a_out = jnp.zeros((out_caps, 1, 1), jnp.float32)
    for t in range(n_iters):
        lam = _lambda_schedule(t)
        v = v_ref[...]                                              # (O, D, N)
        # M-step
        r_t = r_post * a_in                                         # (O, 1, N)
        r_sum = jnp.sum(r_t, axis=2, keepdims=True) + EPS           # (O, 1, 1)
        inv_rs = pl.reciprocal(r_sum, approx=False)                 # (O, 1, 1)
        mu = jnp.sum(r_t * v, axis=2, keepdims=True) * inv_rs       # (O, D, 1)
        diff = v - mu                                               # (O, D, N)
        d2 = diff * diff                                            # (O, D, N), shared below
        sigma_sq = jnp.sum(r_t * d2, axis=2, keepdims=True) * inv_rs + EPS   # (O, D, 1)
        log_sig = jnp.log(sigma_sq)                                 # (O, D, 1), hoisted
        cost = r_sum * jnp.sum(beta_u + 0.5 * log_sig, axis=1, keepdims=True)   # (O, 1, 1)
        a_out = jax.nn.sigmoid(lam * (beta_a - cost))               # (O, 1, 1)
        # E-step (result unused after the final M-step, so skip it there)
        if t < n_iters - 1:
            inv_sig = pl.reciprocal(sigma_sq, approx=False)         # (O, D, 1)
            maha = jnp.sum(d2 * inv_sig, axis=1, keepdims=True)     # (O, 1, N)
            ln_pdf = -0.5 * (maha
                             + jnp.sum(log_sig, axis=1, keepdims=True)
                             + d * LOG2PI)                          # (O, 1, N)
            ln_ap = jnp.log(a_out + EPS) + ln_pdf                   # (O, 1, N)
            mx = jnp.max(ln_ap, axis=0, keepdims=True)              # (1, 1, N)
            num = jnp.exp(ln_ap - mx)                               # (O, 1, N)
            inv_den = pl.reciprocal(jnp.sum(num, axis=0, keepdims=True) + EPS,
                                    approx=False)                   # (1, 1, N)
            r_post = num * inv_den

    pose_ref[0] = mu                                                # (O, D, 1)
    act_ref[0] = a_out                                              # (O, 1, 1)


def fc_caps_matrix_norecept(x, a, W, beta_a, beta_u, *, routing_iterations=ROUTING_ITERS):
    """Forward pass of FCCapsMatrixNorecept.  Returns (pose (B,O,M,M), activation (B,O))."""
    B, H, Wsp, in_caps, M1, M2 = x.shape
    assert M1 == M2
    M = M1
    D = M * M
    O = W.shape[4]
    S = H * Wsp
    N = S * in_caps

    x32 = x.astype(jnp.float32)
    a32 = a.astype(jnp.float32)

    # x_t[b, p*M + r, i] = x[b, h, w, c, p, r]  with i = (h*Wsp + w)*inCaps + c
    x_flat = x32.reshape(B, N, M, M)
    x_t = jnp.transpose(x_flat, (0, 2, 3, 1)).reshape(B, D, N)

    a_t = a32.reshape(B, 1, N)

    # Compact weight layout (single transpose + broadcast, no scatters, no zero padding):
    #   wr[r, o, q, i] = W[c(i), o, r, q]   with c(i) = i mod inCaps
    w_caps = W.reshape(in_caps, O, M, M).astype(jnp.float32)        # (C, O, r, q)
    w_t = jnp.transpose(w_caps, (2, 1, 3, 0))                       # (r, O, q, C)
    wr = jnp.broadcast_to(w_t[:, :, :, None, :], (M, O, M, S, in_caps)).reshape(M, O, M, N)

    bu = beta_u.reshape(O, 1, 1).astype(jnp.float32)
    ba = beta_a.reshape(O, 1, 1).astype(jnp.float32)

    kernel = functools.partial(_em_caps_kernel, out_caps=O, m=M, d=D, n_in=N,
                               n_iters=routing_iterations)

    pose, act = pl.pallas_call(
        kernel,
        out_shape=(jax.ShapeDtypeStruct((B, O, D, 1), jnp.float32),
                   jax.ShapeDtypeStruct((B, O, 1, 1), jnp.float32)),
        grid_spec=pltpu.PrefetchScalarGridSpec(
            num_scalar_prefetch=0,
            grid=(B,),
            in_specs=[
                pl.BlockSpec((1, D, N), lambda b: (b, 0, 0)),
                pl.BlockSpec((M, O, M, N), lambda b: (0, 0, 0, 0)),   # fetched once
                pl.BlockSpec((1, 1, N), lambda b: (b, 0, 0)),
                pl.BlockSpec((O, 1, 1), lambda b: (0, 0, 0)),
                pl.BlockSpec((O, 1, 1), lambda b: (0, 0, 0)),
            ],
            out_specs=[
                pl.BlockSpec((1, O, D, 1), lambda b: (b, 0, 0, 0)),
                pl.BlockSpec((1, O, 1, 1), lambda b: (b, 0, 0, 0)),
            ],
            scratch_shapes=[pltpu.VMEM((O, D, N), jnp.float32)],
        ),
        compiler_params=pltpu.CompilerParams(dimension_semantics=("parallel",)),
    )(x_t, wr, a_t, bu, ba)

    return pose.reshape(B, O, M, M), act.reshape(B, O)


def _reference(x, a, W, beta_a, beta_u, routing_iterations):
    """Pure-JAX reference mirroring the PyTorch forward + canonical EM routing."""
    B, H, Wsp, in_caps, M1, _ = x.shape
    M = M1
    D = M * M
    O = W.shape[4]
    N = H * Wsp * in_caps
    x32 = x.astype(jnp.float32)
    w = W.reshape(in_caps, O, M, M).astype(jnp.float32)
    v = jnp.einsum('bhwcpr,corq->bhwcopq', x32, w,
                   precision=jax.lax.Precision.HIGHEST)          # (B,H,W,C,O,M,M)
    v = v.reshape(B, N, O, D)
    v = jnp.transpose(v, (0, 2, 3, 1))                           # (B, O, D, N)
    a_in = a.reshape(B, 1, 1, N).astype(jnp.float32)
    bu = beta_u.reshape(1, O, 1, 1).astype(jnp.float32)
    ba = beta_a.reshape(1, O, 1, 1).astype(jnp.float32)
    r = jnp.full((B, O, 1, N), 1.0 / O, jnp.float32)
    mu = None
    a_out = None
    for t in range(routing_iterations):
        lam = _lambda_schedule(t)
        r_t = r * a_in
        r_sum = jnp.sum(r_t, axis=3, keepdims=True) + EPS
        mu = jnp.sum(r_t * v, axis=3, keepdims=True) / r_sum
        diff = v - mu
        sigma_sq = jnp.sum(r_t * diff * diff, axis=3, keepdims=True) / r_sum + EPS
        cost_h = (bu + 0.5 * jnp.log(sigma_sq)) * r_sum
        a_out = jax.nn.sigmoid(lam * (ba - jnp.sum(cost_h, axis=2, keepdims=True)))
        if t < routing_iterations - 1:
            ln_pdf = -0.5 * jnp.sum(diff * diff / sigma_sq + jnp.log(sigma_sq) + LOG2PI,
                                    axis=2, keepdims=True)
            ln_ap = jnp.log(a_out + EPS) + ln_pdf
            m = jnp.max(ln_ap, axis=1, keepdims=True)
            num = jnp.exp(ln_ap - m)
            r = num / (jnp.sum(num, axis=1, keepdims=True) + EPS)
    return mu.reshape(B, O, M, M), a_out.reshape(B, O)


if __name__ == "__main__":
    key = jax.random.PRNGKey(0)
    kx, ka, kw, kba, kbu = jax.random.split(key, 5)
    B, H, Wsp = 2, 4, 4

    # inputs implied by the forward: pose x (B,H,W,inCaps,M,M), activation a (B,H,W,inCaps)
    x = jax.random.normal(kx, (B, H, Wsp, IN_CAPS, *M_SIZE), jnp.float32)
    a = jax.random.uniform(ka, (B, H, Wsp, IN_CAPS), jnp.float32)

    # deterministic parameter init matching __init__ shapes: W ~ randn, Beta_* ~ U(0,1)
    W = jax.random.normal(kw, (1, 1, 1, IN_CAPS, OUT_CAPS, *M_SIZE), jnp.float32)
    beta_a = jax.random.uniform(kba, (1, OUT_CAPS), jnp.float32)
    beta_u = jax.random.uniform(kbu, (1, OUT_CAPS, 1), jnp.float32)

    pose, act = jax.block_until_ready(
        fc_caps_matrix_norecept(x, a, W, beta_a, beta_u,
                                routing_iterations=ROUTING_ITERS))

    ref_pose, ref_act = _reference(x, a, W, beta_a, beta_u, ROUTING_ITERS)
    assert pose.shape == (B, OUT_CAPS, *M_SIZE) and act.shape == (B, OUT_CAPS)
    assert jnp.allclose(pose, ref_pose, rtol=1e-2, atol=1e-3), "pose mismatch"
    assert jnp.allclose(act, ref_act, rtol=1e-2, atol=1e-3), "activation mismatch"
    print("KERNEL_OK")
</pallas_src>

<mosaic_0001>
module attributes {stable_mosaic.version = 11 : i64} {
  func.func @_em_caps_kernel(%arg0: i32, %arg1: memref<1x16x128xf32, #tpu.memory_space<vmem>>, %arg2: memref<4x10x4x128xf32, #tpu.memory_space<vmem>>, %arg3: memref<1x1x128xf32, #tpu.memory_space<vmem>>, %arg4: memref<10x1x1xf32, #tpu.memory_space<vmem>>, %arg5: memref<10x1x1xf32, #tpu.memory_space<vmem>>, %arg6: memref<1x10x16x1xf32, #tpu.memory_space<vmem>>, %arg7: memref<1x10x1x1xf32, #tpu.memory_space<vmem>>, %arg8: memref<10x16x128xf32, #tpu.memory_space<vmem>>) attributes {dimension_semantics = [#tpu.dimension_semantics<parallel>], iteration_bounds = array<i64: 2>, scalar_prefetch = 0 : i64, scratch_operands = 1 : i64, tpu.core_type = #tpu.core_type<tc>, window_params = [{transform_indices = @transform_0, window_bounds = array<i64: 1, 16, 128>}, {pipeline_mode = #tpu.pipeline_mode<synchronous>, transform_indices = @transform_1, window_bounds = array<i64: 4, 10, 4, 128>}, {transform_indices = @transform_2, window_bounds = array<i64: 1, 1, 128>}, {pipeline_mode = #tpu.pipeline_mode<synchronous>, transform_indices = @transform_3, window_bounds = array<i64: 10, 1, 1>}, {pipeline_mode = #tpu.pipeline_mode<synchronous>, transform_indices = @transform_4, window_bounds = array<i64: 10, 1, 1>}, {transform_indices = @transform_5, window_bounds = array<i64: 1, 10, 16, 1>}, {transform_indices = @transform_6, window_bounds = array<i64: 1, 10, 1, 1>}]} {
    %c0 = arith.constant 0 : index
    %c0_0 = arith.constant 0 : index
    %c0_1 = arith.constant 0 : index
    %0 = vector.load %arg1[%c0, %c0_0, %c0_1] : memref<1x16x128xf32, #tpu.memory_space<vmem>>, vector<1x16x128xf32>
    %1 = vector.shape_cast %0 : vector<1x16x128xf32> to vector<16x128xf32>
    %c0_2 = arith.constant 0 : index
    %c0_3 = arith.constant 0 : index
    %c0_4 = arith.constant 0 : index
    %2 = vector.load %arg3[%c0_2, %c0_3, %c0_4] : memref<1x1x128xf32, #tpu.memory_space<vmem>>, vector<1x1x128xf32>
    %c0_5 = arith.constant 0 : index
    %c0_6 = arith.constant 0 : index
    %c0_7 = arith.constant 0 : index
    %3 = vector.load %arg4[%c0_5, %c0_6, %c0_7] : memref<10x1x1xf32, #tpu.memory_space<vmem>>, vector<10x1x1xf32>
    %c0_8 = arith.constant 0 : index
    %c0_9 = arith.constant 0 : index
    %c0_10 = arith.constant 0 : index
    %4 = vector.load %arg5[%c0_8, %c0_9, %c0_10] : memref<10x1x1xf32, #tpu.memory_space<vmem>>, vector<10x1x1xf32>
    %5 = vector.extract_strided_slice %1 {offsets = [0, 0], sizes = [1, 128], strides = [1, 1]} : vector<16x128xf32> to vector<1x128xf32>
    %6 = vector.shape_cast %5 : vector<1x128xf32> to vector<1x1x128xf32>
    %c0_11 = arith.constant 0 : index
    %c0_12 = arith.constant 0 : index
    %c0_13 = arith.constant 0 : index
    %c0_14 = arith.constant 0 : index
    %7 = vector.load %arg2[%c0_11, %c0_12, %c0_13, %c0_14] : memref<4x10x4x128xf32, #tpu.memory_space<vmem>>, vector<1x10x4x128xf32>
    %8 = vector.shape_cast %7 : vector<1x10x4x128xf32> to vector<10x4x128xf32>
    %9 = vector.broadcast %6 : vector<1x1x128xf32> to vector<10x4x128xf32>
    %10 = arith.mulf %9, %8 : vector<10x4x128xf32>
    %11 = vector.extract_strided_slice %1 {offsets = [1, 0], sizes = [1, 128], strides = [1, 1]} : vector<16x128xf32> to vector<1x128xf32>
    %12 = vector.shape_cast %11 : vector<1x128xf32> to vector<1x1x128xf32>
    %c1 = arith.constant 1 : index
    %c0_15 = arith.constant 0 : index
    %c0_16 = arith.constant 0 : index
    %c0_17 = arith.constant 0 : index
    %13 = vector.load %arg2[%c1, %c0_15, %c0_16, %c0_17] : memref<4x10x4x128xf32, #tpu.memory_space<vmem>>, vector<1x10x4x128xf32>
    %14 = vector.shape_cast %13 : vector<1x10x4x128xf32> to vector<10x4x128xf32>
    %15 = vector.broadcast %12 : vector<1x1x128xf32> to vector<10x4x128xf32>
    %16 = arith.mulf %15, %14 : vector<10x4x128xf32>
    %17 = arith.addf %10, %16 : vector<10x4x128xf32>
    %18 = vector.extract_strided_slice %1 {offsets = [2, 0], sizes = [1, 128], strides = [1, 1]} : vector<16x128xf32> to vector<1x128xf32>
    %19 = vector.shape_cast %18 : vector<1x128xf32> to vector<1x1x128xf32>
    %c2 = arith.constant 2 : index
    %c0_18 = arith.constant 0 : index
    %c0_19 = arith.constant 0 : index
    %c0_20 = arith.constant 0 : index
    %20 = vector.load %arg2[%c2, %c0_18, %c0_19, %c0_20] : memref<4x10x4x128xf32, #tpu.memory_space<vmem>>, vector<1x10x4x128xf32>
    %21 = vector.shape_cast %20 : vector<1x10x4x128xf32> to vector<10x4x128xf32>
    %22 = vector.broadcast %19 : vector<1x1x128xf32> to vector<10x4x128xf32>
    %23 = arith.mulf %22, %21 : vector<10x4x128xf32>
    %24 = arith.addf %17, %23 : vector<10x4x128xf32>
    %25 = vector.extract_strided_slice %1 {offsets = [3, 0], sizes = [1, 128], strides = [1, 1]} : vector<16x128xf32> to vector<1x128xf32>
    %26 = vector.shape_cast %25 : vector<1x128xf32> to vector<1x1x128xf32>
    %c3 = arith.constant 3 : index
    %c0_21 = arith.constant 0 : index
    %c0_22 = arith.constant 0 : index
    %c0_23 = arith.constant 0 : index
    %27 = vector.load %arg2[%c3, %c0_21, %c0_22, %c0_23] : memref<4x10x4x128xf32, #tpu.memory_space<vmem>>, vector<1x10x4x128xf32>
    %28 = vector.shape_cast %27 : vector<1x10x4x128xf32> to vector<10x4x128xf32>
    %29 = vector.broadcast %26 : vector<1x1x128xf32> to vector<10x4x128xf32>
    %30 = arith.mulf %29, %28 : vector<10x4x128xf32>
    %31 = arith.addf %24, %30 : vector<10x4x128xf32>
    %c0_24 = arith.constant 0 : index
    %c0_25 = arith.constant 0 : index
    %c0_26 = arith.constant 0 : index
    %32 = vector.load %arg8[%c0_24, %c0_25, %c0_26] : memref<10x16x128xf32, #tpu.memory_space<vmem>>, vector<10x4x128xf32>
    tpu.vector_store %arg8[%c0_24, %c0_25, %c0_26], %31 {strides = array<i32>} : memref<10x16x128xf32, #tpu.memory_space<vmem>>, vector<10x4x128xf32>,
    %33 = vector.extract_strided_slice %1 {offsets = [4, 0], sizes = [1, 128], strides = [1, 1]} : vector<16x128xf32> to vector<1x128xf32>
    %34 = vector.shape_cast %33 : vector<1x128xf32> to vector<1x1x128xf32>
    %c0_27 = arith.constant 0 : index
    %c0_28 = arith.constant 0 : index
    %c0_29 = arith.constant 0 : index
    %c0_30 = arith.constant 0 : index
    %35 = vector.load %arg2[%c0_27, %c0_28, %c0_29, %c0_30] : memref<4x10x4x128xf32, #tpu.memory_space<vmem>>, vector<1x10x4x128xf32>
    %36 = vector.shape_cast %35 : vector<1x10x4x128xf32> to vector<10x4x128xf32>
    %37 = vector.broadcast %34 : vector<1x1x128xf32> to vector<10x4x128xf32>
    %38 = arith.mulf %37, %36 : vector<10x4x128xf32>
    %39 = vector.extract_strided_slice %1 {offsets = [5, 0], sizes = [1, 128], strides = [1, 1]} : vector<16x128xf32> to vector<1x128xf32>
    %40 = vector.shape_cast %39 : vector<1x128xf32> to vector<1x1x128xf32>
    %c1_31 = arith.constant 1 : index
    %c0_32 = arith.constant 0 : index
    %c0_33 = arith.constant 0 : index
    %c0_34 = arith.constant 0 : index
    %41 = vector.load %arg2[%c1_31, %c0_32, %c0_33, %c0_34] : memref<4x10x4x128xf32, #tpu.memory_space<vmem>>, vector<1x10x4x128xf32>
    %42 = vector.shape_cast %41 : vector<1x10x4x128xf32> to vector<10x4x128xf32>
    %43 = vector.broadcast %40 : vector<1x1x128xf32> to vector<10x4x128xf32>
    %44 = arith.mulf %43, %42 : vector<10x4x128xf32>
    %45 = arith.addf %38, %44 : vector<10x4x128xf32>
    %46 = vector.extract_strided_slice %1 {offsets = [6, 0], sizes = [1, 128], strides = [1, 1]} : vector<16x128xf32> to vector<1x128xf32>
    %47 = vector.shape_cast %46 : vector<1x128xf32> to vector<1x1x128xf32>
    %c2_35 = arith.constant 2 : index
    %c0_36 = arith.constant 0 : index
    %c0_37 = arith.constant 0 : index
    %c0_38 = arith.constant 0 : index
    %48 = vector.load %arg2[%c2_35, %c0_36, %c0_37, %c0_38] : memref<4x10x4x128xf32, #tpu.memory_space<vmem>>, vector<1x10x4x128xf32>
    %49 = vector.shape_cast %48 : vector<1x10x4x128xf32> to vector<10x4x128xf32>
    %50 = vector.broadcast %47 : vector<1x1x128xf32> to vector<10x4x128xf32>
    %51 = arith.mulf %50, %49 : vector<10x4x128xf32>
    %52 = arith.addf %45, %51 : vector<10x4x128xf32>
    %53 = vector.extract_strided_slice %1 {offsets = [7, 0], sizes = [1, 128], strides = [1, 1]} : vector<16x128xf32> to vector<1x128xf32>
    %54 = vector.shape_cast %53 : vector<1x128xf32> to vector<1x1x128xf32>
    %c3_39 = arith.constant 3 : index
    %c0_40 = arith.constant 0 : index
    %c0_41 = arith.constant 0 : index
    %c0_42 = arith.constant 0 : index
    %55 = vector.load %arg2[%c3_39, %c0_40, %c0_41, %c0_42] : memref<4x10x4x128xf32, #tpu.memory_space<vmem>>, vector<1x10x4x128xf32>
    %56 = vector.shape_cast %55 : vector<1x10x4x128xf32> to vector<10x4x128xf32>
    %57 = vector.broadcast %54 : vector<1x1x128xf32> to vector<10x4x128xf32>
    %58 = arith.mulf %57, %56 : vector<10x4x128xf32>
    %59 = arith.addf %52, %58 : vector<10x4x128xf32>
    %c0_43 = arith.constant 0 : index
    %c4 = arith.constant 4 : index
    %c0_44 = arith.constant 0 : index
    %60 = vector.load %arg8[%c0_43, %c4, %c0_44] : memref<10x16x128xf32, #tpu.memory_space<vmem>>, vector<10x4x128xf32>
    tpu.vector_store %arg8[%c0_43, %c4, %c0_44], %59 {strides = array<i32>} : memref<10x16x128xf32, #tpu.memory_space<vmem>>, vector<10x4x128xf32>,
    %61 = vector.extract_strided_slice %1 {offsets = [8, 0], sizes = [1, 128], strides = [1, 1]} : vector<16x128xf32> to vector<1x128xf32>
    %62 = vector.shape_cast %61 : vector<1x128xf32> to vector<1x1x128xf32>
    %c0_45 = arith.constant 0 : index
    %c0_46 = arith.constant 0 : index
    %c0_47 = arith.constant 0 : index
    %c0_48 = arith.constant 0 : index
    %63 = vector.load %arg2[%c0_45, %c0_46, %c0_47, %c0_48] : memref<4x10x4x128xf32, #tpu.memory_space<vmem>>, vector<1x10x4x128xf32>
    %64 = vector.shape_cast %63 : vector<1x10x4x128xf32> to vector<10x4x128xf32>
    %65 = vector.broadcast %62 : vector<1x1x128xf32> to vector<10x4x128xf32>
    %66 = arith.mulf %65, %64 : vector<10x4x128xf32>
    %67 = vector.extract_strided_slice %1 {offsets = [9, 0], sizes = [1, 128], strides = [1, 1]} : vector<16x128xf32> to vector<1x128xf32>
    %68 = vector.shape_cast %67 : vector<1x128xf32> to vector<1x1x128xf32>
    %c1_49 = arith.constant 1 : index
    %c0_50 = arith.constant 0 : index
    %c0_51 = arith.constant 0 : index
    %c0_52 = arith.constant 0 : index
    %69 = vector.load %arg2[%c1_49, %c0_50, %c0_51, %c0_52] : memref<4x10x4x128xf32, #tpu.memory_space<vmem>>, vector<1x10x4x128xf32>
    %70 = vector.shape_cast %69 : vector<1x10x4x128xf32> to vector<10x4x128xf32>
    %71 = vector.broadcast %68 : vector<1x1x128xf32> to vector<10x4x128xf32>
    %72 = arith.mulf %71, %70 : vector<10x4x128xf32>
    %73 = arith.addf %66, %72 : vector<10x4x128xf32>
    %74 = vector.extract_strided_slice %1 {offsets = [10, 0], sizes = [1, 128], strides = [1, 1]} : vector<16x128xf32> to vector<1x128xf32>
    %75 = vector.shape_cast %74 : vector<1x128xf32> to vector<1x1x128xf32>
    %c2_53 = arith.constant 2 : index
    %c0_54 = arith.constant 0 : index
    %c0_55 = arith.constant 0 : index
    %c0_56 = arith.constant 0 : index
    %76 = vector.load %arg2[%c2_53, %c0_54, %c0_55, %c0_56] : memref<4x10x4x128xf32, #tpu.memory_space<vmem>>, vector<1x10x4x128xf32>
    %77 = vector.shape_cast %76 : vector<1x10x4x128xf32> to vector<10x4x128xf32>
    %78 = vector.broadcast %75 : vector<1x1x128xf32> to vector<10x4x128xf32>
    %79 = arith.mulf %78, %77 : vector<10x4x128xf32>
    %80 = arith.addf %73, %79 : vector<10x4x128xf32>
    %81 = vector.extract_strided_slice %1 {offsets = [11, 0], sizes = [1, 128], strides = [1, 1]} : vector<16x128xf32> to vector<1x128xf32>
    %82 = vector.shape_cast %81 : vector<1x128xf32> to vector<1x1x128xf32>
    %c3_57 = arith.constant 3 : index
    %c0_58 = arith.constant 0 : index
    %c0_59 = arith.constant 0 : index
    %c0_60 = arith.constant 0 : index
    %83 = vector.load %arg2[%c3_57, %c0_58, %c0_59, %c0_60] : memref<4x10x4x128xf32, #tpu.memory_space<vmem>>, vector<1x10x4x128xf32>
    %84 = vector.shape_cast %83 : vector<1x10x4x128xf32> to vector<10x4x128xf32>
    %85 = vector.broadcast %82 : vector<1x1x128xf32> to vector<10x4x128xf32>
    %86 = arith.mulf %85, %84 : vector<10x4x128xf32>
    %87 = arith.addf %80, %86 : vector<10x4x128xf32>
    %c0_61 = arith.constant 0 : index
    %c8 = arith.constant 8 : index
    %c0_62 = arith.constant 0 : index
    %88 = vector.load %arg8[%c0_61, %c8, %c0_62] : memref<10x16x128xf32, #tpu.memory_space<vmem>>, vector<10x4x128xf32>
    tpu.vector_store %arg8[%c0_61, %c8, %c0_62], %87 {strides = array<i32>} : memref<10x16x128xf32, #tpu.memory_space<vmem>>, vector<10x4x128xf32>,
    %89 = vector.extract_strided_slice %1 {offsets = [12, 0], sizes = [1, 128], strides = [1, 1]} : vector<16x128xf32> to vector<1x128xf32>
    %90 = vector.shape_cast %89 : vector<1x128xf32> to vector<1x1x128xf32>
    %c0_63 = arith.constant 0 : index
    %c0_64 = arith.constant 0 : index
    %c0_65 = arith.constant 0 : index
    %c0_66 = arith.constant 0 : index
    %91 = vector.load %arg2[%c0_63, %c0_64, %c0_65, %c0_66] : memref<4x10x4x128xf32, #tpu.memory_space<vmem>>, vector<1x10x4x128xf32>
    %92 = vector.shape_cast %91 : vector<1x10x4x128xf32> to vector<10x4x128xf32>
    %93 = vector.broadcast %90 : vector<1x1x128xf32> to vector<10x4x128xf32>
    %94 = arith.mulf %93, %92 : vector<10x4x128xf32>
    %95 = vector.extract_strided_slice %1 {offsets = [13, 0], sizes = [1, 128], strides = [1, 1]} : vector<16x128xf32> to vector<1x128xf32>
    %96 = vector.shape_cast %95 : vector<1x128xf32> to vector<1x1x128xf32>
    %c1_67 = arith.constant 1 : index
    %c0_68 = arith.constant 0 : index
    %c0_69 = arith.constant 0 : index
    %c0_70 = arith.constant 0 : index
    %97 = vector.load %arg2[%c1_67, %c0_68, %c0_69, %c0_70] : memref<4x10x4x128xf32, #tpu.memory_space<vmem>>, vector<1x10x4x128xf32>
    %98 = vector.shape_cast %97 : vector<1x10x4x128xf32> to vector<10x4x128xf32>
    %99 = vector.broadcast %96 : vector<1x1x128xf32> to vector<10x4x128xf32>
    %100 = arith.mulf %99, %98 : vector<10x4x128xf32>
    %101 = arith.addf %94, %100 : vector<10x4x128xf32>
    %102 = vector.extract_strided_slice %1 {offsets = [14, 0], sizes = [1, 128], strides = [1, 1]} : vector<16x128xf32> to vector<1x128xf32>
    %103 = vector.shape_cast %102 : vector<1x128xf32> to vector<1x1x128xf32>
    %c2_71 = arith.constant 2 : index
    %c0_72 = arith.constant 0 : index
    %c0_73 = arith.constant 0 : index
    %c0_74 = arith.constant 0 : index
    %104 = vector.load %arg2[%c2_71, %c0_72, %c0_73, %c0_74] : memref<4x10x4x128xf32, #tpu.memory_space<vmem>>, vector<1x10x4x128xf32>
    %105 = vector.shape_cast %104 : vector<1x10x4x128xf32> to vector<10x4x128xf32>
    %106 = vector.broadcast %103 : vector<1x1x128xf32> to vector<10x4x128xf32>
    %107 = arith.mulf %106, %105 : vector<10x4x128xf32>
    %108 = arith.addf %101, %107 : vector<10x4x128xf32>
    %109 = vector.extract_strided_slice %1 {offsets = [15, 0], sizes = [1, 128], strides = [1, 1]} : vector<16x128xf32> to vector<1x128xf32>
    %110 = vector.shape_cast %109 : vector<1x128xf32> to vector<1x1x128xf32>
    %c3_75 = arith.constant 3 : index
    %c0_76 = arith.constant 0 : index
    %c0_77 = arith.constant 0 : index
    %c0_78 = arith.constant 0 : index
    %111 = vector.load %arg2[%c3_75, %c0_76, %c0_77, %c0_78] : memref<4x10x4x128xf32, #tpu.memory_space<vmem>>, vector<1x10x4x128xf32>
    %112 = vector.shape_cast %111 : vector<1x10x4x128xf32> to vector<10x4x128xf32>
    %113 = vector.broadcast %110 : vector<1x1x128xf32> to vector<10x4x128xf32>
    %114 = arith.mulf %113, %112 : vector<10x4x128xf32>
    %115 = arith.addf %108, %114 : vector<10x4x128xf32>
    %c0_79 = arith.constant 0 : index
    %c12 = arith.constant 12 : index
    %c0_80 = arith.constant 0 : index
    %116 = vector.load %arg8[%c0_79, %c12, %c0_80] : memref<10x16x128xf32, #tpu.memory_space<vmem>>, vector<10x4x128xf32>
    tpu.vector_store %arg8[%c0_79, %c12, %c0_80], %115 {strides = array<i32>} : memref<10x16x128xf32, #tpu.memory_space<vmem>>, vector<10x4x128xf32>,
    %cst = arith.constant 1.000000e-01 : f32
    %117 = vector.broadcast %cst : f32 to vector<10x1x128xf32>
    %c0_81 = arith.constant 0 : index
    %c0_82 = arith.constant 0 : index
    %c0_83 = arith.constant 0 : index
    %118 = vector.load %arg8[%c0_81, %c0_82, %c0_83] : memref<10x16x128xf32, #tpu.memory_space<vmem>>, vector<10x16x128xf32>
    %119 = vector.broadcast %2 : vector<1x1x128xf32> to vector<10x1x128xf32>
    %120 = arith.mulf %117, %119 : vector<10x1x128xf32>
    %cst_84 = arith.constant dense<0.000000e+00> : vector<10x1xf32>
    %121 = vector.multi_reduction <add>, %120, %cst_84 [2] : vector<10x1x128xf32> to vector<10x1xf32>
    %122 = vector.shape_cast %121 : vector<10x1xf32> to vector<10x1x1xf32>
    %cst_85 = arith.constant 9.99999997E-7 : f32
    %123 = vector.broadcast %cst_85 : f32 to vector<10x1x1xf32>
    %124 = arith.addf %122, %123 : vector<10x1x1xf32>
    %125 = tpu.reciprocal %124 : vector<10x1x1xf32> -> vector<10x1x1xf32>
    %126 = vector.broadcast %120 : vector<10x1x128xf32> to vector<10x16x128xf32>
    %127 = arith.mulf %126, %118 : vector<10x16x128xf32>
    %cst_86 = arith.constant dense<0.000000e+00> : vector<10x16xf32>
    %128 = vector.multi_reduction <add>, %127, %cst_86 [2] : vector<10x16x128xf32> to vector<10x16xf32>
    %129 = vector.shape_cast %128 : vector<10x16xf32> to vector<10x16x1xf32>
    %130 = vector.broadcast %125 : vector<10x1x1xf32> to vector<10x16x1xf32>
    %131 = arith.mulf %129, %130 : vector<10x16x1xf32>
    %132 = vector.broadcast %131 : vector<10x16x1xf32> to vector<10x16x128xf32>
    %133 = arith.subf %118, %132 : vector<10x16x128xf32>
    %134 = arith.mulf %133, %133 : vector<10x16x128xf32>
    %135 = vector.broadcast %120 : vector<10x1x128xf32> to vector<10x16x128xf32>
    %136 = arith.mulf %135, %134 : vector<10x16x128xf32>
    %cst_87 = arith.constant dense<0.000000e+00> : vector<10x16xf32>
    %137 = vector.multi_reduction <add>, %136, %cst_87 [2] : vector<10x16x128xf32> to vector<10x16xf32>
    %138 = vector.shape_cast %137 : vector<10x16xf32> to vector<10x16x1xf32>
    %139 = vector.broadcast %125 : vector<10x1x1xf32> to vector<10x16x1xf32>
    %140 = arith.mulf %138, %139 : vector<10x16x1xf32>
    %cst_88 = arith.constant 9.99999997E-7 : f32
    %141 = vector.broadcast %cst_88 : f32 to vector<10x16x1xf32>
    %142 = arith.addf %140, %141 : vector<10x16x1xf32>
    %143 = math.log %142 : vector<10x16x1xf32>
    %cst_89 = arith.constant 5.000000e-01 : f32
    %144 = vector.broadcast %cst_89 : f32 to vector<10x16x1xf32>
    %145 = arith.mulf %144, %143 : vector<10x16x1xf32>
    %146 = vector.broadcast %3 : vector<10x1x1xf32> to vector<10x16x1xf32>
    %147 = arith.addf %146, %145 : vector<10x16x1xf32>
    %cst_90 = arith.constant dense<0.000000e+00> : vector<10x1xf32>
    %148 = vector.multi_reduction <add>, %147, %cst_90 [1] : vector<10x16x1xf32> to vector<10x1xf32>
    %149 = vector.shape_cast %148 : vector<10x1xf32> to vector<10x1x1xf32>
    %150 = arith.mulf %124, %149 : vector<10x1x1xf32>
    %151 = arith.subf %4, %150 : vector<10x1x1xf32>
    %cst_91 = arith.constant 5.000000e-04 : f32
    %152 = vector.broadcast %cst_91 : f32 to vector<10x1x1xf32>
    %153 = arith.mulf %152, %151 : vector<10x1x1xf32>
    %154 = arith.negf %153 : vector<10x1x1xf32>
    %155 = math.exp %154 : vector<10x1x1xf32>
    %cst_92 = arith.constant 1.000000e+00 : f32
    %156 = vector.broadcast %cst_92 : f32 to vector<10x1x1xf32>
    %157 = arith.addf %156, %155 : vector<10x1x1xf32>
    %158 = arith.divf %156, %157 : vector<10x1x1xf32>
    %159 = tpu.reciprocal %142 : vector<10x16x1xf32> -> vector<10x16x1xf32>
    %160 = vector.broadcast %159 : vector<10x16x1xf32> to vector<10x16x128xf32>
    %161 = arith.mulf %134, %160 : vector<10x16x128xf32>
    %cst_93 = arith.constant dense<0.000000e+00> : vector<10x128xf32>
    %162 = vector.multi_reduction <add>, %161, %cst_93 [1] : vector<10x16x128xf32> to vector<10x128xf32>
    %163 = vector.shape_cast %162 : vector<10x128xf32> to vector<10x1x128xf32>
    %cst_94 = arith.constant dense<0.000000e+00> : vector<10x1xf32>
    %164 = vector.multi_reduction <add>, %143, %cst_94 [1] : vector<10x16x1xf32> to vector<10x1xf32>
    %165 = vector.shape_cast %164 : vector<10x1xf32> to vector<10x1x1xf32>
    %166 = vector.broadcast %165 : vector<10x1x1xf32> to vector<10x1x128xf32>
    %167 = arith.addf %163, %166 : vector<10x1x128xf32>
    %cst_95 = arith.constant 29.4060326 : f32
    %168 = vector.broadcast %cst_95 : f32 to vector<10x1x128xf32>
    %169 = arith.addf %167, %168 : vector<10x1x128xf32>
    %cst_96 = arith.constant -5.000000e-01 : f32
    %170 = vector.broadcast %cst_96 : f32 to vector<10x1x128xf32>
    %171 = arith.mulf %170, %169 : vector<10x1x128xf32>
    %cst_97 = arith.constant 9.99999997E-7 : f32
    %172 = vector.broadcast %cst_97 : f32 to vector<10x1x1xf32>
    %173 = arith.addf %158, %172 : vector<10x1x1xf32>
    %174 = math.log %173 : vector<10x1x1xf32>
    %175 = vector.broadcast %174 : vector<10x1x1xf32> to vector<10x1x128xf32>
    %176 = arith.addf %175, %171 : vector<10x1x128xf32>
    %cst_98 = arith.constant dense<0xFF800000> : vector<1x128xf32>
    %177 = vector.multi_reduction <maximumf>, %176, %cst_98 [0] : vector<10x1x128xf32> to vector<1x128xf32>
    %178 = vector.shape_cast %177 : vector<1x128xf32> to vector<1x1x128xf32>
    %179 = vector.broadcast %178 : vector<1x1x128xf32> to vector<10x1x128xf32>
    %180 = arith.subf %176, %179 : vector<10x1x128xf32>
    %181 = math.exp %180 : vector<10x1x128xf32>
    %cst_99 = arith.constant dense<0.000000e+00> : vector<1x128xf32>
    %182 = vector.multi_reduction <add>, %181, %cst_99 [0] : vector<10x1x128xf32> to vector<1x128xf32>
    %183 = vector.shape_cast %182 : vector<1x128xf32> to vector<1x1x128xf32>
    %cst_100 = arith.constant 9.99999997E-7 : f32
    %184 = vector.broadcast %cst_100 : f32 to vector<1x1x128xf32>
    %185 = arith.addf %183, %184 : vector<1x1x128xf32>
    %186 = tpu.reciprocal %185 : vector<1x1x128xf32> -> vector<1x1x128xf32>
    %187 = vector.broadcast %186 : vector<1x1x128xf32> to vector<10x1x128xf32>
    %188 = arith.mulf %181, %187 : vector<10x1x128xf32>
    %c0_101 = arith.constant 0 : index
    %c0_102 = arith.constant 0 : index
    %c0_103 = arith.constant 0 : index
    %189 = vector.load %arg8[%c0_101, %c0_102, %c0_103] : memref<10x16x128xf32, #tpu.memory_space<vmem>>, vector<10x16x128xf32>
    %190 = vector.broadcast %2 : vector<1x1x128xf32> to vector<10x1x128xf32>
    %191 = arith.mulf %188, %190 : vector<10x1x128xf32>
    %cst_104 = arith.constant dense<0.000000e+00> : vector<10x1xf32>
    %192 = vector.multi_reduction <add>, %191, %cst_104 [2] : vector<10x1x128xf32> to vector<10x1xf32>
    %193 = vector.shape_cast %192 : vector<10x1xf32> to vector<10x1x1xf32>
    %cst_105 = arith.constant 9.99999997E-7 : f32
    %194 = vector.broadcast %cst_105 : f32 to vector<10x1x1xf32>
    %195 = arith.addf %193, %194 : vector<10x1x1xf32>
    %196 = tpu.reciprocal %195 : vector<10x1x1xf32> -> vector<10x1x1xf32>
    %197 = vector.broadcast %191 : vector<10x1x128xf32> to vector<10x16x128xf32>
    %198 = arith.mulf %197, %189 : vector<10x16x128xf32>
    %cst_106 = arith.constant dense<0.000000e+00> : vector<10x16xf32>
    %199 = vector.multi_reduction <add>, %198, %cst_106 [2] : vector<10x16x128xf32> to vector<10x16xf32>
    %200 = vector.shape_cast %199 : vector<10x16xf32> to vector<10x16x1xf32>
    %201 = vector.broadcast %196 : vector<10x1x1xf32> to vector<10x16x1xf32>
    %202 = arith.mulf %200, %201 : vector<10x16x1xf32>
    %203 = vector.broadcast %202 : vector<10x16x1xf32> to vector<10x16x128xf32>
    %204 = arith.subf %189, %203 : vector<10x16x128xf32>
    %205 = arith.mulf %204, %204 : vector<10x16x128xf32>
    %206 = vector.broadcast %191 : vector<10x1x128xf32> to vector<10x16x128xf32>
    %207 = arith.mulf %206, %205 : vector<10x16x128xf32>
    %cst_107 = arith.constant dense<0.000000e+00> : vector<10x16xf32>
    %208 = vector.multi_reduction <add>, %207, %cst_107 [2] : vector<10x16x128xf32> to vector<10x16xf32>
    %209 = vector.shape_cast %208 : vector<10x16xf32> to vector<10x16x1xf32>
    %210 = vector.broadcast %196 : vector<10x1x1xf32> to vector<10x16x1xf32>
    %211 = arith.mulf %209, %210 : vector<10x16x1xf32>
    %cst_108 = arith.constant 9.99999997E-7 : f32
    %212 = vector.broadcast %cst_108 : f32 to vector<10x16x1xf32>
    %213 = arith.addf %211, %212 : vector<10x16x1xf32>
    %214 = math.log %213 : vector<10x16x1xf32>
    %cst_109 = arith.constant 5.000000e-01 : f32
    %215 = vector.broadcast %cst_109 : f32 to vector<10x16x1xf32>
    %216 = arith.mulf %215, %214 : vector<10x16x1xf32>
    %217 = vector.broadcast %3 : vector<10x1x1xf32> to vector<10x16x1xf32>
    %218 = arith.addf %217, %216 : vector<10x16x1xf32>
    %cst_110 = arith.constant dense<0.000000e+00> : vector<10x1xf32>
    %219 = vector.multi_reduction <add>, %218, %cst_110 [1] : vector<10x16x1xf32> to vector<10x1xf32>
    %220 = vector.shape_cast %219 : vector<10x1xf32> to vector<10x1x1xf32>
    %221 = arith.mulf %195, %220 : vector<10x1x1xf32>
    %222 = arith.subf %4, %221 : vector<10x1x1xf32>
    %cst_111 = arith.constant 9.74999973E-4 : f32
    %223 = vector.broadcast %cst_111 : f32 to vector<10x1x1xf32>
    %224 = arith.mulf %223, %222 : vector<10x1x1xf32>
    %225 = arith.negf %224 : vector<10x1x1xf32>
    %226 = math.exp %225 : vector<10x1x1xf32>
    %cst_112 = arith.constant 1.000000e+00 : f32
    %227 = vector.broadcast %cst_112 : f32 to vector<10x1x1xf32>
    %228 = arith.addf %227, %226 : vector<10x1x1xf32>
    %229 = arith.divf %227, %228 : vector<10x1x1xf32>
    %230 = tpu.reciprocal %213 : vector<10x16x1xf32> -> vector<10x16x1xf32>
    %231 = vector.broadcast %230 : vector<10x16x1xf32> to vector<10x16x128xf32>
    %232 = arith.mulf %205, %231 : vector<10x16x128xf32>
    %cst_113 = arith.constant dense<0.000000e+00> : vector<10x128xf32>
    %233 = vector.multi_reduction <add>, %232, %cst_113 [1] : vector<10x16x128xf32> to vector<10x128xf32>
    %234 = vector.shape_cast %233 : vector<10x128xf32> to vector<10x1x128xf32>
    %cst_114 = arith.constant dense<0.000000e+00> : vector<10x1xf32>
    %235 = vector.multi_reduction <add>, %214, %cst_114 [1] : vector<10x16x1xf32> to vector<10x1xf32>
    %236 = vector.shape_cast %235 : vector<10x1xf32> to vector<10x1x1xf32>
    %237 = vector.broadcast %236 : vector<10x1x1xf32> to vector<10x1x128xf32>
    %238 = arith.addf %234, %237 : vector<10x1x128xf32>
    %cst_115 = arith.constant 29.4060326 : f32
    %239 = vector.broadcast %cst_115 : f32 to vector<10x1x128xf32>
    %240 = arith.addf %238, %239 : vector<10x1x128xf32>
    %cst_116 = arith.constant -5.000000e-01 : f32
    %241 = vector.broadcast %cst_116 : f32 to vector<10x1x128xf32>
    %242 = arith.mulf %241, %240 : vector<10x1x128xf32>
    %cst_117 = arith.constant 9.99999997E-7 : f32
    %243 = vector.broadcast %cst_117 : f32 to vector<10x1x1xf32>
    %244 = arith.addf %229, %243 : vector<10x1x1xf32>
    %245 = math.log %244 : vector<10x1x1xf32>
    %246 = vector.broadcast %245 : vector<10x1x1xf32> to vector<10x1x128xf32>
    %247 = arith.addf %246, %242 : vector<10x1x128xf32>
    %cst_118 = arith.constant dense<0xFF800000> : vector<1x128xf32>
    %248 = vector.multi_reduction <maximumf>, %247, %cst_118 [0] : vector<10x1x128xf32> to vector<1x128xf32>
    %249 = vector.shape_cast %248 : vector<1x128xf32> to vector<1x1x128xf32>
    %250 = vector.broadcast %249 : vector<1x1x128xf32> to vector<10x1x128xf32>
    %251 = arith.subf %247, %250 : vector<10x1x128xf32>
    %252 = math.exp %251 : vector<10x1x128xf32>
    %cst_119 = arith.constant dense<0.000000e+00> : vector<1x128xf32>
    %253 = vector.multi_reduction <add>, %252, %cst_119 [0] : vector<10x1x128xf32> to vector<1x128xf32>
    %254 = vector.shape_cast %253 : vector<1x128xf32> to vector<1x1x128xf32>
    %cst_120 = arith.constant 9.99999997E-7 : f32
    %255 = vector.broadcast %cst_120 : f32 to vector<1x1x128xf32>
    %256 = arith.addf %254, %255 : vector<1x1x128xf32>
    %257 = tpu.reciprocal %256 : vector<1x1x128xf32> -> vector<1x1x128xf32>
    %258 = vector.broadcast %257 : vector<1x1x128xf32> to vector<10x1x128xf32>
    %259 = arith.mulf %252, %258 : vector<10x1x128xf32>
    %c0_121 = arith.constant 0 : index
    %c0_122 = arith.constant 0 : index
    %c0_123 = arith.constant 0 : index
    %260 = vector.load %arg8[%c0_121, %c0_122, %c0_123] : memref<10x16x128xf32, #tpu.memory_space<vmem>>, vector<10x16x128xf32>
    %261 = vector.broadcast %2 : vector<1x1x128xf32> to vector<10x1x128xf32>
    %262 = arith.mulf %259, %261 : vector<10x1x128xf32>
    %cst_124 = arith.constant dense<0.000000e+00> : vector<10x1xf32>
    %263 = vector.multi_reduction <add>, %262, %cst_124 [2] : vector<10x1x128xf32> to vector<10x1xf32>
    %264 = vector.shape_cast %263 : vector<10x1xf32> to vector<10x1x1xf32>
    %cst_125 = arith.constant 9.99999997E-7 : f32
    %265 = vector.broadcast %cst_125 : f32 to vector<10x1x1xf32>
    %266 = arith.addf %264, %265 : vector<10x1x1xf32>
    %267 = tpu.reciprocal %266 : vector<10x1x1xf32> -> vector<10x1x1xf32>
    %268 = vector.broadcast %262 : vector<10x1x128xf32> to vector<10x16x128xf32>
    %269 = arith.mulf %268, %260 : vector<10x16x128xf32>
    %cst_126 = arith.constant dense<0.000000e+00> : vector<10x16xf32>
    %270 = vector.multi_reduction <add>, %269, %cst_126 [2] : vector<10x16x128xf32> to vector<10x16xf32>
    %271 = vector.shape_cast %270 : vector<10x16xf32> to vector<10x16x1xf32>
    %272 = vector.broadcast %267 : vector<10x1x1xf32> to vector<10x16x1xf32>
    %273 = arith.mulf %271, %272 : vector<10x16x1xf32>
    %274 = vector.broadcast %273 : vector<10x16x1xf32> to vector<10x16x128xf32>
    %275 = arith.subf %260, %274 : vector<10x16x128xf32>
    %276 = arith.mulf %275, %275 : vector<10x16x128xf32>
    %277 = vector.broadcast %262 : vector<10x1x128xf32> to vector<10x16x128xf32>
    %278 = arith.mulf %277, %276 : vector<10x16x128xf32>
    %cst_127 = arith.constant dense<0.000000e+00> : vector<10x16xf32>
    %279 = vector.multi_reduction <add>, %278, %cst_127 [2] : vector<10x16x128xf32> to vector<10x16xf32>
    %280 = vector.shape_cast %279 : vector<10x16xf32> to vector<10x16x1xf32>
    %281 = vector.broadcast %267 : vector<10x1x1xf32> to vector<10x16x1xf32>
    %282 = arith.mulf %280, %281 : vector<10x16x1xf32>
    %cst_128 = arith.constant 9.99999997E-7 : f32
    %283 = vector.broadcast %cst_128 : f32 to vector<10x16x1xf32>
    %284 = arith.addf %282, %283 : vector<10x16x1xf32>
    %285 = math.log %284 : vector<10x16x1xf32>
    %cst_129 = arith.constant 5.000000e-01 : f32
    %286 = vector.broadcast %cst_129 : f32 to vector<10x16x1xf32>
    %287 = arith.mulf %286, %285 : vector<10x16x1xf32>
    %288 = vector.broadcast %3 : vector<10x1x1xf32> to vector<10x16x1xf32>
    %289 = arith.addf %288, %287 : vector<10x16x1xf32>
    %cst_130 = arith.constant dense<0.000000e+00> : vector<10x1xf32>
    %290 = vector.multi_reduction <add>, %289, %cst_130 [1] : vector<10x16x1xf32> to vector<10x1xf32>
    %291 = vector.shape_cast %290 : vector<10x1xf32> to vector<10x1x1xf32>
    %292 = arith.mulf %266, %291 : vector<10x1x1xf32>
    %293 = arith.subf %4, %292 : vector<10x1x1xf32>
    %cst_131 = arith.constant 1.426250e-03 : f32
    %294 = vector.broadcast %cst_131 : f32 to vector<10x1x1xf32>
    %295 = arith.mulf %294, %293 : vector<10x1x1xf32>
    %296 = arith.negf %295 : vector<10x1x1xf32>
    %297 = math.exp %296 : vector<10x1x1xf32>
    %cst_132 = arith.constant 1.000000e+00 : f32
    %298 = vector.broadcast %cst_132 : f32 to vector<10x1x1xf32>
    %299 = arith.addf %298, %297 : vector<10x1x1xf32>
    %300 = arith.divf %298, %299 : vector<10x1x1xf32>
    %c0_133 = arith.constant 0 : index
    %c0_134 = arith.constant 0 : index
    %c0_135 = arith.constant 0 : index
    %c0_136 = arith.constant 0 : index
    %301 = vector.load %arg6[%c0_133, %c0_134, %c0_135, %c0_136] : memref<1x10x16x1xf32, #tpu.memory_space<vmem>>, vector<1x10x16x1xf32>
    %302 = vector.shape_cast %301 : vector<1x10x16x1xf32> to vector<10x16x1xf32>
    %303 = vector.shape_cast %273 : vector<10x16x1xf32> to vector<1x10x16x1xf32>
    tpu.vector_store %arg6[%c0_133, %c0_134, %c0_135, %c0_136], %303 {strides = array<i32>} : memref<1x10x16x1xf32, #tpu.memory_space<vmem>>, vector<1x10x16x1xf32>,
    %c0_137 = arith.constant 0 : index
    %c0_138 = arith.constant 0 : index
    %c0_139 = arith.constant 0 : index
    %c0_140 = arith.constant 0 : index
    %304 = vector.load %arg7[%c0_137, %c0_138, %c0_139, %c0_140] : memref<1x10x1x1xf32, #tpu.memory_space<vmem>>, vector<1x10x1x1xf32>
    %305 = vector.shape_cast %304 : vector<1x10x1x1xf32> to vector<10x1x1xf32>
    %306 = vector.shape_cast %300 : vector<10x1x1xf32> to vector<1x10x1x1xf32>
    tpu.vector_store %arg7[%c0_137, %c0_138, %c0_139, %c0_140], %306 {strides = array<i32>} : memref<1x10x1x1xf32, #tpu.memory_space<vmem>>, vector<1x10x1x1xf32>,
    return
  }
  func.func @transform_0(%arg0: i32) -> (i32, i32, i32) {
    %c0_i32 = arith.constant 0 : i32
    %c0_i32_0 = arith.constant 0 : i32
    %c0_i32_1 = arith.constant 0 : i32
    return %arg0, %c0_i32, %c0_i32_0 : i32, i32, i32
  }
  func.func @transform_1(%arg0: i32) -> (i32, i32, i32, i32) {
    %c0_i32 = arith.constant 0 : i32
    %c0_i32_0 = arith.constant 0 : i32
    %c0_i32_1 = arith.constant 0 : i32
    %c0_i32_2 = arith.constant 0 : i32
    %c0_i32_3 = arith.constant 0 : i32
    return %c0_i32, %c0_i32_0, %c0_i32_1, %c0_i32_2 : i32, i32, i32, i32
  }
  func.func @transform_2(%arg0: i32) -> (i32, i32, i32) {
    %c0_i32 = arith.constant 0 : i32
    %c0_i32_0 = arith.constant 0 : i32
    %c0_i32_1 = arith.constant 0 : i32
    return %arg0, %c0_i32, %c0_i32_0 : i32, i32, i32
  }
  func.func @transform_3(%arg0: i32) -> (i32, i32, i32) {
    %c0_i32 = arith.constant 0 : i32
    %c0_i32_0 = arith.constant 0 : i32
    %c0_i32_1 = arith.constant 0 : i32
    %c0_i32_2 = arith.constant 0 : i32
    return %c0_i32, %c0_i32_0, %c0_i32_1 : i32, i32, i32
  }
  func.func @transform_4(%arg0: i32) -> (i32, i32, i32) {
    %c0_i32 = arith.constant 0 : i32
    %c0_i32_0 = arith.constant 0 : i32
    %c0_i32_1 = arith.constant 0 : i32
    %c0_i32_2 = arith.constant 0 : i32
    return %c0_i32, %c0_i32_0, %c0_i32_1 : i32, i32, i32
  }
  func.func @transform_5(%arg0: i32) -> (i32, i32, i32, i32) {
    %c0_i32 = arith.constant 0 : i32
    %c0_i32_0 = arith.constant 0 : i32
    %c0_i32_1 = arith.constant 0 : i32
    %c0_i32_2 = arith.constant 0 : i32
    return %arg0, %c0_i32, %c0_i32_0, %c0_i32_1 : i32, i32, i32, i32
  }
  func.func @transform_6(%arg0: i32) -> (i32, i32, i32, i32) {
    %c0_i32 = arith.constant 0 : i32
    %c0_i32_0 = arith.constant 0 : i32
    %c0_i32_1 = arith.constant 0 : i32
    %c0_i32_2 = arith.constant 0 : i32
    return %arg0, %c0_i32, %c0_i32_0, %c0_i32_1 : i32, i32, i32, i32
  }
}

</mosaic_0001>

<llo_original>
// kernel: tpu_custom_call.1
$region0: #{tpu_custom_call.1}
  #allocation0 [shape = 'u32[]', space=smem, size = 0x4, offset = 0x4, fixed_abs, tag = 'smem constant byte address 0x4 - core index']
  #allocation1 [shape = 'u32[144,128]{1,0:T(1,128)}', space=vmem, size = 0x12000, scoped, tag = 'internal scratch']
  #allocation2 [shape = 'f32[10,16,128]{2,1,0:T(8,128)}', space=vmem, size = 0x14000, scoped, tag = 'scratch operand']
  %s0 = inlined_call_operand.hbm [shape: f32[2,16,128], index: 0, kind: input, shape index: {}]
  %s1 = inlined_call_operand.hbm [shape: f32[4,10,4,128], index: 1, kind: input, shape index: {}]
  %s2 = inlined_call_operand.vmem [shape: f32[2,1,128], index: 2, kind: input, shape index: {}]
  %s3 = inlined_call_operand.vmem [shape: f32[10,1,1], index: 3, kind: input, shape index: {}]
  %s4 = inlined_call_operand.vmem [shape: f32[10,1,1], index: 4, kind: input, shape index: {}]
  %s5 = inlined_call_operand.vmem [shape: f32[2,10,16,1], index: 5, kind: output, shape index: {0}]
  %s6 = inlined_call_operand.vmem [shape: f32[2,10,1,1], index: 6, kind: output, shape index: {1}]
  %7 = xla_tuple %s5, %s6
  %s8 = sld [smem:[#allocation0]]
  $region69: #{tpu_custom_call.1} parent=0
    _
  %s10 = ssub.s32 1, %s8
  %s11 = scalar_select 0, %s10, %s8
  $region1: #{tpu_custom_call.1} parent=0
    #allocation3 [shape = 'u8[16384]{0}', space=vmem, size = 0x4000, scoped, tag = 'input window, operand 0']
    #allocation4 [shape = 's32[2]{0}', space=sflag, size = 0x8, scoped, tag = 'scoped memory for tpu_custom_call.1']
    #allocation5 [shape = 'u8[81920]{0}', space=vmem, size = 0x14000, scoped, tag = 'input window, operand 1, single buffered']
    #allocation6 [shape = 's32[1]{0}', space=sflag, size = 0x4, scoped, tag = 'scoped memory for tpu_custom_call.1']
    %12 = vsyncpa [#allocation4], 0
    %s13 = scalar_lea.sflag [#allocation4], 1
    %14 = vsyncpa %s13, 0
    %15 = vsyncpa [#allocation6], 0
    loop: start=0, step=1, limit=4
    $region2: #{tpu_custom_call.1} parent=1 // loop_pre_header
      _
    $region3: #{tpu_custom_call.1} parent=1 // loop_header
      %s17 = sphi 0, %s21
      %p18 = scmp.ge.s32.totalorder %s17, 4
      %s27 = sphi 0, %s29
      %s30 = sphi 0, %s27
      %s31 = sphi 0, %s30
      %s47 = sphi 0, %s31
      %s51 = sphi 0, %s51
      %s53 = sphi 0, %s51
      %s54 = sphi 0, %s53
      %s68 = sphi 0, %s54
      %s74 = sphi 0, %s76
      %s77 = sphi 0, %s74
      %s78 = sphi 0, %s77
      %s94 = sphi 0, %s78
      %s98 = sphi 0, %s98
      %s100 = sphi 0, %s98
      %s101 = sphi 0, %s100
      %s115 = sphi 0, %s101
      %s119 = sphi 0, %s119
      %s121 = sphi 0, %s119
      %s122 = sphi 0, %s121
      %s136 = sphi 0, %s122
      %s142 = sphi 0, %s144
      %s145 = sphi 0, %s142
      %s146 = sphi 0, %s145
      %s162 = sphi 0, %s146
      %s168 = sphi 0, %s170
      %s171 = sphi 0, %s168
      %s172 = sphi 0, %s171
      %s188 = sphi 0, %s172
    $region4: #{tpu_custom_call.1} parent=1 // loop_header_branch
      %20 = sbr.rel (%p18) target = $region8
    $region5: #{tpu_custom_call.1} parent=1 // loop_body
      %s22 = ssub.s32 %s17, 1
      %s23 = ssub.s32 %s17, 2
      %s24 = sadd.s32 %s17, 1
      %s25 = ssub.s32 %s17, %s24
      %p26 = scmp.eq.s32.totalorder %s25, 0
      %s28 = sadd.s32 %s27, 1
      %s29 = scalar_select %p26, %s27, %s28
      %p32 = pneg %p26
      %p33 = scmp.eq.s32.totalorder %s17, 1
      %p34 = por %p32, %p33
      %p35 = scmp.ne.s32.totalorder %s27, %s30
      %p36 = scmp.eq.s32.totalorder %s17, 0
      %p37 = por %p35, %p36
      %p38 = scmp.ne.s32.totalorder %s27, %s30
      %p39 = scmp.eq.s32.totalorder %s22, 1
      %p40 = por %p38, %p39
      %p41 = scmp.ne.s32.totalorder %s30, %s31
      %p42 = scmp.eq.s32.totalorder %s22, 0
      %p43 = por %p41, %p42
      %p44 = scmp.ne.s32.totalorder %s30, %s31
      %p45 = scmp.eq.s32.totalorder %s23, 1
      %p46 = por %p44, %p45
      %p48 = scmp.ne.s32.totalorder %s31, %s47
      %p49 = scmp.eq.s32.totalorder %s23, 0
      %p50 = por %p48, %p49
      %s52 = sadd.s32 %s51, 1
      %p55 = scmp.eq.s32.totalorder %s17, 1
      %p56 = scmp.ne.s32.totalorder %s51, %s53
      %p57 = scmp.eq.s32.totalorder %s17, 0
      %p58 = por %p56, %p57
      %p59 = scmp.ne.s32.totalorder %s51, %s53
      %p60 = scmp.eq.s32.totalorder %s22, 1
      %p61 = por %p59, %p60
      %p62 = scmp.ne.s32.totalorder %s53, %s54
      %p63 = scmp.eq.s32.totalorder %s22, 0
      %p64 = por %p62, %p63
      %p65 = scmp.ne.s32.totalorder %s53, %s54
      %p66 = scmp.eq.s32.totalorder %s23, 1
      %p67 = por %p65, %p66
      %p69 = scmp.ne.s32.totalorder %s54, %s68
      %p70 = scmp.eq.s32.totalorder %s23, 0
      %p71 = por %p69, %p70
      %s72 = ssub.s32 %s17, %s24
      %p73 = scmp.eq.s32.totalorder %s72, 0
      %s75 = sadd.s32 %s74, 1
      %s76 = scalar_select %p73, %s74, %s75
      %p79 = pneg %p73
      %p80 = scmp.eq.s32.totalorder %s17, 1
      %p81 = por %p79, %p80
      %p82 = scmp.ne.s32.totalorder %s74, %s77
      %p83 = scmp.eq.s32.totalorder %s17, 0
      %p84 = por %p82, %p83
      %p85 = scmp.ne.s32.totalorder %s74, %s77
      %p86 = scmp.eq.s32.totalorder %s22, 1
      %p87 = por %p85, %p86
      %p88 = scmp.ne.s32.totalorder %s77, %s78
      %p89 = scmp.eq.s32.totalorder %s22, 0
      %p90 = por %p88, %p89
      %p91 = scmp.ne.s32.totalorder %s77, %s78
      %p92 = scmp.eq.s32.totalorder %s23, 1
      %p93 = por %p91, %p92
      %p95 = scmp.ne.s32.totalorder %s78, %s94
      %p96 = scmp.eq.s32.totalorder %s23, 0
      %p97 = por %p95, %p96
      %s99 = sadd.s32 %s98, 1
      %p102 = scmp.eq.s32.totalorder %s17, 1
      %p103 = scmp.ne.s32.totalorder %s98, %s100
      %p104 = scmp.eq.s32.totalorder %s17, 0
      %p105 = por %p103, %p104
      %p106 = scmp.ne.s32.totalorder %s98, %s100
      %p107 = scmp.eq.s32.totalorder %s22, 1
      %p108 = por %p106, %p107
      %p109 = scmp.ne.s32.totalorder %s100, %s101
      %p110 = scmp.eq.s32.totalorder %s22, 0
      %p111 = por %p109, %p110
      %p112 = scmp.ne.s32.totalorder %s100, %s101
      %p113 = scmp.eq.s32.totalorder %s23, 1
      %p114 = por %p112, %p113
      %p116 = scmp.ne.s32.totalorder %s101, %s115
      %p117 = scmp.eq.s32.totalorder %s23, 0
      %p118 = por %p116, %p117
      %s120 = sadd.s32 %s119, 1
      %p123 = scmp.eq.s32.totalorder %s17, 1
      %p124 = scmp.ne.s32.totalorder %s119, %s121
      %p125 = scmp.eq.s32.totalorder %s17, 0
      %p126 = por %p124, %p125
      %p127 = scmp.ne.s32.totalorder %s119, %s121
      %p128 = scmp.eq.s32.totalorder %s22, 1
      %p129 = por %p127, %p128
      %p130 = scmp.ne.s32.totalorder %s121, %s122
      %p131 = scmp.eq.s32.totalorder %s22, 0
      %p132 = por %p130, %p131
      %p133 = scmp.ne.s32.totalorder %s121, %s122
      %p134 = scmp.eq.s32.totalorder %s23, 1
      %p135 = por %p133, %p134
      %p137 = scmp.ne.s32.totalorder %s122, %s136
      %p138 = scmp.eq.s32.totalorder %s23, 0
      %p139 = por %p137, %p138
      %s140 = ssub.s32 %s17, %s24
      %p141 = scmp.eq.s32.totalorder %s140, 0
      %s143 = sadd.s32 %s142, 1
      %s144 = scalar_select %p141, %s142, %s143
      %p147 = pneg %p141
      %p148 = scmp.eq.s32.totalorder %s17, 1
      %p149 = por %p147, %p148
      %p150 = scmp.ne.s32.totalorder %s142, %s145
      %p151 = scmp.eq.s32.totalorder %s17, 0
      %p152 = por %p150, %p151
      %p153 = scmp.ne.s32.totalorder %s142, %s145
      %p154 = scmp.eq.s32.totalorder %s22, 1
      %p155 = por %p153, %p154
      %p156 = scmp.ne.s32.totalorder %s145, %s146
      %p157 = scmp.eq.s32.totalorder %s22, 0
      %p158 = por %p156, %p157
      %p159 = scmp.ne.s32.totalorder %s145, %s146
      %p160 = scmp.eq.s32.totalorder %s23, 1
      %p161 = por %p159, %p160
      %p163 = scmp.ne.s32.totalorder %s146, %s162
      %p164 = scmp.eq.s32.totalorder %s23, 0
      %p165 = por %p163, %p164
      %s166 = ssub.s32 %s17, %s24
      %p167 = scmp.eq.s32.totalorder %s166, 0
      %s169 = sadd.s32 %s168, 1
      %s170 = scalar_select %p167, %s168, %s169
      %p173 = pneg %p167
      %p174 = scmp.eq.s32.totalorder %s17, 1
      %p175 = por %p173, %p174
      %p176 = scmp.ne.s32.totalorder %s168, %s171
      %p177 = scmp.eq.s32.totalorder %s17, 0
      %p178 = por %p176, %p177
      %p179 = scmp.ne.s32.totalorder %s168, %s171
      %p180 = scmp.eq.s32.totalorder %s22, 1
      %p181 = por %p179, %p180
      %p182 = scmp.ne.s32.totalorder %s171, %s172
      %p183 = scmp.eq.s32.totalorder %s22, 0
      %p184 = por %p182, %p183
      %p185 = scmp.ne.s32.totalorder %s171, %s172
      %p186 = scmp.eq.s32.totalorder %s23, 1
      %p187 = por %p185, %p186
      %p189 = scmp.ne.s32.totalorder %s172, %s188
      %p190 = scmp.eq.s32.totalorder %s23, 0
      %p191 = por %p189, %p190
      %p192 = scmp.le.s32.totalorder 1, %s17
      %p193 = scmp.lt.s32.totalorder %s17, 3
      %p194 = pnand %p192, %p193
      %p195 = pneg %p194
      // Predicated region
      $region9: #{tpu_custom_call.1} parent=5 // pred_check
        _
      $region10: #{tpu_custom_call.1} parent=5 // pred_check_branch
        %197 = sbr.rel (%p194) target = $region12
      $region11: #{tpu_custom_call.1} parent=5 // pred_region
        %s198 = ssub.s32 %s17, 1
        // Predicated region
        $region13: #{tpu_custom_call.1} parent=11 // pred_check
          %p199 = pneg %p64
        $region14: #{tpu_custom_call.1} parent=11 // pred_check_branch
          %201 = sbr.rel (%p199) target = $region16
        $region15: #{tpu_custom_call.1} parent=11 // pred_region
          %s203 = ssub.s32 2560, 2560
          %204 = vsyncadd [#allocation6], %s203
          %s205 = sshll.u32 [#allocation5], 4
          %s206 = int_to_ptr.vmem [resolvable:$true] %s205
          %211 = dma.hbm_to_vmem [thread:$0]  %s1, 2560, %s206, [#allocation6], 64, 64, 4
        $region16: #{tpu_custom_call.1} parent=11 // pred_fallthru
          _
        // Predicated region
        $region17: #{tpu_custom_call.1} parent=11 // pred_check
          %p212 = pneg %p111
        $region18: #{tpu_custom_call.1} parent=11 // pred_check_branch
          %214 = sbr.rel (%p212) target = $region20
        $region19: #{tpu_custom_call.1} parent=11 // pred_region
          _
        $region20: #{tpu_custom_call.1} parent=11 // pred_fallthru
          _
        // Predicated region
        $region21: #{tpu_custom_call.1} parent=11 // pred_check
          %p215 = pneg %p132
        $region22: #{tpu_custom_call.1} parent=11 // pred_check_branch
          %217 = sbr.rel (%p215) target = $region24
        $region23: #{tpu_custom_call.1} parent=11 // pred_region
          _
        $region24: #{tpu_custom_call.1} parent=11 // pred_fallthru
          _
      $region12: #{tpu_custom_call.1} parent=5 // pred_fallthru
        _
      %p218 = scmp.lt.s32.totalorder %s17, 2
      // Predicated region
      $region25: #{tpu_custom_call.1} parent=5 // pred_check
        %p219 = pneg %p218
      $region26: #{tpu_custom_call.1} parent=5 // pred_check_branch
        %221 = sbr.rel (%p219) target = $region28
      $region27: #{tpu_custom_call.1} parent=5 // pred_region
        // Predicated region
        $region29: #{tpu_custom_call.1} parent=27 // pred_check
          %p222 = pneg %p37
        $region30: #{tpu_custom_call.1} parent=27 // pred_check_branch
          %224 = sbr.rel (%p222) target = $region32
        $region31: #{tpu_custom_call.1} parent=27 // pred_region
          %s225 = sand.u32 %s27, 1
          %s226 = scalar_lea.sflag [#allocation4], %s225
          %s227 = sand.u32 %s27, 1
          %s228 = smul.addr %s227, 16
          %s229 = scalar_lea.vmem [#allocation3], %s228
          %s231 = ssub.s32 256, 256
          %232 = vsyncadd %s226, %s231
          %s233 = smul.addr %s17, 2
          %s234 = smul.addr %s233, 128
          %s235 = scalar_lea.hbm %s0, %s234
          %s236 = sshll.u32 %s229, 4
          %s237 = int_to_ptr.vmem [resolvable:$true] %s236
          %242 = dma.hbm_to_vmem [thread:$0]  %s235, 256, %s237, %s226, 128, 128, 8
        $region32: #{tpu_custom_call.1} parent=27 // pred_fallthru
          _
        // Predicated region
        $region33: #{tpu_custom_call.1} parent=27 // pred_check
          %p243 = pneg %p84
        $region34: #{tpu_custom_call.1} parent=27 // pred_check_branch
          %245 = sbr.rel (%p243) target = $region36
        $region35: #{tpu_custom_call.1} parent=27 // pred_region
          %p246 = scmp.lt.s32.totalorder %s17, 1
          %s247 = scalar_select %p246, %s17, 1
          %s248 = scalar_lea.vmem %s2, %s247
        $region36: #{tpu_custom_call.1} parent=27 // pred_fallthru
          _
      $region28: #{tpu_custom_call.1} parent=5 // pred_fallthru
        _
      %p249 = scmp.le.s32.totalorder 1, %s17
      %p250 = scmp.lt.s32.totalorder %s17, 3
      %p251 = pnand %p249, %p250
      %p252 = pneg %p251
      // Predicated region
      $region37: #{tpu_custom_call.1} parent=5 // pred_check
        _
      $region38: #{tpu_custom_call.1} parent=5 // pred_check_branch
        %254 = sbr.rel (%p251) target = $region40
      $region39: #{tpu_custom_call.1} parent=5 // pred_region
        %s255 = ssub.s32 %s17, 1
        %s256 = sand.u32 %s30, 1
        %s257 = scalar_lea.sflag [#allocation4], %s256
        %s258 = sand.u32 %s30, 1
        %s259 = smul.addr %s258, 16
        %s260 = scalar_lea.vmem [#allocation3], %s259
        // Predicated region
        $region41: #{tpu_custom_call.1} parent=39 // pred_check
          %p261 = pneg %p43
        $region42: #{tpu_custom_call.1} parent=39 // pred_check_branch
          %263 = sbr.rel (%p261) target = $region44
        $region43: #{tpu_custom_call.1} parent=39 // pred_region
          %264 = dma.done %s257, 256
        $region44: #{tpu_custom_call.1} parent=39 // pred_fallthru
          _
        // Predicated region
        $region45: #{tpu_custom_call.1} parent=39 // pred_check
          %p265 = pneg %p64
        $region46: #{tpu_custom_call.1} parent=39 // pred_check_branch
          %267 = sbr.rel (%p265) target = $region48
        $region47: #{tpu_custom_call.1} parent=39 // pred_region
          %268 = dma.done [#allocation6], 2560
        $region48: #{tpu_custom_call.1} parent=39 // pred_fallthru
          _
        %s269 = sand.u32 %s30, 1
        %s270 = scalar_lea.sflag [#allocation4], %s269
        %s271 = sand.u32 %s30, 1
        %s272 = smul.addr %s271, 16
        %s273 = scalar_lea.vmem [#allocation3], %s272
        %p274 = pneg %p43
        %p275 = pneg %p40
        %p276 = pneg %p64
        %p277 = pneg %p61
        %p278 = scmp.lt.s32.totalorder %s22, 1
        %s279 = scalar_select %p278, %s22, 1
        %s280 = scalar_lea.vmem %s2, %s279
        %p281 = pneg %p90
        %p282 = pneg %p87
        %p283 = pneg %p111
        %p284 = pneg %p108
        %p285 = pneg %p132
        %p286 = pneg %p129
        %p287 = pneg %p158
        %p288 = pneg %p155
        %p289 = scmp.lt.s32.totalorder %s22, 1
        %s290 = scalar_select %p289, %s22, 1
        %s291 = smul.addr %s290, 20
        %s292 = smul.addr %s291, 8
        %s293 = scalar_lea.vmem %s5, %s292
        %p294 = pneg %p184
        %p295 = pneg %p181
        %p296 = scmp.lt.s32.totalorder %s22, 1
        %s297 = scalar_select %p296, %s22, 1
        %s298 = smul.addr %s297, 10
        %s299 = scalar_lea.vmem %s6, %s298
        %p300 = scmp.lt.s32.totalorder %s22, 1
        %s301 = scalar_select %p300, %s22, 1
        %s302 = scalar_lea.vmem %s2, %s301
        %p303 = scmp.lt.s32.totalorder %s22, 1
        %s304 = scalar_select %p303, %s22, 1
        %s305 = smul.addr %s304, 20
        %s306 = smul.addr %s305, 8
        %s307 = scalar_lea.vmem %s5, %s306
        %p308 = scmp.lt.s32.totalorder %s22, 1
        %s309 = scalar_select %p308, %s22, 1
        %s310 = smul.addr %s309, 10
        %s311 = scalar_lea.vmem %s6, %s310
        %v312 = vld [vmem:[%s260] sm:$0xff]
        %v313 = vld [vmem:[%s260 + $0x8] sm:$0xff]
        %v314 = vld [vmem:[%s302] sm:$0x1]
        %v315 = vld [vmem:[%s3] sm:$0x1]
        %v316 = vld [vmem:[%s3 + $0x1] sm:$0x1]
        %v317 = vld [vmem:[%s3 + $0x2] sm:$0x1]
        %v318 = vld [vmem:[%s3 + $0x3] sm:$0x1]
        %v319 = vld [vmem:[%s3 + $0x4] sm:$0x1]
        %v320 = vld [vmem:[%s3 + $0x5] sm:$0x1]
        %v321 = vld [vmem:[%s3 + $0x6] sm:$0x1]
        %v322 = vld [vmem:[%s3 + $0x7] sm:$0x1]
        %v323 = vld [vmem:[%s3 + $0x8] sm:$0x1]
        %v324 = vld [vmem:[%s3 + $0x9] sm:$0x1]
        %v325 = vld [vmem:[%s4] sm:$0x1]
        %v326 = vld [vmem:[%s4 + $0x1] sm:$0x1]
        %v327 = vld [vmem:[%s4 + $0x2] sm:$0x1]
        %v328 = vld [vmem:[%s4 + $0x3] sm:$0x1]
        %v329 = vld [vmem:[%s4 + $0x4] sm:$0x1]
        %v330 = vld [vmem:[%s4 + $0x5] sm:$0x1]
        %v331 = vld [vmem:[%s4 + $0x6] sm:$0x1]
        %v332 = vld [vmem:[%s4 + $0x7] sm:$0x1]
        %v333 = vld [vmem:[%s4 + $0x8] sm:$0x1]
        %v334 = vld [vmem:[%s4 + $0x9] sm:$0x1]
        %v335 = vld [vmem:[#allocation5] sm:$0xf]
        %v336 = vld [vmem:[#allocation5 + $0x4] sm:$0xf]
        %v337 = vld [vmem:[#allocation5 + $0x8] sm:$0xf]
        %v338 = vld [vmem:[#allocation5 + $0xc] sm:$0xf]
        %v339 = vld [vmem:[#allocation5 + $0x10] sm:$0xf]
        %v340 = vld [vmem:[#allocation5 + $0x14] sm:$0xf]
        %v341 = vld [vmem:[#allocation5 + $0x18] sm:$0xf]
        %v342 = vld [vmem:[#allocation5 + $0x1c] sm:$0xf]
        %v343 = vld [vmem:[#allocation5 + $0x20] sm:$0xf]
        %v344 = vld [vmem:[#allocation5 + $0x24] sm:$0xf]
        %v345 = vlaneseq
        %v346 = vshrl.u32 %v345, 7
        %v347 = vsub.s32 0, %v346
        %v348 = vrot.slane %v312, %v347
        %v349 = vmul.f32 %v348, %v335
        %v350 = vmul.f32 %v348, %v336
        %v351 = vmul.f32 %v348, %v337
        %v352 = vmul.f32 %v348, %v338
        %v353 = vmul.f32 %v348, %v339
        %v354 = vmul.f32 %v348, %v340
        %v355 = vmul.f32 %v348, %v341
        %v356 = vmul.f32 %v348, %v342
        %v357 = vmul.f32 %v348, %v343
        %v358 = vmul.f32 %v348, %v344
        %s359 = scalar_lea.vmem [#allocation5], 40
        %v360 = vld [vmem:[%s359] sm:$0xf]
        %v361 = vld [vmem:[%s359 + $0x4] sm:$0xf]
        %v362 = vld [vmem:[%s359 + $0x8] sm:$0xf]
        %v363 = vld [vmem:[%s359 + $0xc] sm:$0xf]
        %v364 = vld [vmem:[%s359 + $0x10] sm:$0xf]
        %v365 = vld [vmem:[%s359 + $0x14] sm:$0xf]
        %v366 = vld [vmem:[%s359 + $0x18] sm:$0xf]
        %v367 = vld [vmem:[%s359 + $0x1c] sm:$0xf]
        %v368 = vld [vmem:[%s359 + $0x20] sm:$0xf]
        %v369 = vld [vmem:[%s359 + $0x24] sm:$0xf]
        %v370 = vlaneseq
        %v371 = vshrl.u32 %v370, 7
        %v372 = vsub.s32 1, %v371
        %v373 = vrot.slane %v312, %v372
        %v374 = vmul.f32 %v373, %v360
        %v375 = vmul.f32 %v373, %v361
        %v376 = vmul.f32 %v373, %v362
        %v377 = vmul.f32 %v373, %v363
        %v378 = vmul.f32 %v373, %v364
        %v379 = vmul.f32 %v373, %v365
        %v380 = vmul.f32 %v373, %v366
        %v381 = vmul.f32 %v373, %v367
        %v382 = vmul.f32 %v373, %v368
        %v383 = vmul.f32 %v373, %v369
        %v384 = vadd.f32 %v349, %v374
        %v385 = vadd.f32 %v350, %v375
        %v386 = vadd.f32 %v351, %v376
        %v387 = vadd.f32 %v352, %v377
        %v388 = vadd.f32 %v353, %v378
        %v389 = vadd.f32 %v354, %v379
        %v390 = vadd.f32 %v355, %v380
        %v391 = vadd.f32 %v356, %v381
        %v392 = vadd.f32 %v357, %v382
        %v393 = vadd.f32 %v358, %v383
        %s394 = scalar_lea.vmem [#allocation5], 80
        %v395 = vld [vmem:[%s394] sm:$0xf]
        %v396 = vld [vmem:[%s394 + $0x4] sm:$0xf]
        %v397 = vld [vmem:[%s394 + $0x8] sm:$0xf]
        %v398 = vld [vmem:[%s394 + $0xc] sm:$0xf]
        %v399 = vld [vmem:[%s394 + $0x10] sm:$0xf]
        %v400 = vld [vmem:[%s394 + $0x14] sm:$0xf]
        %v401 = vld [vmem:[%s394 + $0x18] sm:$0xf]
        %v402 = vld [vmem:[%s394 + $0x1c] sm:$0xf]
        %v403 = vld [vmem:[%s394 + $0x20] sm:$0xf]
        %v404 = vld [vmem:[%s394 + $0x24] sm:$0xf]
        %v405 = vlaneseq
        %v406 = vshrl.u32 %v405, 7
        %v407 = vsub.s32 2, %v406
        %v408 = vrot.slane %v312, %v407
        %v409 = vmul.f32 %v408, %v395
        %v410 = vmul.f32 %v408, %v396
        %v411 = vmul.f32 %v408, %v397
        %v412 = vmul.f32 %v408, %v398
        %v413 = vmul.f32 %v408, %v399
        %v414 = vmul.f32 %v408, %v400
        %v415 = vmul.f32 %v408, %v401
        %v416 = vmul.f32 %v408, %v402
        %v417 = vmul.f32 %v408, %v403
        %v418 = vmul.f32 %v408, %v404
        %v419 = vadd.f32 %v384, %v409
        %v420 = vadd.f32 %v385, %v410
        %v421 = vadd.f32 %v386, %v411
        %v422 = vadd.f32 %v387, %v412
        %v423 = vadd.f32 %v388, %v413
        %v424 = vadd.f32 %v389, %v414
        %v425 = vadd.f32 %v390, %v415
        %v426 = vadd.f32 %v391, %v416
        %v427 = vadd.f32 %v392, %v417
        %v428 = vadd.f32 %v393, %v418
        %s429 = scalar_lea.vmem [#allocation5], 120
        %v430 = vld [vmem:[%s429] sm:$0xf]
        %v431 = vld [vmem:[%s429 + $0x4] sm:$0xf]
        %v432 = vld [vmem:[%s429 + $0x8] sm:$0xf]
        %v433 = vld [vmem:[%s429 + $0xc] sm:$0xf]
        %v434 = vld [vmem:[%s429 + $0x10] sm:$0xf]
        %v435 = vld [vmem:[%s429 + $0x14] sm:$0xf]
        %v436 = vld [vmem:[%s429 + $0x18] sm:$0xf]
        %v437 = vld [vmem:[%s429 + $0x1c] sm:$0xf]
        %v438 = vld [vmem:[%s429 + $0x20] sm:$0xf]
        %v439 = vld [vmem:[%s429 + $0x24] sm:$0xf]
        %v440 = vlaneseq
        %v441 = vshrl.u32 %v440, 7
        %v442 = vsub.s32 3, %v441
        %v443 = vrot.slane %v312, %v442
        %v444 = vmul.f32 %v443, %v430
        %v445 = vmul.f32 %v443, %v431
        %v446 = vmul.f32 %v443, %v432
        %v447 = vmul.f32 %v443, %v433
        %v448 = vmul.f32 %v443, %v434
        %v449 = vmul.f32 %v443, %v435
        %v450 = vmul.f32 %v443, %v436
        %v451 = vmul.f32 %v443, %v437
        %v452 = vmul.f32 %v443, %v438
        %v453 = vmul.f32 %v443, %v439
        %v454 = vadd.f32 %v419, %v444
        %v455 = vadd.f32 %v420, %v445
        %v456 = vadd.f32 %v421, %v446
        %v457 = vadd.f32 %v422, %v447
        %v458 = vadd.f32 %v423, %v448
        %v459 = vadd.f32 %v424, %v449
        %v460 = vadd.f32 %v425, %v450
        %v461 = vadd.f32 %v426, %v451
        %v462 = vadd.f32 %v427, %v452
        %v463 = vadd.f32 %v428, %v453
        %464 = vst [vmem:[#allocation2] sm:$0xf] %v454
        %465 = vst [vmem:[#allocation2 + $0x10] sm:$0xf] %v455
        %466 = vst [vmem:[#allocation2 + $0x20] sm:$0xf] %v456
        %467 = vst [vmem:[#allocation2 + $0x30] sm:$0xf] %v457
        %468 = vst [vmem:[#allocation2 + $0x40] sm:$0xf] %v458
        %469 = vst [vmem:[#allocation2 + $0x50] sm:$0xf] %v459
        %470 = vst [vmem:[#allocation2 + $0x60] sm:$0xf] %v460
        %471 = vst [vmem:[#allocation2 + $0x70] sm:$0xf] %v461
        %472 = vst [vmem:[#allocation2 + $0x80] sm:$0xf] %v462
        %473 = vst [vmem:[#allocation2 + $0x90] sm:$0xf] %v463
        %v474 = vld [vmem:[#allocation5] sm:$0xf]
        %v475 = vld [vmem:[#allocation5 + $0x4] sm:$0xf]
        %v476 = vld [vmem:[#allocation5 + $0x8] sm:$0xf]
        %v477 = vld [vmem:[#allocation5 + $0xc] sm:$0xf]
        %v478 = vld [vmem:[#allocation5 + $0x10] sm:$0xf]
        %v479 = vld [vmem:[#allocation5 + $0x14] sm:$0xf]
        %v480 = vld [vmem:[#allocation5 + $0x18] sm:$0xf]
        %v481 = vld [vmem:[#allocation5 + $0x1c] sm:$0xf]
        %v482 = vld [vmem:[#allocation5 + $0x20] sm:$0xf]
        %v483 = vld [vmem:[#allocation5 + $0x24] sm:$0xf]
        %v484 = vlaneseq
        %v485 = vshrl.u32 %v484, 7
        %v486 = vsub.s32 4, %v485
        %v487 = vrot.slane %v312, %v486
        %v488 = vmul.f32 %v487, %v474
        %v489 = vmul.f32 %v487, %v475
        %v490 = vmul.f32 %v487, %v476
        %v491 = vmul.f32 %v487, %v477
        %v492 = vmul.f32 %v487, %v478
        %v493 = vmul.f32 %v487, %v479
        %v494 = vmul.f32 %v487, %v480
        %v495 = vmul.f32 %v487, %v481
        %v496 = vmul.f32 %v487, %v482
        %v497 = vmul.f32 %v487, %v483
        %v498 = vld [vmem:[%s359] sm:$0xf]
        %v499 = vld [vmem:[%s359 + $0x4] sm:$0xf]
        %v500 = vld [vmem:[%s359 + $0x8] sm:$0xf]
        %v501 = vld [vmem:[%s359 + $0xc] sm:$0xf]
        %v502 = vld [vmem:[%s359 + $0x10] sm:$0xf]
        %v503 = vld [vmem:[%s359 + $0x14] sm:$0xf]
        %v504 = vld [vmem:[%s359 + $0x18] sm:$0xf]
        %v505 = vld [vmem:[%s359 + $0x1c] sm:$0xf]
        %v506 = vld [vmem:[%s359 + $0x20] sm:$0xf]
        %v507 = vld [vmem:[%s359 + $0x24] sm:$0xf]
        %v508 = vlaneseq
        %v509 = vshrl.u32 %v508, 7
        %v510 = vsub.s32 5, %v509
        %v511 = vrot.slane %v312, %v510
        %v512 = vmul.f32 %v511, %v498
        %v513 = vmul.f32 %v511, %v499
        %v514 = vmul.f32 %v511, %v500
        %v515 = vmul.f32 %v511, %v501
        %v516 = vmul.f32 %v511, %v502
        %v517 = vmul.f32 %v511, %v503
        %v518 = vmul.f32 %v511, %v504
        %v519 = vmul.f32 %v511, %v505
        %v520 = vmul.f32 %v511, %v506
        %v521 = vmul.f32 %v511, %v507
        %v522 = vadd.f32 %v488, %v512
        %v523 = vadd.f32 %v489, %v513
        %v524 = vadd.f32 %v490, %v514
        %v525 = vadd.f32 %v491, %v515
        %v526 = vadd.f32 %v492, %v516
        %v527 = vadd.f32 %v493, %v517
        %v528 = vadd.f32 %v494, %v518
        %v529 = vadd.f32 %v495, %v519
        %v530 = vadd.f32 %v496, %v520
        %v531 = vadd.f32 %v497, %v521
        %v532 = vld [vmem:[%s394] sm:$0xf]
        %v533 = vld [vmem:[%s394 + $0x4] sm:$0xf]
        %v534 = vld [vmem:[%s394 + $0x8] sm:$0xf]
        %v535 = vld [vmem:[%s394 + $0xc] sm:$0xf]
        %v536 = vld [vmem:[%s394 + $0x10] sm:$0xf]
        %v537 = vld [vmem:[%s394 + $0x14] sm:$0xf]
        %v538 = vld [vmem:[%s394 + $0x18] sm:$0xf]
        %v539 = vld [vmem:[%s394 + $0x1c] sm:$0xf]
        %v540 = vld [vmem:[%s394 + $0x20] sm:$0xf]
        %v541 = vld [vmem:[%s394 + $0x24] sm:$0xf]
        %v542 = vlaneseq
        %v543 = vshrl.u32 %v542, 7
        %v544 = vsub.s32 6, %v543
        %v545 = vrot.slane %v312, %v544
        %v546 = vmul.f32 %v545, %v532
        %v547 = vmul.f32 %v545, %v533
        %v548 = vmul.f32 %v545, %v534
        %v549 = vmul.f32 %v545, %v535
        %v550 = vmul.f32 %v545, %v536
        %v551 = vmul.f32 %v545, %v537
        %v552 = vmul.f32 %v545, %v538
        %v553 = vmul.f32 %v545, %v539
        %v554 = vmul.f32 %v545, %v540
        %v555 = vmul.f32 %v545, %v541
        %v556 = vadd.f32 %v522, %v546
        %v557 = vadd.f32 %v523, %v547
        %v558 = vadd.f32 %v524, %v548
        %v559 = vadd.f32 %v525, %v549
        %v560 = vadd.f32 %v526, %v550
        %v561 = vadd.f32 %v527, %v551
        %v562 = vadd.f32 %v528, %v552
        %v563 = vadd.f32 %v529, %v553
        %v564 = vadd.f32 %v530, %v554
        %v565 = vadd.f32 %v531, %v555
        %v566 = vld [vmem:[%s429] sm:$0xf]
        %v567 = vld [vmem:[%s429 + $0x4] sm:$0xf]
        %v568 = vld [vmem:[%s429 + $0x8] sm:$0xf]
        %v569 = vld [vmem:[%s429 + $0xc] sm:$0xf]
        %v570 = vld [vmem:[%s429 + $0x10] sm:$0xf]
        %v571 = vld [vmem:[%s429 + $0x14] sm:$0xf]
        %v572 = vld [vmem:[%s429 + $0x18] sm:$0xf]
        %v573 = vld [vmem:[%s429 + $0x1c] sm:$0xf]
        %v574 = vld [vmem:[%s429 + $0x20] sm:$0xf]
        %v575 = vld [vmem:[%s429 + $0x24] sm:$0xf]
        %v576 = vlaneseq
        %v577 = vshrl.u32 %v576, 7
        %v578 = vsub.s32 7, %v577
        %v579 = vrot.slane %v312, %v578
        %v580 = vmul.f32 %v579, %v566
        %v581 = vmul.f32 %v579, %v567
        %v582 = vmul.f32 %v579, %v568
        %v583 = vmul.f32 %v579, %v569
        %v584 = vmul.f32 %v579, %v570
        %v585 = vmul.f32 %v579, %v571
        %v586 = vmul.f32 %v579, %v572
        %v587 = vmul.f32 %v579, %v573
        %v588 = vmul.f32 %v579, %v574
        %v589 = vmul.f32 %v579, %v575
        %v590 = vadd.f32 %v556, %v580
        %v591 = vadd.f32 %v557, %v581
        %v592 = vadd.f32 %v558, %v582
        %v593 = vadd.f32 %v559, %v583
        %v594 = vadd.f32 %v560, %v584
        %v595 = vadd.f32 %v561, %v585
        %v596 = vadd.f32 %v562, %v586
        %v597 = vadd.f32 %v563, %v587
        %v598 = vadd.f32 %v564, %v588
        %v599 = vadd.f32 %v565, %v589
        %600 = vst [vmem:[#allocation2 + $0x4] sm:$0xf] %v590
        %601 = vst [vmem:[#allocation2 + $0x14] sm:$0xf] %v591
        %602 = vst [vmem:[#allocation2 + $0x24] sm:$0xf] %v592
        %603 = vst [vmem:[#allocation2 + $0x34] sm:$0xf] %v593
        %604 = vst [vmem:[#allocation2 + $0x44] sm:$0xf] %v594
        %605 = vst [vmem:[#allocation2 + $0x54] sm:$0xf] %v595
        %606 = vst [vmem:[#allocation2 + $0x64] sm:$0xf] %v596
        %607 = vst [vmem:[#allocation2 + $0x74] sm:$0xf] %v597
        %608 = vst [vmem:[#allocation2 + $0x84] sm:$0xf] %v598
        %609 = vst [vmem:[#allocation2 + $0x94] sm:$0xf] %v599
        %v610 = vld [vmem:[#allocation5] sm:$0xf]
        %v611 = vld [vmem:[#allocation5 + $0x4] sm:$0xf]
        %v612 = vld [vmem:[#allocation5 + $0x8] sm:$0xf]
        %v613 = vld [vmem:[#allocation5 + $0xc] sm:$0xf]
        %v614 = vld [vmem:[#allocation5 + $0x10] sm:$0xf]
        %v615 = vld [vmem:[#allocation5 + $0x14] sm:$0xf]
        %v616 = vld [vmem:[#allocation5 + $0x18] sm:$0xf]
        %v617 = vld [vmem:[#allocation5 + $0x1c] sm:$0xf]
        %v618 = vld [vmem:[#allocation5 + $0x20] sm:$0xf]
        %v619 = vld [vmem:[#allocation5 + $0x24] sm:$0xf]
        %v620 = vlaneseq
        %v621 = vshrl.u32 %v620, 7
        %v622 = vsub.s32 0, %v621
        %v623 = vrot.slane %v313, %v622
        %v624 = vmul.f32 %v623, %v610
        %v625 = vmul.f32 %v623, %v611
        %v626 = vmul.f32 %v623, %v612
        %v627 = vmul.f32 %v623, %v613
        %v628 = vmul.f32 %v623, %v614
        %v629 = vmul.f32 %v623, %v615
        %v630 = vmul.f32 %v623, %v616
        %v631 = vmul.f32 %v623, %v617
        %v632 = vmul.f32 %v623, %v618
        %v633 = vmul.f32 %v623, %v619
        %v634 = vld [vmem:[%s359] sm:$0xf]
        %v635 = vld [vmem:[%s359 + $0x4] sm:$0xf]
        %v636 = vld [vmem:[%s359 + $0x8] sm:$0xf]
        %v637 = vld [vmem:[%s359 + $0xc] sm:$0xf]
        %v638 = vld [vmem:[%s359 + $0x10] sm:$0xf]
        %v639 = vld [vmem:[%s359 + $0x14] sm:$0xf]
        %v640 = vld [vmem:[%s359 + $0x18] sm:$0xf]
        %v641 = vld [vmem:[%s359 + $0x1c] sm:$0xf]
        %v642 = vld [vmem:[%s359 + $0x20] sm:$0xf]
        %v643 = vld [vmem:[%s359 + $0x24] sm:$0xf]
        %v644 = vlaneseq
        %v645 = vshrl.u32 %v644, 7
        %v646 = vsub.s32 1, %v645
        %v647 = vrot.slane %v313, %v646
        %v648 = vmul.f32 %v647, %v634
        %v649 = vmul.f32 %v647, %v635
        %v650 = vmul.f32 %v647, %v636
        %v651 = vmul.f32 %v647, %v637
        %v652 = vmul.f32 %v647, %v638
        %v653 = vmul.f32 %v647, %v639
        %v654 = vmul.f32 %v647, %v640
        %v655 = vmul.f32 %v647, %v641
        %v656 = vmul.f32 %v647, %v642
        %v657 = vmul.f32 %v647, %v643
        %v658 = vadd.f32 %v624, %v648
        %v659 = vadd.f32 %v625, %v649
        %v660 = vadd.f32 %v626, %v650
        %v661 = vadd.f32 %v627, %v651
        %v662 = vadd.f32 %v628, %v652
        %v663 = vadd.f32 %v629, %v653
        %v664 = vadd.f32 %v630, %v654
        %v665 = vadd.f32 %v631, %v655
        %v666 = vadd.f32 %v632, %v656
        %v667 = vadd.f32 %v633, %v657
        %v668 = vld [vmem:[%s394] sm:$0xf]
        %v669 = vld [vmem:[%s394 + $0x4] sm:$0xf]
        %v670 = vld [vmem:[%s394 + $0x8] sm:$0xf]
        %v671 = vld [vmem:[%s394 + $0xc] sm:$0xf]
        %v672 = vld [vmem:[%s394 + $0x10] sm:$0xf]
        %v673 = vld [vmem:[%s394 + $0x14] sm:$0xf]
        %v674 = vld [vmem:[%s394 + $0x18] sm:$0xf]
        %v675 = vld [vmem:[%s394 + $0x1c] sm:$0xf]
        %v676 = vld [vmem:[%s394 + $0x20] sm:$0xf]
        %v677 = vld [vmem:[%s394 + $0x24] sm:$0xf]
        %v678 = vlaneseq
        %v679 = vshrl.u32 %v678, 7
        %v680 = vsub.s32 2, %v679
        %v681 = vrot.slane %v313, %v680
        %v682 = vmul.f32 %v681, %v668
        %v683 = vmul.f32 %v681, %v669
        %v684 = vmul.f32 %v681, %v670
        %v685 = vmul.f32 %v681, %v671
        %v686 = vmul.f32 %v681, %v672
        %v687 = vmul.f32 %v681, %v673
        %v688 = vmul.f32 %v681, %v674
        %v689 = vmul.f32 %v681, %v675
        %v690 = vmul.f32 %v681, %v676
        %v691 = vmul.f32 %v681, %v677
        %v692 = vadd.f32 %v658, %v682
        %v693 = vadd.f32 %v659, %v683
        %v694 = vadd.f32 %v660, %v684
        %v695 = vadd.f32 %v661, %v685
        %v696 = vadd.f32 %v662, %v686
        %v697 = vadd.f32 %v663, %v687
        %v698 = vadd.f32 %v664, %v688
        %v699 = vadd.f32 %v665, %v689
        %v700 = vadd.f32 %v666, %v690
        %v701 = vadd.f32 %v667, %v691
        %v702 = vld [vmem:[%s429] sm:$0xf]
        %v703 = vld [vmem:[%s429 + $0x4] sm:$0xf]
        %v704 = vld [vmem:[%s429 + $0x8] sm:$0xf]
        %v705 = vld [vmem:[%s429 + $0xc] sm:$0xf]
        %v706 = vld [vmem:[%s429 + $0x10] sm:$0xf]
        %v707 = vld [vmem:[%s429 + $0x14] sm:$0xf]
        %v708 = vld [vmem:[%s429 + $0x18] sm:$0xf]
        %v709 = vld [vmem:[%s429 + $0x1c] sm:$0xf]
        %v710 = vld [vmem:[%s429 + $0x20] sm:$0xf]
        %v711 = vld [vmem:[%s429 + $0x24] sm:$0xf]
        %v712 = vlaneseq
        %v713 = vshrl.u32 %v712, 7
        %v714 = vsub.s32 3, %v713
        %v715 = vrot.slane %v313, %v714
        %v716 = vmul.f32 %v715, %v702
        %v717 = vmul.f32 %v715, %v703
        %v718 = vmul.f32 %v715, %v704
        %v719 = vmul.f32 %v715, %v705
        %v720 = vmul.f32 %v715, %v706
        %v721 = vmul.f32 %v715, %v707
        %v722 = vmul.f32 %v715, %v708
        %v723 = vmul.f32 %v715, %v709
        %v724 = vmul.f32 %v715, %v710
        %v725 = vmul.f32 %v715, %v711
        %v726 = vadd.f32 %v692, %v716
        %v727 = vadd.f32 %v693, %v717
        %v728 = vadd.f32 %v694, %v718
        %v729 = vadd.f32 %v695, %v719
        %v730 = vadd.f32 %v696, %v720
        %v731 = vadd.f32 %v697, %v721
        %v732 = vadd.f32 %v698, %v722
        %v733 = vadd.f32 %v699, %v723
        %v734 = vadd.f32 %v700, %v724
        %v735 = vadd.f32 %v701, %v725
        %736 = vst [vmem:[#allocation2 + $0x8] sm:$0xf] %v726
        %737 = vst [vmem:[#allocation2 + $0x18] sm:$0xf] %v727
        %738 = vst [vmem:[#allocation2 + $0x28] sm:$0xf] %v728
        %739 = vst [vmem:[#allocation2 + $0x38] sm:$0xf] %v729
        %740 = vst [vmem:[#allocation2 + $0x48] sm:$0xf] %v730
        %741 = vst [vmem:[#allocation2 + $0x58] sm:$0xf] %v731
        %742 = vst [vmem:[#allocation2 + $0x68] sm:$0xf] %v732
        %743 = vst [vmem:[#allocation2 + $0x78] sm:$0xf] %v733
        %744 = vst [vmem:[#allocation2 + $0x88] sm:$0xf] %v734
        %745 = vst [vmem:[#allocation2 + $0x98] sm:$0xf] %v735
        %v746 = vld [vmem:[#allocation5] sm:$0xf]
        %v747 = vld [vmem:[#allocation5 + $0x4] sm:$0xf]
        %v748 = vld [vmem:[#allocation5 + $0x8] sm:$0xf]
        %v749 = vld [vmem:[#allocation5 + $0xc] sm:$0xf]
        %v750 = vld [vmem:[#allocation5 + $0x10] sm:$0xf]
        %v751 = vld [vmem:[#allocation5 + $0x14] sm:$0xf]
        %v752 = vld [vmem:[#allocation5 + $0x18] sm:$0xf]
        %v753 = vld [vmem:[#allocation5 + $0x1c] sm:$0xf]
        %v754 = vld [vmem:[#allocation5 + $0x20] sm:$0xf]
        %v755 = vld [vmem:[#allocation5 + $0x24] sm:$0xf]
        %v756 = vlaneseq
        %v757 = vshrl.u32 %v756, 7
        %v758 = vsub.s32 4, %v757
        %v759 = vrot.slane %v313, %v758
        %v760 = vmul.f32 %v759, %v746
        %v761 = vmul.f32 %v759, %v747
        %v762 = vmul.f32 %v759, %v748
        %v763 = vmul.f32 %v759, %v749
        %v764 = vmul.f32 %v759, %v750
        %v765 = vmul.f32 %v759, %v751
        %v766 = vmul.f32 %v759, %v752
        %v767 = vmul.f32 %v759, %v753
        %v768 = vmul.f32 %v759, %v754
        %v769 = vmul.f32 %v759, %v755
        %v770 = vld [vmem:[%s359] sm:$0xf]
        %v771 = vld [vmem:[%s359 + $0x4] sm:$0xf]
        %v772 = vld [vmem:[%s359 + $0x8] sm:$0xf]
        %v773 = vld [vmem:[%s359 + $0xc] sm:$0xf]
        %v774 = vld [vmem:[%s359 + $0x10] sm:$0xf]
        %v775 = vld [vmem:[%s359 + $0x14] sm:$0xf]
        %v776 = vld [vmem:[%s359 + $0x18] sm:$0xf]
        %v777 = vld [vmem:[%s359 + $0x1c] sm:$0xf]
        %v778 = vld [vmem:[%s359 + $0x20] sm:$0xf]
        %v779 = vld [vmem:[%s359 + $0x24] sm:$0xf]
        %v780 = vlaneseq
        %v781 = vshrl.u32 %v780, 7
        %v782 = vsub.s32 5, %v781
        %v783 = vrot.slane %v313, %v782
        %v784 = vmul.f32 %v783, %v770
        %v785 = vmul.f32 %v783, %v771
        %v786 = vmul.f32 %v783, %v772
        %v787 = vmul.f32 %v783, %v773
        %v788 = vmul.f32 %v783, %v774
        %v789 = vmul.f32 %v783, %v775
        %v790 = vmul.f32 %v783, %v776
        %v791 = vmul.f32 %v783, %v777
        %v792 = vmul.f32 %v783, %v778
        %v793 = vmul.f32 %v783, %v779
        %v794 = vadd.f32 %v760, %v784
        %v795 = vadd.f32 %v761, %v785
        %v796 = vadd.f32 %v762, %v786
        %v797 = vadd.f32 %v763, %v787
        %v798 = vadd.f32 %v764, %v788
        %v799 = vadd.f32 %v765, %v789
        %v800 = vadd.f32 %v766, %v790
        %v801 = vadd.f32 %v767, %v791
        %v802 = vadd.f32 %v768, %v792
        %v803 = vadd.f32 %v769, %v793
        %v804 = vld [vmem:[%s394] sm:$0xf]
        %v805 = vld [vmem:[%s394 + $0x4] sm:$0xf]
        %v806 = vld [vmem:[%s394 + $0x8] sm:$0xf]
        %v807 = vld [vmem:[%s394 + $0xc] sm:$0xf]
        %v808 = vld [vmem:[%s394 + $0x10] sm:$0xf]
        %v809 = vld [vmem:[%s394 + $0x14] sm:$0xf]
        %v810 = vld [vmem:[%s394 + $0x18] sm:$0xf]
        %v811 = vld [vmem:[%s394 + $0x1c] sm:$0xf]
        %v812 = vld [vmem:[%s394 + $0x20] sm:$0xf]
        %v813 = vld [vmem:[%s394 + $0x24] sm:$0xf]
        %v814 = vlaneseq
        %v815 = vshrl.u32 %v814, 7
        %v816 = vsub.s32 6, %v815
        %v817 = vrot.slane %v313, %v816
        %v818 = vmul.f32 %v817, %v804
        %v819 = vmul.f32 %v817, %v805
        %v820 = vmul.f32 %v817, %v806
        %v821 = vmul.f32 %v817, %v807
        %v822 = vmul.f32 %v817, %v808
        %v823 = vmul.f32 %v817, %v809
        %v824 = vmul.f32 %v817, %v810
        %v825 = vmul.f32 %v817, %v811
        %v826 = vmul.f32 %v817, %v812
        %v827 = vmul.f32 %v817, %v813
        %v828 = vadd.f32 %v794, %v818
        %v829 = vadd.f32 %v795, %v819
        %v830 = vadd.f32 %v796, %v820
        %v831 = vadd.f32 %v797, %v821
        %v832 = vadd.f32 %v798, %v822
        %v833 = vadd.f32 %v799, %v823
        %v834 = vadd.f32 %v800, %v824
        %v835 = vadd.f32 %v801, %v825
        %v836 = vadd.f32 %v802, %v826
        %v837 = vadd.f32 %v803, %v827
        %v838 = vld [vmem:[%s429] sm:$0xf]
        %v839 = vld [vmem:[%s429 + $0x4] sm:$0xf]
        %v840 = vld [vmem:[%s429 + $0x8] sm:$0xf]
        %v841 = vld [vmem:[%s429 + $0xc] sm:$0xf]
        %v842 = vld [vmem:[%s429 + $0x10] sm:$0xf]
        %v843 = vld [vmem:[%s429 + $0x14] sm:$0xf]
        %v844 = vld [vmem:[%s429 + $0x18] sm:$0xf]
        %v845 = vld [vmem:[%s429 + $0x1c] sm:$0xf]
        %v846 = vld [vmem:[%s429 + $0x20] sm:$0xf]
        %v847 = vld [vmem:[%s429 + $0x24] sm:$0xf]
        %v848 = vlaneseq
        %v849 = vshrl.u32 %v848, 7
        %v850 = vsub.s32 7, %v849
        %v851 = vrot.slane %v313, %v850
        %v852 = vmul.f32 %v851, %v838
        %v853 = vmul.f32 %v851, %v839
        %v854 = vmul.f32 %v851, %v840
        %v855 = vmul.f32 %v851, %v841
        %v856 = vmul.f32 %v851, %v842
        %v857 = vmul.f32 %v851, %v843
        %v858 = vmul.f32 %v851, %v844
        %v859 = vmul.f32 %v851, %v845
        %v860 = vmul.f32 %v851, %v846
        %v861 = vmul.f32 %v851, %v847
        %v862 = vadd.f32 %v828, %v852
        %v863 = vadd.f32 %v829, %v853
        %v864 = vadd.f32 %v830, %v854
        %v865 = vadd.f32 %v831, %v855
        %v866 = vadd.f32 %v832, %v856
        %v867 = vadd.f32 %v833, %v857
        %v868 = vadd.f32 %v834, %v858
        %v869 = vadd.f32 %v835, %v859
        %v870 = vadd.f32 %v836, %v860
        %v871 = vadd.f32 %v837, %v861
        %872 = vst [vmem:[#allocation2 + $0xc] sm:$0xf] %v862
        %873 = vst [vmem:[#allocation2 + $0x1c] sm:$0xf] %v863
        %874 = vst [vmem:[#allocation2 + $0x2c] sm:$0xf] %v864
        %875 = vst [vmem:[#allocation2 + $0x3c] sm:$0xf] %v865
        %876 = vst [vmem:[#allocation2 + $0x4c] sm:$0xf] %v866
        %877 = vst [vmem:[#allocation2 + $0x5c] sm:$0xf] %v867
        %878 = vst [vmem:[#allocation2 + $0x6c] sm:$0xf] %v868
        %879 = vst [vmem:[#allocation2 + $0x7c] sm:$0xf] %v869
        %880 = vst [vmem:[#allocation2 + $0x8c] sm:$0xf] %v870
        %881 = vst [vmem:[#allocation2 + $0x9c] sm:$0xf] %v871
        %v882 = vld [vmem:[#allocation2] sm:$0xff]
        %v883 = vld [vmem:[#allocation2 + $0x8] sm:$0xff]
        %v884 = vld [vmem:[#allocation2 + $0x10] sm:$0xff]
        %v885 = vld [vmem:[#allocation2 + $0x18] sm:$0xff]
        %v886 = vld [vmem:[#allocation2 + $0x20] sm:$0xff]
        %v887 = vld [vmem:[#allocation2 + $0x28] sm:$0xff]
        %v888 = vld [vmem:[#allocation2 + $0x30] sm:$0xff]
        %v889 = vld [vmem:[#allocation2 + $0x38] sm:$0xff]
        %v890 = vld [vmem:[#allocation2 + $0x40] sm:$0xff]
        %v891 = vld [vmem:[#allocation2 + $0x48] sm:$0xff]
        %v892 = vld [vmem:[#allocation2 + $0x50] sm:$0xff]
        %v893 = vld [vmem:[#allocation2 + $0x58] sm:$0xff]
        %v894 = vld [vmem:[#allocation2 + $0x60] sm:$0xff]
        %v895 = vld [vmem:[#allocation2 + $0x68] sm:$0xff]
        %v896 = vld [vmem:[#allocation2 + $0x70] sm:$0xff]
        %v897 = vld [vmem:[#allocation2 + $0x78] sm:$0xff]
        %v898 = vld [vmem:[#allocation2 + $0x80] sm:$0xff]
        %v899 = vld [vmem:[#allocation2 + $0x88] sm:$0xff]
        %v900 = vld [vmem:[#allocation2 + $0x90] sm:$0xff]
        %v901 = vld [vmem:[#allocation2 + $0x98] sm:$0xff]
        %v902 = vmul.f32 %v314, 0.1
        %vm903 = vcmask 1040384
        %v904 = vsel %vm903, %v902, 0.0
        %905 = vadd.xlane.f32.xlu0 %v904
        %v906 = vpop.xlane.xlu0 %905
        %v907 = vadd.f32 %v906, 1e-06
        %v908 = vrcp.pop %v907
        %v910 = vlaneseq
        %v911 = vshrl.u32 %v910, 7
        %v912 = vsub.s32 0, %v911
        %v913 = vrot.slane %v902, %v912
        %v915 = vmul.f32 %v913, %v882
        %v916 = vmul.f32 %v913, %v883
        %v917 = vmul.f32 %v913, %v884
        %v918 = vmul.f32 %v913, %v885
        %v919 = vmul.f32 %v913, %v886
        %v920 = vmul.f32 %v913, %v887
        %v921 = vmul.f32 %v913, %v888
        %v922 = vmul.f32 %v913, %v889
        %v923 = vmul.f32 %v913, %v890
        %v924 = vmul.f32 %v913, %v891
        %v925 = vmul.f32 %v913, %v892
        %v926 = vmul.f32 %v913, %v893
        %v927 = vmul.f32 %v913, %v894
        %v928 = vmul.f32 %v913, %v895
        %v929 = vmul.f32 %v913, %v896
        %v930 = vmul.f32 %v913, %v897
        %v931 = vmul.f32 %v913, %v898
        %v932 = vmul.f32 %v913, %v899
        %v933 = vmul.f32 %v913, %v900
        %v934 = vmul.f32 %v913, %v901
        %935 = vadd.xlane.f32.xlu0 %v915
        %v936 = vpop.xlane.xlu0 %935
        %937 = vadd.xlane.f32.xlu0 %v916
        %v938 = vpop.xlane.xlu0 %937
        %939 = vadd.xlane.f32.xlu0 %v917
        %v940 = vpop.xlane.xlu0 %939
        %941 = vadd.xlane.f32.xlu0 %v918
        %v942 = vpop.xlane.xlu0 %941
        %943 = vadd.xlane.f32.xlu0 %v919
        %v944 = vpop.xlane.xlu0 %943
        %945 = vadd.xlane.f32.xlu0 %v920
        %v946 = vpop.xlane.xlu0 %945
        %947 = vadd.xlane.f32.xlu0 %v921
        %v948 = vpop.xlane.xlu0 %947
        %949 = vadd.xlane.f32.xlu0 %v922
        %v950 = vpop.xlane.xlu0 %949
        %951 = vadd.xlane.f32.xlu0 %v923
        %v952 = vpop.xlane.xlu0 %951
        %953 = vadd.xlane.f32.xlu0 %v924
        %v954 = vpop.xlane.xlu0 %953
        %955 = vadd.xlane.f32.xlu0 %v925
        %v956 = vpop.xlane.xlu0 %955
        %957 = vadd.xlane.f32.xlu0 %v926
        %v958 = vpop.xlane.xlu0 %957
        %959 = vadd.xlane.f32.xlu0 %v927
        %v960 = vpop.xlane.xlu0 %959
        %961 = vadd.xlane.f32.xlu0 %v928
        %v962 = vpop.xlane.xlu0 %961
        %963 = vadd.xlane.f32.xlu0 %v929
        %v964 = vpop.xlane.xlu0 %963
        %965 = vadd.xlane.f32.xlu0 %v930
        %v966 = vpop.xlane.xlu0 %965
        %967 = vadd.xlane.f32.xlu0 %v931
        %v968 = vpop.xlane.xlu0 %967
        %969 = vadd.xlane.f32.xlu0 %v932
        %v970 = vpop.xlane.xlu0 %969
        %971 = vadd.xlane.f32.xlu0 %v933
        %v972 = vpop.xlane.xlu0 %971
        %973 = vadd.xlane.f32.xlu0 %v934
        %v974 = vpop.xlane.xlu0 %973
        %v975 = vlaneseq
        %v976 = vshrl.u32 %v975, 7
        %v977 = vsub.s32 0, %v976
        %v978 = vrot.slane %v908, %v977
        %v979 = vmul.f32 %v936, %v978
        %v980 = vmul.f32 %v938, %v978
        %v981 = vmul.f32 %v940, %v978
        %v982 = vmul.f32 %v942, %v978
        %v983 = vmul.f32 %v944, %v978
        %v984 = vmul.f32 %v946, %v978
        %v985 = vmul.f32 %v948, %v978
        %v986 = vmul.f32 %v950, %v978
        %v987 = vmul.f32 %v952, %v978
        %v988 = vmul.f32 %v954, %v978
        %v989 = vmul.f32 %v956, %v978
        %v990 = vmul.f32 %v958, %v978
        %v991 = vmul.f32 %v960, %v978
        %v992 = vmul.f32 %v962, %v978
        %v993 = vmul.f32 %v964, %v978
        %v994 = vmul.f32 %v966, %v978
        %v995 = vmul.f32 %v968, %v978
        %v996 = vmul.f32 %v970, %v978
        %v997 = vmul.f32 %v972, %v978
        %v998 = vmul.f32 %v974, %v978
        %v999 = vsub.f32 %v882, %v979
        %v1000 = vsub.f32 %v883, %v980
        %v1001 = vsub.f32 %v884, %v981
        %v1002 = vsub.f32 %v885, %v982
        %v1003 = vsub.f32 %v886, %v983
        %v1004 = vsub.f32 %v887, %v984
        %v1005 = vsub.f32 %v888, %v985
        %v1006 = vsub.f32 %v889, %v986
        %v1007 = vsub.f32 %v890, %v987
        %v1008 = vsub.f32 %v891, %v988
        %v1009 = vsub.f32 %v892, %v989
        %v1010 = vsub.f32 %v893, %v990
        %v1011 = vsub.f32 %v894, %v991
        %v1012 = vsub.f32 %v895, %v992
        %v1013 = vsub.f32 %v896, %v993
        %v1014 = vsub.f32 %v897, %v994
        %v1015 = vsub.f32 %v898, %v995
        %v1016 = vsub.f32 %v899, %v996
        %v1017 = vsub.f32 %v900, %v997
        %v1018 = vsub.f32 %v901, %v998
        %v1019 = vmul.f32 %v999, %v999
        %v1020 = vmul.f32 %v1000, %v1000
        %v1021 = vmul.f32 %v1001, %v1001
        %v1022 = vmul.f32 %v1002, %v1002
        %v1023 = vmul.f32 %v1003, %v1003
        %v1024 = vmul.f32 %v1004, %v1004
        %v1025 = vmul.f32 %v1005, %v1005
        %v1026 = vmul.f32 %v1006, %v1006
        %v1027 = vmul.f32 %v1007, %v1007
        %v1028 = vmul.f32 %v1008, %v1008
        %v1029 = vmul.f32 %v1009, %v1009
        %v1030 = vmul.f32 %v1010, %v1010
        %v1031 = vmul.f32 %v1011, %v1011
        %v1032 = vmul.f32 %v1012, %v1012
        %v1033 = vmul.f32 %v1013, %v1013
        %v1034 = vmul.f32 %v1014, %v1014
        %v1035 = vmul.f32 %v1015, %v1015
        %v1036 = vmul.f32 %v1016, %v1016
        %v1037 = vmul.f32 %v1017, %v1017
        %v1038 = vmul.f32 %v1018, %v1018
        %v1039 = vmul.f32 %v913, %v1019
        %v1040 = vmul.f32 %v913, %v1020
        %v1041 = vmul.f32 %v913, %v1021
        %v1042 = vmul.f32 %v913, %v1022
        %v1043 = vmul.f32 %v913, %v1023
        %v1044 = vmul.f32 %v913, %v1024
        %v1045 = vmul.f32 %v913, %v1025
        %v1046 = vmul.f32 %v913, %v1026
        %v1047 = vmul.f32 %v913, %v1027
        %v1048 = vmul.f32 %v913, %v1028
        %v1049 = vmul.f32 %v913, %v1029
        %v1050 = vmul.f32 %v913, %v1030
        %v1051 = vmul.f32 %v913, %v1031
        %v1052 = vmul.f32 %v913, %v1032
        %v1053 = vmul.f32 %v913, %v1033
        %v1054 = vmul.f32 %v913, %v1034
        %v1055 = vmul.f32 %v913, %v1035
        %v1056 = vmul.f32 %v913, %v1036
        %v1057 = vmul.f32 %v913, %v1037
        %v1058 = vmul.f32 %v913, %v1038
        %1059 = vadd.xlane.f32.xlu0 %v1039
        %v1060 = vpop.xlane.xlu0 %1059
        %1061 = vadd.xlane.f32.xlu0 %v1040
        %v1062 = vpop.xlane.xlu0 %1061
        %1063 = vadd.xlane.f32.xlu0 %v1041
        %v1064 = vpop.xlane.xlu0 %1063
        %1065 = vadd.xlane.f32.xlu0 %v1042
        %v1066 = vpop.xlane.xlu0 %1065
        %1067 = vadd.xlane.f32.xlu0 %v1043
        %v1068 = vpop.xlane.xlu0 %1067
        %1069 = vadd.xlane.f32.xlu0 %v1044
        %v1070 = vpop.xlane.xlu0 %1069
        %1071 = vadd.xlane.f32.xlu0 %v1045
        %v1072 = vpop.xlane.xlu0 %1071
        %1073 = vadd.xlane.f32.xlu0 %v1046
        %v1074 = vpop.xlane.xlu0 %1073
        %1075 = vadd.xlane.f32.xlu0 %v1047
        %v1076 = vpop.xlane.xlu0 %1075
        %1077 = vadd.xlane.f32.xlu0 %v1048
        %v1078 = vpop.xlane.xlu0 %1077
        %1079 = vadd.xlane.f32.xlu0 %v1049
        %v1080 = vpop.xlane.xlu0 %1079
        %1081 = vadd.xlane.f32.xlu0 %v1050
        %v1082 = vpop.xlane.xlu0 %1081
        %1083 = vadd.xlane.f32.xlu0 %v1051
        %v1084 = vpop.xlane.xlu0 %1083
        %1085 = vadd.xlane.f32.xlu0 %v1052
        %v1086 = vpop.xlane.xlu0 %1085
        %1087 = vadd.xlane.f32.xlu0 %v1053
        %v1088 = vpop.xlane.xlu0 %1087
        %1089 = vadd.xlane.f32.xlu0 %v1054
        %v1090 = vpop.xlane.xlu0 %1089
        %1091 = vadd.xlane.f32.xlu0 %v1055
        %v1092 = vpop.xlane.xlu0 %1091
        %1093 = vadd.xlane.f32.xlu0 %v1056
        %v1094 = vpop.xlane.xlu0 %1093
        %1095 = vadd.xlane.f32.xlu0 %v1057
        %v1096 = vpop.xlane.xlu0 %1095
        %1097 = vadd.xlane.f32.xlu0 %v1058
        %v1098 = vpop.xlane.xlu0 %1097
        %v1099 = vmul.f32 %v1060, %v978
        %v1100 = vmul.f32 %v1062, %v978
        %v1101 = vmul.f32 %v1064, %v978
        %v1102 = vmul.f32 %v1066, %v978
        %v1103 = vmul.f32 %v1068, %v978
        %v1104 = vmul.f32 %v1070, %v978
        %v1105 = vmul.f32 %v1072, %v978
        %v1106 = vmul.f32 %v1074, %v978
        %v1107 = vmul.f32 %v1076, %v978
        %v1108 = vmul.f32 %v1078, %v978
        %v1109 = vmul.f32 %v1080, %v978
        %v1110 = vmul.f32 %v1082, %v978
        %v1111 = vmul.f32 %v1084, %v978
        %v1112 = vmul.f32 %v1086, %v978
        %v1113 = vmul.f32 %v1088, %v978
        %v1114 = vmul.f32 %v1090, %v978
        %v1115 = vmul.f32 %v1092, %v978
        %v1116 = vmul.f32 %v1094, %v978
        %v1117 = vmul.f32 %v1096, %v978
        %v1118 = vmul.f32 %v1098, %v978
        %v1119 = vadd.f32 %v1099, 1e-06
        %v1120 = vadd.f32 %v1100, 1e-06
        %v1121 = vadd.f32 %v1101, 1e-06
        %v1122 = vadd.f32 %v1102, 1e-06
        %v1123 = vadd.f32 %v1103, 1e-06
        %v1124 = vadd.f32 %v1104, 1e-06
        %v1125 = vadd.f32 %v1105, 1e-06
        %v1126 = vadd.f32 %v1106, 1e-06
        %v1127 = vadd.f32 %v1107, 1e-06
        %v1128 = vadd.f32 %v1108, 1e-06
        %v1129 = vadd.f32 %v1109, 1e-06
        %v1130 = vadd.f32 %v1110, 1e-06
        %v1131 = vadd.f32 %v1111, 1e-06
        %v1132 = vadd.f32 %v1112, 1e-06
        %v1133 = vadd.f32 %v1113, 1e-06
        %v1134 = vadd.f32 %v1114, 1e-06
        %v1135 = vadd.f32 %v1115, 1e-06
        %v1136 = vadd.f32 %v1116, 1e-06
        %v1137 = vadd.f32 %v1117, 1e-06
        %v1138 = vadd.f32 %v1118, 1e-06
        %v1139 = vlog2.pop %v1119
        %v1140 = vmul.f32 %v1139, 0.6931472
        %v1141 = vlog2.pop %v1120
        %v1142 = vmul.f32 %v1141, 0.6931472
        %v1143 = vlog2.pop %v1121
        %v1144 = vmul.f32 %v1143, 0.6931472
        %v1145 = vlog2.pop %v1122
        %v1146 = vmul.f32 %v1145, 0.6931472
        %v1147 = vlog2.pop %v1123
        %v1148 = vmul.f32 %v1147, 0.6931472
        %v1149 = vlog2.pop %v1124
        %v1150 = vmul.f32 %v1149, 0.6931472
        %v1151 = vlog2.pop %v1125
        %v1152 = vmul.f32 %v1151, 0.6931472
        %v1153 = vlog2.pop %v1126
        %v1154 = vmul.f32 %v1153, 0.6931472
        %v1155 = vlog2.pop %v1127
        %v1156 = vmul.f32 %v1155, 0.6931472
        %v1157 = vlog2.pop %v1128
        %v1158 = vmul.f32 %v1157, 0.6931472
        %v1159 = vlog2.pop %v1129
        %v1160 = vmul.f32 %v1159, 0.6931472
        %v1161 = vlog2.pop %v1130
        %v1162 = vmul.f32 %v1161, 0.6931472
        %v1163 = vlog2.pop %v1131
        %v1164 = vmul.f32 %v1163, 0.6931472
        %v1165 = vlog2.pop %v1132
        %v1166 = vmul.f32 %v1165, 0.6931472
        %v1167 = vlog2.pop %v1133
        %v1168 = vmul.f32 %v1167, 0.6931472
        %v1169 = vlog2.pop %v1134
        %v1170 = vmul.f32 %v1169, 0.6931472
        %v1171 = vlog2.pop %v1135
        %v1172 = vmul.f32 %v1171, 0.6931472
        %v1173 = vlog2.pop %v1136
        %v1174 = vmul.f32 %v1173, 0.6931472
        %v1175 = vlog2.pop %v1137
        %v1176 = vmul.f32 %v1175, 0.6931472
        %v1177 = vlog2.pop %v1138
        %v1178 = vmul.f32 %v1177, 0.6931472
        %v1179 = vmul.f32 %v1140, 0.5
        %v1180 = vmul.f32 %v1142, 0.5
        %v1181 = vmul.f32 %v1144, 0.5
        %v1182 = vmul.f32 %v1146, 0.5
        %v1183 = vmul.f32 %v1148, 0.5
        %v1184 = vmul.f32 %v1150, 0.5
        %v1185 = vmul.f32 %v1152, 0.5
        %v1186 = vmul.f32 %v1154, 0.5
        %v1187 = vmul.f32 %v1156, 0.5
        %v1188 = vmul.f32 %v1158, 0.5
        %v1189 = vmul.f32 %v1160, 0.5
        %v1190 = vmul.f32 %v1162, 0.5
        %v1191 = vmul.f32 %v1164, 0.5
        %v1192 = vmul.f32 %v1166, 0.5
        %v1193 = vmul.f32 %v1168, 0.5
        %v1194 = vmul.f32 %v1170, 0.5
        %v1195 = vmul.f32 %v1172, 0.5
        %v1196 = vmul.f32 %v1174, 0.5
        %v1197 = vmul.f32 %v1176, 0.5
        %v1198 = vmul.f32 %v1178, 0.5
        %v1209 = vlaneseq
        %v1210 = vshrl.u32 %v1209, 7
        %v1211 = vsub.s32 0, %v1210
        %v1212 = vrot.slane %v315, %v1211
        %v1213 = vlaneseq
        %v1214 = vshrl.u32 %v1213, 7
        %v1215 = vsub.s32 0, %v1214
        %v1216 = vrot.slane %v316, %v1215
        %v1217 = vlaneseq
        %v1218 = vshrl.u32 %v1217, 7
        %v1219 = vsub.s32 0, %v1218
        %v1220 = vrot.slane %v317, %v1219
        %v1221 = vlaneseq
        %v1222 = vshrl.u32 %v1221, 7
        %v1223 = vsub.s32 0, %v1222
        %v1224 = vrot.slane %v318, %v1223
        %v1225 = vlaneseq
        %v1226 = vshrl.u32 %v1225, 7
        %v1227 = vsub.s32 0, %v1226
        %v1228 = vrot.slane %v319, %v1227
        %v1229 = vlaneseq
        %v1230 = vshrl.u32 %v1229, 7
        %v1231 = vsub.s32 0, %v1230
        %v1232 = vrot.slane %v320, %v1231
        %v1233 = vlaneseq
        %v1234 = vshrl.u32 %v1233, 7
        %v1235 = vsub.s32 0, %v1234
        %v1236 = vrot.slane %v321, %v1235
        %v1237 = vlaneseq
        %v1238 = vshrl.u32 %v1237, 7
        %v1239 = vsub.s32 0, %v1238
        %v1240 = vrot.slane %v322, %v1239
        %v1241 = vlaneseq
        %v1242 = vshrl.u32 %v1241, 7
        %v1243 = vsub.s32 0, %v1242
        %v1244 = vrot.slane %v323, %v1243
        %v1245 = vlaneseq
        %v1246 = vshrl.u32 %v1245, 7
        %v1247 = vsub.s32 0, %v1246
        %v1248 = vrot.slane %v324, %v1247
        %v1259 = vadd.f32 %v1212, %v1179
        %v1260 = vadd.f32 %v1212, %v1180
        %v1261 = vadd.f32 %v1216, %v1181
        %v1262 = vadd.f32 %v1216, %v1182
        %v1263 = vadd.f32 %v1220, %v1183
        %v1264 = vadd.f32 %v1220, %v1184
        %v1265 = vadd.f32 %v1224, %v1185
        %v1266 = vadd.f32 %v1224, %v1186
        %v1267 = vadd.f32 %v1228, %v1187
        %v1268 = vadd.f32 %v1228, %v1188
        %v1269 = vadd.f32 %v1232, %v1189
        %v1270 = vadd.f32 %v1232, %v1190
        %v1271 = vadd.f32 %v1236, %v1191
        %v1272 = vadd.f32 %v1236, %v1192
        %v1273 = vadd.f32 %v1240, %v1193
        %v1274 = vadd.f32 %v1240, %v1194
        %v1275 = vadd.f32 %v1244, %v1195
        %v1276 = vadd.f32 %v1244, %v1196
        %v1277 = vadd.f32 %v1248, %v1197
        %v1278 = vadd.f32 %v1248, %v1198
        %vm1279 = vcmask 7168
        %v1280 = vsel %vm1279, %v1259, 0.0
        %v1281 = vsel %vm1279, %v1260, 0.0
        %v1282 = vadd.f32 %v1280, %v1281
        %v1283 = vrot.slane %v1282, 4
        %v1284 = vadd.f32 %v1282, %v1283
        %v1285 = vrot.slane %v1284, 2
        %v1286 = vadd.f32 %v1284, %v1285
        %v1287 = vrot.slane %v1286, 1
        %v1288 = vadd.f32 %v1286, %v1287
        %v1289 = vsel %vm1279, %v1261, 0.0
        %v1290 = vsel %vm1279, %v1262, 0.0
        %v1291 = vadd.f32 %v1289, %v1290
        %v1292 = vrot.slane %v1291, 4
        %v1293 = vadd.f32 %v1291, %v1292
        %v1294 = vrot.slane %v1293, 2
        %v1295 = vadd.f32 %v1293, %v1294
        %v1296 = vrot.slane %v1295, 1
        %v1297 = vadd.f32 %v1295, %v1296
        %v1298 = vsel %vm1279, %v1263, 0.0
        %v1299 = vsel %vm1279, %v1264, 0.0
        %v1300 = vadd.f32 %v1298, %v1299
        %v1301 = vrot.slane %v1300, 4
        %v1302 = vadd.f32 %v1300, %v1301
        %v1303 = vrot.slane %v1302, 2
        %v1304 = vadd.f32 %v1302, %v1303
        %v1305 = vrot.slane %v1304, 1
        %v1306 = vadd.f32 %v1304, %v1305
        %v1307 = vsel %vm1279, %v1265, 0.0
        %v1308 = vsel %vm1279, %v1266, 0.0
        %v1309 = vadd.f32 %v1307, %v1308
        %v1310 = vrot.slane %v1309, 4
        %v1311 = vadd.f32 %v1309, %v1310
        %v1312 = vrot.slane %v1311, 2
        %v1313 = vadd.f32 %v1311, %v1312
        %v1314 = vrot.slane %v1313, 1
        %v1315 = vadd.f32 %v1313, %v1314
        %v1316 = vsel %vm1279, %v1267, 0.0
        %v1317 = vsel %vm1279, %v1268, 0.0
        %v1318 = vadd.f32 %v1316, %v1317
        %v1319 = vrot.slane %v1318, 4
        %v1320 = vadd.f32 %v1318, %v1319
        %v1321 = vrot.slane %v1320, 2
        %v1322 = vadd.f32 %v1320, %v1321
        %v1323 = vrot.slane %v1322, 1
        %v1324 = vadd.f32 %v1322, %v1323
        %v1325 = vsel %vm1279, %v1269, 0.0
        %v1326 = vsel %vm1279, %v1270, 0.0
        %v1327 = vadd.f32 %v1325, %v1326
        %v1328 = vrot.slane %v1327, 4
        %v1329 = vadd.f32 %v1327, %v1328
        %v1330 = vrot.slane %v1329, 2
        %v1331 = vadd.f32 %v1329, %v1330
        %v1332 = vrot.slane %v1331, 1
        %v1333 = vadd.f32 %v1331, %v1332
        %v1334 = vsel %vm1279, %v1271, 0.0
        %v1335 = vsel %vm1279, %v1272, 0.0
        %v1336 = vadd.f32 %v1334, %v1335
        %v1337 = vrot.slane %v1336, 4
        %v1338 = vadd.f32 %v1336, %v1337
        %v1339 = vrot.slane %v1338, 2
        %v1340 = vadd.f32 %v1338, %v1339
        %v1341 = vrot.slane %v1340, 1
        %v1342 = vadd.f32 %v1340, %v1341
        %v1343 = vsel %vm1279, %v1273, 0.0
        %v1344 = vsel %vm1279, %v1274, 0.0
        %v1345 = vadd.f32 %v1343, %v1344
        %v1346 = vrot.slane %v1345, 4
        %v1347 = vadd.f32 %v1345, %v1346
        %v1348 = vrot.slane %v1347, 2
        %v1349 = vadd.f32 %v1347, %v1348
        %v1350 = vrot.slane %v1349, 1
        %v1351 = vadd.f32 %v1349, %v1350
        %v1352 = vsel %vm1279, %v1275, 0.0
        %v1353 = vsel %vm1279, %v1276, 0.0
        %v1354 = vadd.f32 %v1352, %v1353
        %v1355 = vrot.slane %v1354, 4
        %v1356 = vadd.f32 %v1354, %v1355
        %v1357 = vrot.slane %v1356, 2
        %v1358 = vadd.f32 %v1356, %v1357
        %v1359 = vrot.slane %v1358, 1
        %v1360 = vadd.f32 %v1358, %v1359
        %v1361 = vsel %vm1279, %v1277, 0.0
        %v1362 = vsel %vm1279, %v1278, 0.0
        %v1363 = vadd.f32 %v1361, %v1362
        %v1364 = vrot.slane %v1363, 4
        %v1365 = vadd.f32 %v1363, %v1364
        %v1366 = vrot.slane %v1365, 2
        %v1367 = vadd.f32 %v1365, %v1366
        %v1368 = vrot.slane %v1367, 1
        %v1369 = vadd.f32 %v1367, %v1368
        %v1370 = vmul.f32 %v907, %v1288
        %v1371 = vmul.f32 %v907, %v1297
        %v1372 = vmul.f32 %v907, %v1306
        %v1373 = vmul.f32 %v907, %v1315
        %v1374 = vmul.f32 %v907, %v1324
        %v1375 = vmul.f32 %v907, %v1333
        %v1376 = vmul.f32 %v907, %v1342
        %v1377 = vmul.f32 %v907, %v1351
        %v1378 = vmul.f32 %v907, %v1360
        %v1379 = vmul.f32 %v907, %v1369
        %v1380 = vsub.f32 %v325, %v1370
        %v1381 = vsub.f32 %v326, %v1371
        %v1382 = vsub.f32 %v327, %v1372
        %v1383 = vsub.f32 %v328, %v1373
        %v1384 = vsub.f32 %v329, %v1374
        %v1385 = vsub.f32 %v330, %v1375
        %v1386 = vsub.f32 %v331, %v1376
        %v1387 = vsub.f32 %v332, %v1377
        %v1388 = vsub.f32 %v333, %v1378
        %v1389 = vsub.f32 %v334, %v1379
        %v1390 = vmul.f32 %v1380, 0.0005
        %v1391 = vmul.f32 %v1381, 0.0005
        %v1392 = vmul.f32 %v1382, 0.0005
        %v1393 = vmul.f32 %v1383, 0.0005
        %v1394 = vmul.f32 %v1384, 0.0005
        %v1395 = vmul.f32 %v1385, 0.0005
        %v1396 = vmul.f32 %v1386, 0.0005
        %v1397 = vmul.f32 %v1387, 0.0005
        %v1398 = vmul.f32 %v1388, 0.0005
        %v1399 = vmul.f32 %v1389, 0.0005
        %v1400 = vxor.u32 %v1390, 2147483648
        %v1401 = vxor.u32 %v1391, 2147483648
        %v1402 = vxor.u32 %v1392, 2147483648
        %v1403 = vxor.u32 %v1393, 2147483648
        %v1404 = vxor.u32 %v1394, 2147483648
        %v1405 = vxor.u32 %v1395, 2147483648
        %v1406 = vxor.u32 %v1396, 2147483648
        %v1407 = vxor.u32 %v1397, 2147483648
        %v1408 = vxor.u32 %v1398, 2147483648
        %v1409 = vxor.u32 %v1399, 2147483648
        %v1410 = vmul.f32 %v1400, 1.442695
        %v1411 = vpow.pop %v1410
        %v1412 = vmul.f32 %v1401, 1.442695
        %v1413 = vpow.pop %v1412
        %v1414 = vmul.f32 %v1402, 1.442695
        %v1415 = vpow.pop %v1414
        %v1416 = vmul.f32 %v1403, 1.442695
        %v1417 = vpow.pop %v1416
        %v1418 = vmul.f32 %v1404, 1.442695
        %v1419 = vpow.pop %v1418
        %v1420 = vmul.f32 %v1405, 1.442695
        %v1421 = vpow.pop %v1420
        %v1422 = vmul.f32 %v1406, 1.442695
        %v1423 = vpow.pop %v1422
        %v1424 = vmul.f32 %v1407, 1.442695
        %v1425 = vpow.pop %v1424
        %v1426 = vmul.f32 %v1408, 1.442695
        %v1427 = vpow.pop %v1426
        %v1428 = vmul.f32 %v1409, 1.442695
        %v1429 = vpow.pop %v1428
        %v1430 = vadd.f32 %v1411, 1.0
        %v1431 = vadd.f32 %v1413, 1.0
        %v1432 = vadd.f32 %v1415, 1.0
        %v1433 = vadd.f32 %v1417, 1.0
        %v1434 = vadd.f32 %v1419, 1.0
        %v1435 = vadd.f32 %v1421, 1.0
        %v1436 = vadd.f32 %v1423, 1.0
        %v1437 = vadd.f32 %v1425, 1.0
        %v1438 = vadd.f32 %v1427, 1.0
        %v1439 = vadd.f32 %v1429, 1.0
        %v1440 = vrcp.pop %v1430
        %v1441 = vmul.f32 1.0, %v1440
        %v1442 = vrcp.pop %v1431
        %v1443 = vmul.f32 1.0, %v1442
        %v1444 = vrcp.pop %v1432
        %v1445 = vmul.f32 1.0, %v1444
        %v1446 = vrcp.pop %v1433
        %v1447 = vmul.f32 1.0, %v1446
        %v1448 = vrcp.pop %v1434
        %v1449 = vmul.f32 1.0, %v1448
        %v1450 = vrcp.pop %v1435
        %v1451 = vmul.f32 1.0, %v1450
        %v1452 = vrcp.pop %v1436
        %v1453 = vmul.f32 1.0, %v1452
        %v1454 = vrcp.pop %v1437
        %v1455 = vmul.f32 1.0, %v1454
        %v1456 = vrcp.pop %v1438
        %v1457 = vmul.f32 1.0, %v1456
        %v1458 = vrcp.pop %v1439
        %v1459 = vmul.f32 1.0, %v1458
        %v1460 = vrcp.pop %v1119
        %v1461 = vrcp.pop %v1120
        %v1462 = vrcp.pop %v1121
        %v1463 = vrcp.pop %v1122
        %v1464 = vrcp.pop %v1123
        %v1465 = vrcp.pop %v1124
        %v1466 = vrcp.pop %v1125
        %v1467 = vrcp.pop %v1126
        %v1468 = vrcp.pop %v1127
        %v1469 = vrcp.pop %v1128
        %v1470 = vrcp.pop %v1129
        %v1471 = vrcp.pop %v1130
        %v1472 = vrcp.pop %v1131
        %v1473 = vrcp.pop %v1132
        %v1474 = vrcp.pop %v1133
        %v1475 = vrcp.pop %v1134
        %v1476 = vrcp.pop %v1135
        %v1477 = vrcp.pop %v1136
        %v1478 = vrcp.pop %v1137
        %v1479 = vrcp.pop %v1138
        %v1480 = vmul.f32 %v1019, %v1460
        %v1481 = vmul.f32 %v1020, %v1461
        %v1482 = vmul.f32 %v1021, %v1462
        %v1483 = vmul.f32 %v1022, %v1463
        %v1484 = vmul.f32 %v1023, %v1464
        %v1485 = vmul.f32 %v1024, %v1465
        %v1486 = vmul.f32 %v1025, %v1466
        %v1487 = vmul.f32 %v1026, %v1467
        %v1488 = vmul.f32 %v1027, %v1468
        %v1489 = vmul.f32 %v1028, %v1469
        %v1490 = vmul.f32 %v1029, %v1470
        %v1491 = vmul.f32 %v1030, %v1471
        %v1492 = vmul.f32 %v1031, %v1472
        %v1493 = vmul.f32 %v1032, %v1473
        %v1494 = vmul.f32 %v1033, %v1474
        %v1495 = vmul.f32 %v1034, %v1475
        %v1496 = vmul.f32 %v1035, %v1476
        %v1497 = vmul.f32 %v1036, %v1477
        %v1498 = vmul.f32 %v1037, %v1478
        %v1499 = vmul.f32 %v1038, %v1479
        %v1500 = vadd.f32 %v1480, %v1481
        %v1501 = vrot.slane %v1500, 4
        %v1502 = vadd.f32 %v1500, %v1501
        %v1503 = vrot.slane %v1502, 2
        %v1504 = vadd.f32 %v1502, %v1503
        %v1505 = vrot.slane %v1504, 1
        %v1506 = vadd.f32 %v1504, %v1505
        %v1507 = vadd.f32 %v1482, %v1483
        %v1508 = vrot.slane %v1507, 4
        %v1509 = vadd.f32 %v1507, %v1508
        %v1510 = vrot.slane %v1509, 2
        %v1511 = vadd.f32 %v1509, %v1510
        %v1512 = vrot.slane %v1511, 1
        %v1513 = vadd.f32 %v1511, %v1512
        %v1514 = vadd.f32 %v1484, %v1485
        %v1515 = vrot.slane %v1514, 4
        %v1516 = vadd.f32 %v1514, %v1515
        %v1517 = vrot.slane %v1516, 2
        %v1518 = vadd.f32 %v1516, %v1517
        %v1519 = vrot.slane %v1518, 1
        %v1520 = vadd.f32 %v1518, %v1519
        %v1521 = vadd.f32 %v1486, %v1487
        %v1522 = vrot.slane %v1521, 4
        %v1523 = vadd.f32 %v1521, %v1522
        %v1524 = vrot.slane %v1523, 2
        %v1525 = vadd.f32 %v1523, %v1524
        %v1526 = vrot.slane %v1525, 1
        %v1527 = vadd.f32 %v1525, %v1526
        %v1528 = vadd.f32 %v1488, %v1489
        %v1529 = vrot.slane %v1528, 4
        %v1530 = vadd.f32 %v1528, %v1529
        %v1531 = vrot.slane %v1530, 2
        %v1532 = vadd.f32 %v1530, %v1531
        %v1533 = vrot.slane %v1532, 1
        %v1534 = vadd.f32 %v1532, %v1533
        %v1535 = vadd.f32 %v1490, %v1491
        %v1536 = vrot.slane %v1535, 4
        %v1537 = vadd.f32 %v1535, %v1536
        %v1538 = vrot.slane %v1537, 2
        %v1539 = vadd.f32 %v1537, %v1538
        %v1540 = vrot.slane %v1539, 1
        %v1541 = vadd.f32 %v1539, %v1540
        %v1542 = vadd.f32 %v1492, %v1493
        %v1543 = vrot.slane %v1542, 4
        %v1544 = vadd.f32 %v1542, %v1543
        %v1545 = vrot.slane %v1544, 2
        %v1546 = vadd.f32 %v1544, %v1545
        %v1547 = vrot.slane %v1546, 1
        %v1548 = vadd.f32 %v1546, %v1547
        %v1549 = vadd.f32 %v1494, %v1495
        %v1550 = vrot.slane %v1549, 4
        %v1551 = vadd.f32 %v1549, %v1550
        %v1552 = vrot.slane %v1551, 2
        %v1553 = vadd.f32 %v1551, %v1552
        %v1554 = vrot.slane %v1553, 1
        %v1555 = vadd.f32 %v1553, %v1554
        %v1556 = vadd.f32 %v1496, %v1497
        %v1557 = vrot.slane %v1556, 4
        %v1558 = vadd.f32 %v1556, %v1557
        %v1559 = vrot.slane %v1558, 2
        %v1560 = vadd.f32 %v1558, %v1559
        %v1561 = vrot.slane %v1560, 1
        %v1562 = vadd.f32 %v1560, %v1561
        %v1563 = vadd.f32 %v1498, %v1499
        %v1564 = vrot.slane %v1563, 4
        %v1565 = vadd.f32 %v1563, %v1564
        %v1566 = vrot.slane %v1565, 2
        %v1567 = vadd.f32 %v1565, %v1566
        %v1568 = vrot.slane %v1567, 1
        %v1569 = vadd.f32 %v1567, %v1568
        %v1570 = vadd.f32 %v1140, %v1142
        %v1571 = vrot.slane %v1570, 4
        %v1572 = vadd.f32 %v1570, %v1571
        %v1573 = vrot.slane %v1572, 2
        %v1574 = vadd.f32 %v1572, %v1573
        %v1575 = vrot.slane %v1574, 1
        %v1576 = vadd.f32 %v1574, %v1575
        %v1577 = vadd.f32 %v1144, %v1146
        %v1578 = vrot.slane %v1577, 4
        %v1579 = vadd.f32 %v1577, %v1578
        %v1580 = vrot.slane %v1579, 2
        %v1581 = vadd.f32 %v1579, %v1580
        %v1582 = vrot.slane %v1581, 1
        %v1583 = vadd.f32 %v1581, %v1582
        %v1584 = vadd.f32 %v1148, %v1150
        %v1585 = vrot.slane %v1584, 4
        %v1586 = vadd.f32 %v1584, %v1585
        %v1587 = vrot.slane %v1586, 2
        %v1588 = vadd.f32 %v1586, %v1587
        %v1589 = vrot.slane %v1588, 1
        %v1590 = vadd.f32 %v1588, %v1589
        %v1591 = vadd.f32 %v1152, %v1154
        %v1592 = vrot.slane %v1591, 4
        %v1593 = vadd.f32 %v1591, %v1592
        %v1594 = vrot.slane %v1593, 2
        %v1595 = vadd.f32 %v1593, %v1594
        %v1596 = vrot.slane %v1595, 1
        %v1597 = vadd.f32 %v1595, %v1596
        %v1598 = vadd.f32 %v1156, %v1158
        %v1599 = vrot.slane %v1598, 4
        %v1600 = vadd.f32 %v1598, %v1599
        %v1601 = vrot.slane %v1600, 2
        %v1602 = vadd.f32 %v1600, %v1601
        %v1603 = vrot.slane %v1602, 1
        %v1604 = vadd.f32 %v1602, %v1603
        %v1605 = vadd.f32 %v1160, %v1162
        %v1606 = vrot.slane %v1605, 4
        %v1607 = vadd.f32 %v1605, %v1606
        %v1608 = vrot.slane %v1607, 2
        %v1609 = vadd.f32 %v1607, %v1608
        %v1610 = vrot.slane %v1609, 1
        %v1611 = vadd.f32 %v1609, %v1610
        %v1612 = vadd.f32 %v1164, %v1166
        %v1613 = vrot.slane %v1612, 4
        %v1614 = vadd.f32 %v1612, %v1613
        %v1615 = vrot.slane %v1614, 2
        %v1616 = vadd.f32 %v1614, %v1615
        %v1617 = vrot.slane %v1616, 1
        %v1618 = vadd.f32 %v1616, %v1617
        %v1619 = vadd.f32 %v1168, %v1170
        %v1620 = vrot.slane %v1619, 4
        %v1621 = vadd.f32 %v1619, %v1620
        %v1622 = vrot.slane %v1621, 2
        %v1623 = vadd.f32 %v1621, %v1622
        %v1624 = vrot.slane %v1623, 1
        %v1625 = vadd.f32 %v1623, %v1624
        %v1626 = vadd.f32 %v1172, %v1174
        %v1627 = vrot.slane %v1626, 4
        %v1628 = vadd.f32 %v1626, %v1627
        %v1629 = vrot.slane %v1628, 2
        %v1630 = vadd.f32 %v1628, %v1629
        %v1631 = vrot.slane %v1630, 1
        %v1632 = vadd.f32 %v1630, %v1631
        %v1633 = vadd.f32 %v1176, %v1178
        %v1634 = vrot.slane %v1633, 4
        %v1635 = vadd.f32 %v1633, %v1634
        %v1636 = vrot.slane %v1635, 2
        %v1637 = vadd.f32 %v1635, %v1636
        %v1638 = vrot.slane %v1637, 1
        %v1639 = vadd.f32 %v1637, %v1638
        %v1640 = vadd.f32 %v1506, %v1576
        %v1641 = vadd.f32 %v1513, %v1583
        %v1642 = vadd.f32 %v1520, %v1590
        %v1643 = vadd.f32 %v1527, %v1597
        %v1644 = vadd.f32 %v1534, %v1604
        %v1645 = vadd.f32 %v1541, %v1611
        %v1646 = vadd.f32 %v1548, %v1618
        %v1647 = vadd.f32 %v1555, %v1625
        %v1648 = vadd.f32 %v1562, %v1632
        %v1649 = vadd.f32 %v1569, %v1639
        %v1650 = vadd.f32 %v1640, 29.406033
        %v1651 = vadd.f32 %v1641, 29.406033
        %v1652 = vadd.f32 %v1642, 29.406033
        %v1653 = vadd.f32 %v1643, 29.406033
        %v1654 = vadd.f32 %v1644, 29.406033
        %v1655 = vadd.f32 %v1645, 29.406033
        %v1656 = vadd.f32 %v1646, 29.406033
        %v1657 = vadd.f32 %v1647, 29.406033
        %v1658 = vadd.f32 %v1648, 29.406033
        %v1659 = vadd.f32 %v1649, 29.406033
        %v1660 = vmul.f32 %v1650, -0.5
        %v1661 = vmul.f32 %v1651, -0.5
        %v1662 = vmul.f32 %v1652, -0.5
        %v1663 = vmul.f32 %v1653, -0.5
        %v1664 = vmul.f32 %v1654, -0.5
        %v1665 = vmul.f32 %v1655, -0.5
        %v1666 = vmul.f32 %v1656, -0.5
        %v1667 = vmul.f32 %v1657, -0.5
        %v1668 = vmul.f32 %v1658, -0.5
        %v1669 = vmul.f32 %v1659, -0.5
        %v1670 = vadd.f32 %v1441, 1e-06
        %v1671 = vadd.f32 %v1443, 1e-06
        %v1672 = vadd.f32 %v1445, 1e-06
        %v1673 = vadd.f32 %v1447, 1e-06
        %v1674 = vadd.f32 %v1449, 1e-06
        %v1675 = vadd.f32 %v1451, 1e-06
        %v1676 = vadd.f32 %v1453, 1e-06
        %v1677 = vadd.f32 %v1455, 1e-06
        %v1678 = vadd.f32 %v1457, 1e-06
        %v1679 = vadd.f32 %v1459, 1e-06
        %v1680 = vlog2.pop %v1670
        %v1681 = vmul.f32 %v1680, 0.6931472
        %v1682 = vlog2.pop %v1671
        %v1683 = vmul.f32 %v1682, 0.6931472
        %v1684 = vlog2.pop %v1672
        %v1685 = vmul.f32 %v1684, 0.6931472
        %v1686 = vlog2.pop %v1673
        %v1687 = vmul.f32 %v1686, 0.6931472
        %v1688 = vlog2.pop %v1674
        %v1689 = vmul.f32 %v1688, 0.6931472
        %v1690 = vlog2.pop %v1675
        %v1691 = vmul.f32 %v1690, 0.6931472
        %v1692 = vlog2.pop %v1676
        %v1693 = vmul.f32 %v1692, 0.6931472
        %v1694 = vlog2.pop %v1677
        %v1695 = vmul.f32 %v1694, 0.6931472
        %v1696 = vlog2.pop %v1678
        %v1697 = vmul.f32 %v1696, 0.6931472
        %v1698 = vlog2.pop %v1679
        %v1699 = vmul.f32 %v1698, 0.6931472
        %1701 = vset.pattern.permute.xlu0 0
        %1702 = vperm.xlu0 %1701, %v1681
        %v1703 = vpop.permute.xlu0 %1702
        %v1705 = vlaneseq
        %v1706 = vshrl.u32 %v1705, 7
        %v1707 = vsub.s32 0, %v1706
        %v1708 = vrot.slane %v1703, %v1707
        %1710 = vset.pattern.permute.xlu0 0
        %1711 = vperm.xlu0 %1710, %v1683
        %v1712 = vpop.permute.xlu0 %1711
        %v1714 = vlaneseq
        %v1715 = vshrl.u32 %v1714, 7
        %v1716 = vsub.s32 0, %v1715
        %v1717 = vrot.slane %v1712, %v1716
        %1719 = vset.pattern.permute.xlu0 0
        %1720 = vperm.xlu0 %1719, %v1685
        %v1721 = vpop.permute.xlu0 %1720
        %v1723 = vlaneseq
        %v1724 = vshrl.u32 %v1723, 7
        %v1725 = vsub.s32 0, %v1724
        %v1726 = vrot.slane %v1721, %v1725
        %1728 = vset.pattern.permute.xlu0 0
        %1729 = vperm.xlu0 %1728, %v1687
        %v1730 = vpop.permute.xlu0 %1729
        %v1732 = vlaneseq
        %v1733 = vshrl.u32 %v1732, 7
        %v1734 = vsub.s32 0, %v1733
        %v1735 = vrot.slane %v1730, %v1734
        %1737 = vset.pattern.permute.xlu0 0
        %1738 = vperm.xlu0 %1737, %v1689
        %v1739 = vpop.permute.xlu0 %1738
        %v1741 = vlaneseq
        %v1742 = vshrl.u32 %v1741, 7
        %v1743 = vsub.s32 0, %v1742
        %v1744 = vrot.slane %v1739, %v1743
        %1746 = vset.pattern.permute.xlu0 0
        %1747 = vperm.xlu0 %1746, %v1691
        %v1748 = vpop.permute.xlu0 %1747
        %v1750 = vlaneseq
        %v1751 = vshrl.u32 %v1750, 7
        %v1752 = vsub.s32 0, %v1751
        %v1753 = vrot.slane %v1748, %v1752
        %1755 = vset.pattern.permute.xlu0 0
        %1756 = vperm.xlu0 %1755, %v1693
        %v1757 = vpop.permute.xlu0 %1756
        %v1759 = vlaneseq
        %v1760 = vshrl.u32 %v1759, 7
        %v1761 = vsub.s32 0, %v1760
        %v1762 = vrot.slane %v1757, %v1761
        %1764 = vset.pattern.permute.xlu0 0
        %1765 = vperm.xlu0 %1764, %v1695
        %v1766 = vpop.permute.xlu0 %1765
        %v1768 = vlaneseq
        %v1769 = vshrl.u32 %v1768, 7
        %v1770 = vsub.s32 0, %v1769
        %v1771 = vrot.slane %v1766, %v1770
        %1773 = vset.pattern.permute.xlu0 0
        %1774 = vperm.xlu0 %1773, %v1697
        %v1775 = vpop.permute.xlu0 %1774
        %v1777 = vlaneseq
        %v1778 = vshrl.u32 %v1777, 7
        %v1779 = vsub.s32 0, %v1778
        %v1780 = vrot.slane %v1775, %v1779
        %1782 = vset.pattern.permute.xlu0 0
        %1783 = vperm.xlu0 %1782, %v1699
        %v1784 = vpop.permute.xlu0 %1783
        %v1786 = vlaneseq
        %v1787 = vshrl.u32 %v1786, 7
        %v1788 = vsub.s32 0, %v1787
        %v1789 = vrot.slane %v1784, %v1788
        %v1790 = vadd.f32 %v1708, %v1660
        %v1791 = vadd.f32 %v1717, %v1661
        %v1792 = vadd.f32 %v1726, %v1662
        %v1793 = vadd.f32 %v1735, %v1663
        %v1794 = vadd.f32 %v1744, %v1664
        %v1795 = vadd.f32 %v1753, %v1665
        %v1796 = vadd.f32 %v1762, %v1666
        %v1797 = vadd.f32 %v1771, %v1667
        %v1798 = vadd.f32 %v1780, %v1668
        %v1799 = vadd.f32 %v1789, %v1669
        %v1800 = vmax.f32 %v1790, %v1794
        %v1801 = vmax.f32 %v1791, %v1795
        %v1802 = vmax.f32 %v1792, %v1796
        %v1803 = vmax.f32 %v1793, %v1797
        %v1804 = vmax.f32 %v1800, %v1798
        %v1805 = vmax.f32 %v1801, %v1799
        %v1806 = vmax.f32 %v1804, %v1805
        %v1807 = vmax.f32 %v1802, %v1803
        %v1808 = vmax.f32 %v1806, %v1807
        %v1809 = vsub.f32 %v1790, %v1808
        %v1810 = vsub.f32 %v1791, %v1808
        %v1811 = vsub.f32 %v1792, %v1808
        %v1812 = vsub.f32 %v1793, %v1808
        %v1813 = vsub.f32 %v1794, %v1808
        %v1814 = vsub.f32 %v1795, %v1808
        %v1815 = vsub.f32 %v1796, %v1808
        %v1816 = vsub.f32 %v1797, %v1808
        %v1817 = vsub.f32 %v1798, %v1808
        %v1818 = vsub.f32 %v1799, %v1808
        %v1819 = vmul.f32 %v1809, 1.442695
        %v1820 = vpow.pop %v1819
        %v1821 = vmul.f32 %v1810, 1.442695
        %v1822 = vpow.pop %v1821
        %v1823 = vmul.f32 %v1811, 1.442695
        %v1824 = vpow.pop %v1823
        %v1825 = vmul.f32 %v1812, 1.442695
        %v1826 = vpow.pop %v1825
        %v1827 = vmul.f32 %v1813, 1.442695
        %v1828 = vpow.pop %v1827
        %v1829 = vmul.f32 %v1814, 1.442695
        %v1830 = vpow.pop %v1829
        %v1831 = vmul.f32 %v1815, 1.442695
        %v1832 = vpow.pop %v1831
        %v1833 = vmul.f32 %v1816, 1.442695
        %v1834 = vpow.pop %v1833
        %v1835 = vmul.f32 %v1817, 1.442695
        %v1836 = vpow.pop %v1835
        %v1837 = vmul.f32 %v1818, 1.442695
        %v1838 = vpow.pop %v1837
        %v1839 = vadd.f32 %v1820, %v1822
        %v1840 = vadd.f32 %v1839, %v1824
        %v1841 = vadd.f32 %v1840, %v1826
        %v1842 = vadd.f32 %v1841, %v1828
        %v1843 = vadd.f32 %v1842, %v1830
        %v1844 = vadd.f32 %v1843, %v1832
        %v1845 = vadd.f32 %v1844, %v1834
        %v1846 = vadd.f32 %v1845, %v1836
        %v1847 = vadd.f32 %v1846, %v1838
        %v1848 = vadd.f32 %v1847, 1e-06
        %v1849 = vrcp.pop %v1848
        %v1850 = vmul.f32 %v1820, %v1849
        %v1851 = vmul.f32 %v1822, %v1849
        %v1852 = vmul.f32 %v1824, %v1849
        %v1853 = vmul.f32 %v1826, %v1849
        %v1854 = vmul.f32 %v1828, %v1849
        %v1855 = vmul.f32 %v1830, %v1849
        %v1856 = vmul.f32 %v1832, %v1849
        %v1857 = vmul.f32 %v1834, %v1849
        %v1858 = vmul.f32 %v1836, %v1849
        %v1859 = vmul.f32 %v1838, %v1849
        %v1860 = vmul.f32 %v1850, %v314
        %v1861 = vmul.f32 %v1851, %v314
        %v1862 = vmul.f32 %v1852, %v314
        %v1863 = vmul.f32 %v1853, %v314
        %v1864 = vmul.f32 %v1854, %v314
        %v1865 = vmul.f32 %v1855, %v314
        %v1866 = vmul.f32 %v1856, %v314
        %v1867 = vmul.f32 %v1857, %v314
        %v1868 = vmul.f32 %v1858, %v314
        %v1869 = vmul.f32 %v1859, %v314
        %v1870 = vsel %vm903, %v1860, 0.0
        %1871 = vadd.xlane.f32.xlu0 %v1870
        %v1872 = vpop.xlane.xlu0 %1871
        %v1873 = vsel %vm903, %v1861, 0.0
        %1874 = vadd.xlane.f32.xlu0 %v1873
        %v1875 = vpop.xlane.xlu0 %1874
        %v1876 = vsel %vm903, %v1862, 0.0
        %1877 = vadd.xlane.f32.xlu0 %v1876
        %v1878 = vpop.xlane.xlu0 %1877
        %v1879 = vsel %vm903, %v1863, 0.0
        %1880 = vadd.xlane.f32.xlu0 %v1879
        %v1881 = vpop.xlane.xlu0 %1880
        %v1882 = vsel %vm903, %v1864, 0.0
        %1883 = vadd.xlane.f32.xlu0 %v1882
        %v1884 = vpop.xlane.xlu0 %1883
        %v1885 = vsel %vm903, %v1865, 0.0
        %1886 = vadd.xlane.f32.xlu0 %v1885
        %v1887 = vpop.xlane.xlu0 %1886
        %v1888 = vsel %vm903, %v1866, 0.0
        %1889 = vadd.xlane.f32.xlu0 %v1888
        %v1890 = vpop.xlane.xlu0 %1889
        %v1891 = vsel %vm903, %v1867, 0.0
        %1892 = vadd.xlane.f32.xlu0 %v1891
        %v1893 = vpop.xlane.xlu0 %1892
        %v1894 = vsel %vm903, %v1868, 0.0
        %1895 = vadd.xlane.f32.xlu0 %v1894
        %v1896 = vpop.xlane.xlu0 %1895
        %v1897 = vsel %vm903, %v1869, 0.0
        %1898 = vadd.xlane.f32.xlu0 %v1897
        %v1899 = vpop.xlane.xlu0 %1898
        %v1900 = vadd.f32 %v1872, 1e-06
        %v1901 = vadd.f32 %v1875, 1e-06
        %v1902 = vadd.f32 %v1878, 1e-06
        %v1903 = vadd.f32 %v1881, 1e-06
        %v1904 = vadd.f32 %v1884, 1e-06
        %v1905 = vadd.f32 %v1887, 1e-06
        %v1906 = vadd.f32 %v1890, 1e-06
        %v1907 = vadd.f32 %v1893, 1e-06
        %v1908 = vadd.f32 %v1896, 1e-06
        %v1909 = vadd.f32 %v1899, 1e-06
        %v1910 = vrcp.pop %v1900
        %v1911 = vrcp.pop %v1901
        %v1912 = vrcp.pop %v1902
        %v1913 = vrcp.pop %v1903
        %v1914 = vrcp.pop %v1904
        %v1915 = vrcp.pop %v1905
        %v1916 = vrcp.pop %v1906
        %v1917 = vrcp.pop %v1907
        %v1918 = vrcp.pop %v1908
        %v1919 = vrcp.pop %v1909
        %v1920 = vlaneseq
        %v1921 = vshrl.u32 %v1920, 7
        %v1922 = vsub.s32 0, %v1921
        %v1923 = vrot.slane %v1860, %v1922
        %v1924 = vlaneseq
        %v1925 = vshrl.u32 %v1924, 7
        %v1926 = vsub.s32 0, %v1925
        %v1927 = vrot.slane %v1861, %v1926
        %v1928 = vlaneseq
        %v1929 = vshrl.u32 %v1928, 7
        %v1930 = vsub.s32 0, %v1929
        %v1931 = vrot.slane %v1862, %v1930
        %v1932 = vlaneseq
        %v1933 = vshrl.u32 %v1932, 7
        %v1934 = vsub.s32 0, %v1933
        %v1935 = vrot.slane %v1863, %v1934
        %v1936 = vlaneseq
        %v1937 = vshrl.u32 %v1936, 7
        %v1938 = vsub.s32 0, %v1937
        %v1939 = vrot.slane %v1864, %v1938
        %v1940 = vlaneseq
        %v1941 = vshrl.u32 %v1940, 7
        %v1942 = vsub.s32 0, %v1941
        %v1943 = vrot.slane %v1865, %v1942
        %v1944 = vlaneseq
        %v1945 = vshrl.u32 %v1944, 7
        %v1946 = vsub.s32 0, %v1945
        %v1947 = vrot.slane %v1866, %v1946
        %v1948 = vlaneseq
        %v1949 = vshrl.u32 %v1948, 7
        %v1950 = vsub.s32 0, %v1949
        %v1951 = vrot.slane %v1867, %v1950
        %v1952 = vlaneseq
        %v1953 = vshrl.u32 %v1952, 7
        %v1954 = vsub.s32 0, %v1953
        %v1955 = vrot.slane %v1868, %v1954
        %v1956 = vlaneseq
        %v1957 = vshrl.u32 %v1956, 7
        %v1958 = vsub.s32 0, %v1957
        %v1959 = vrot.slane %v1869, %v1958
        %v1960 = vmul.f32 %v1923, %v882
        %v1961 = vmul.f32 %v1923, %v883
        %v1962 = vmul.f32 %v1927, %v884
        %v1963 = vmul.f32 %v1927, %v885
        %v1964 = vmul.f32 %v1931, %v886
        %v1965 = vmul.f32 %v1931, %v887
        %v1966 = vmul.f32 %v1935, %v888
        %v1967 = vmul.f32 %v1935, %v889
        %v1968 = vmul.f32 %v1939, %v890
        %v1969 = vmul.f32 %v1939, %v891
        %v1970 = vmul.f32 %v1943, %v892
        %v1971 = vmul.f32 %v1943, %v893
        %v1972 = vmul.f32 %v1947, %v894
        %v1973 = vmul.f32 %v1947, %v895
        %v1974 = vmul.f32 %v1951, %v896
        %v1975 = vmul.f32 %v1951, %v897
        %v1976 = vmul.f32 %v1955, %v898
        %v1977 = vmul.f32 %v1955, %v899
        %v1978 = vmul.f32 %v1959, %v900
        %v1979 = vmul.f32 %v1959, %v901
        %1980 = vadd.xlane.f32.xlu0 %v1960
        %v1981 = vpop.xlane.xlu0 %1980
        %1982 = vadd.xlane.f32.xlu0 %v1961
        %v1983 = vpop.xlane.xlu0 %1982
        %1984 = vadd.xlane.f32.xlu0 %v1962
        %v1985 = vpop.xlane.xlu0 %1984
        %1986 = vadd.xlane.f32.xlu0 %v1963
        %v1987 = vpop.xlane.xlu0 %1986
        %1988 = vadd.xlane.f32.xlu0 %v1964
        %v1989 = vpop.xlane.xlu0 %1988
        %1990 = vadd.xlane.f32.xlu0 %v1965
        %v1991 = vpop.xlane.xlu0 %1990
        %1992 = vadd.xlane.f32.xlu0 %v1966
        %v1993 = vpop.xlane.xlu0 %1992
        %1994 = vadd.xlane.f32.xlu0 %v1967
        %v1995 = vpop.xlane.xlu0 %1994
        %1996 = vadd.xlane.f32.xlu0 %v1968
        %v1997 = vpop.xlane.xlu0 %1996
        %1998 = vadd.xlane.f32.xlu0 %v1969
        %v1999 = vpop.xlane.xlu0 %1998
        %2000 = vadd.xlane.f32.xlu0 %v1970
        %v2001 = vpop.xlane.xlu0 %2000
        %2002 = vadd.xlane.f32.xlu0 %v1971
        %v2003 = vpop.xlane.xlu0 %2002
        %2004 = vadd.xlane.f32.xlu0 %v1972
        %v2005 = vpop.xlane.xlu0 %2004
        %2006 = vadd.xlane.f32.xlu0 %v1973
        %v2007 = vpop.xlane.xlu0 %2006
        %2008 = vadd.xlane.f32.xlu0 %v1974
        %v2009 = vpop.xlane.xlu0 %2008
        %2010 = vadd.xlane.f32.xlu0 %v1975
        %v2011 = vpop.xlane.xlu0 %2010
        %2012 = vadd.xlane.f32.xlu0 %v1976
        %v2013 = vpop.xlane.xlu0 %2012
        %2014 = vadd.xlane.f32.xlu0 %v1977
        %v2015 = vpop.xlane.xlu0 %2014
        %2016 = vadd.xlane.f32.xlu0 %v1978
        %v2017 = vpop.xlane.xlu0 %2016
        %2018 = vadd.xlane.f32.xlu0 %v1979
        %v2019 = vpop.xlane.xlu0 %2018
        %v2020 = vlaneseq
        %v2021 = vshrl.u32 %v2020, 7
        %v2022 = vsub.s32 0, %v2021
        %v2023 = vrot.slane %v1910, %v2022
        %v2024 = vlaneseq
        %v2025 = vshrl.u32 %v2024, 7
        %v2026 = vsub.s32 0, %v2025
        %v2027 = vrot.slane %v1911, %v2026
        %v2028 = vlaneseq
        %v2029 = vshrl.u32 %v2028, 7
        %v2030 = vsub.s32 0, %v2029
        %v2031 = vrot.slane %v1912, %v2030
        %v2032 = vlaneseq
        %v2033 = vshrl.u32 %v2032, 7
        %v2034 = vsub.s32 0, %v2033
        %v2035 = vrot.slane %v1913, %v2034
        %v2036 = vlaneseq
        %v2037 = vshrl.u32 %v2036, 7
        %v2038 = vsub.s32 0, %v2037
        %v2039 = vrot.slane %v1914, %v2038
        %v2040 = vlaneseq
        %v2041 = vshrl.u32 %v2040, 7
        %v2042 = vsub.s32 0, %v2041
        %v2043 = vrot.slane %v1915, %v2042
        %v2044 = vlaneseq
        %v2045 = vshrl.u32 %v2044, 7
        %v2046 = vsub.s32 0, %v2045
        %v2047 = vrot.slane %v1916, %v2046
        %v2048 = vlaneseq
        %v2049 = vshrl.u32 %v2048, 7
        %v2050 = vsub.s32 0, %v2049
        %v2051 = vrot.slane %v1917, %v2050
        %v2052 = vlaneseq
        %v2053 = vshrl.u32 %v2052, 7
        %v2054 = vsub.s32 0, %v2053
        %v2055 = vrot.slane %v1918, %v2054
        %v2056 = vlaneseq
        %v2057 = vshrl.u32 %v2056, 7
        %v2058 = vsub.s32 0, %v2057
        %v2059 = vrot.slane %v1919, %v2058
        %v2060 = vmul.f32 %v1981, %v2023
        %v2061 = vmul.f32 %v1983, %v2023
        %v2062 = vmul.f32 %v1985, %v2027
        %v2063 = vmul.f32 %v1987, %v2027
        %v2064 = vmul.f32 %v1989, %v2031
        %v2065 = vmul.f32 %v1991, %v2031
        %v2066 = vmul.f32 %v1993, %v2035
        %v2067 = vmul.f32 %v1995, %v2035
        %v2068 = vmul.f32 %v1997, %v2039
        %v2069 = vmul.f32 %v1999, %v2039
        %v2070 = vmul.f32 %v2001, %v2043
        %v2071 = vmul.f32 %v2003, %v2043
        %v2072 = vmul.f32 %v2005, %v2047
        %v2073 = vmul.f32 %v2007, %v2047
        %v2074 = vmul.f32 %v2009, %v2051
        %v2075 = vmul.f32 %v2011, %v2051
        %v2076 = vmul.f32 %v2013, %v2055
        %v2077 = vmul.f32 %v2015, %v2055
        %v2078 = vmul.f32 %v2017, %v2059
        %v2079 = vmul.f32 %v2019, %v2059
        %v2080 = vsub.f32 %v882, %v2060
        %v2081 = vsub.f32 %v883, %v2061
        %v2082 = vsub.f32 %v884, %v2062
        %v2083 = vsub.f32 %v885, %v2063
        %v2084 = vsub.f32 %v886, %v2064
        %v2085 = vsub.f32 %v887, %v2065
        %v2086 = vsub.f32 %v888, %v2066
        %v2087 = vsub.f32 %v889, %v2067
        %v2088 = vsub.f32 %v890, %v2068
        %v2089 = vsub.f32 %v891, %v2069
        %v2090 = vsub.f32 %v892, %v2070
        %v2091 = vsub.f32 %v893, %v2071
        %v2092 = vsub.f32 %v894, %v2072
        %v2093 = vsub.f32 %v895, %v2073
        %v2094 = vsub.f32 %v896, %v2074
        %v2095 = vsub.f32 %v897, %v2075
        %v2096 = vsub.f32 %v898, %v2076
        %v2097 = vsub.f32 %v899, %v2077
        %v2098 = vsub.f32 %v900, %v2078
        %v2099 = vsub.f32 %v901, %v2079
        %v2100 = vmul.f32 %v2080, %v2080
        %v2101 = vmul.f32 %v2081, %v2081
        %v2102 = vmul.f32 %v2082, %v2082
        %v2103 = vmul.f32 %v2083, %v2083
        %v2104 = vmul.f32 %v2084, %v2084
        %v2105 = vmul.f32 %v2085, %v2085
        %v2106 = vmul.f32 %v2086, %v2086
        %v2107 = vmul.f32 %v2087, %v2087
        %v2108 = vmul.f32 %v2088, %v2088
        %v2109 = vmul.f32 %v2089, %v2089
        %v2110 = vmul.f32 %v2090, %v2090
        %v2111 = vmul.f32 %v2091, %v2091
        %v2112 = vmul.f32 %v2092, %v2092
        %v2113 = vmul.f32 %v2093, %v2093
        %v2114 = vmul.f32 %v2094, %v2094
        %v2115 = vmul.f32 %v2095, %v2095
        %v2116 = vmul.f32 %v2096, %v2096
        %v2117 = vmul.f32 %v2097, %v2097
        %v2118 = vmul.f32 %v2098, %v2098
        %v2119 = vmul.f32 %v2099, %v2099
        %v2120 = vmul.f32 %v1923, %v2100
        %v2121 = vmul.f32 %v1923, %v2101
        %v2122 = vmul.f32 %v1927, %v2102
        %v2123 = vmul.f32 %v1927, %v2103
        %v2124 = vmul.f32 %v1931, %v2104
        %v2125 = vmul.f32 %v1931, %v2105
        %v2126 = vmul.f32 %v1935, %v2106
        %v2127 = vmul.f32 %v1935, %v2107
        %v2128 = vmul.f32 %v1939, %v2108
        %v2129 = vmul.f32 %v1939, %v2109
        %v2130 = vmul.f32 %v1943, %v2110
        %v2131 = vmul.f32 %v1943, %v2111
        %v2132 = vmul.f32 %v1947, %v2112
        %v2133 = vmul.f32 %v1947, %v2113
        %v2134 = vmul.f32 %v1951, %v2114
        %v2135 = vmul.f32 %v1951, %v2115
        %v2136 = vmul.f32 %v1955, %v2116
        %v2137 = vmul.f32 %v1955, %v2117
        %v2138 = vmul.f32 %v1959, %v2118
        %v2139 = vmul.f32 %v1959, %v2119
        %2140 = vadd.xlane.f32.xlu0 %v2120
        %v2141 = vpop.xlane.xlu0 %2140
        %2142 = vadd.xlane.f32.xlu0 %v2121
        %v2143 = vpop.xlane.xlu0 %2142
        %2144 = vadd.xlane.f32.xlu0 %v2122
        %v2145 = vpop.xlane.xlu0 %2144
        %2146 = vadd.xlane.f32.xlu0 %v2123
        %v2147 = vpop.xlane.xlu0 %2146
        %2148 = vadd.xlane.f32.xlu0 %v2124
        %v2149 = vpop.xlane.xlu0 %2148
        %2150 = vadd.xlane.f32.xlu0 %v2125
        %v2151 = vpop.xlane.xlu0 %2150
        %2152 = vadd.xlane.f32.xlu0 %v2126
        %v2153 = vpop.xlane.xlu0 %2152
        %2154 = vadd.xlane.f32.xlu0 %v2127
        %v2155 = vpop.xlane.xlu0 %2154
        %2156 = vadd.xlane.f32.xlu0 %v2128
        %v2157 = vpop.xlane.xlu0 %2156
        %2158 = vadd.xlane.f32.xlu0 %v2129
        %v2159 = vpop.xlane.xlu0 %2158
        %2160 = vadd.xlane.f32.xlu0 %v2130
        %v2161 = vpop.xlane.xlu0 %2160
        %2162 = vadd.xlane.f32.xlu0 %v2131
        %v2163 = vpop.xlane.xlu0 %2162
        %2164 = vadd.xlane.f32.xlu0 %v2132
        %v2165 = vpop.xlane.xlu0 %2164
        %2166 = vadd.xlane.f32.xlu0 %v2133
        %v2167 = vpop.xlane.xlu0 %2166
        %2168 = vadd.xlane.f32.xlu0 %v2134
        %v2169 = vpop.xlane.xlu0 %2168
        %2170 = vadd.xlane.f32.xlu0 %v2135
        %v2171 = vpop.xlane.xlu0 %2170
        %2172 = vadd.xlane.f32.xlu0 %v2136
        %v2173 = vpop.xlane.xlu0 %2172
        %2174 = vadd.xlane.f32.xlu0 %v2137
        %v2175 = vpop.xlane.xlu0 %2174
        %2176 = vadd.xlane.f32.xlu0 %v2138
        %v2177 = vpop.xlane.xlu0 %2176
        %2178 = vadd.xlane.f32.xlu0 %v2139
        %v2179 = vpop.xlane.xlu0 %2178
        %v2180 = vmul.f32 %v2141, %v2023
        %v2181 = vmul.f32 %v2143, %v2023
        %v2182 = vmul.f32 %v2145, %v2027
        %v2183 = vmul.f32 %v2147, %v2027
        %v2184 = vmul.f32 %v2149, %v2031
        %v2185 = vmul.f32 %v2151, %v2031
        %v2186 = vmul.f32 %v2153, %v2035
        %v2187 = vmul.f32 %v2155, %v2035
        %v2188 = vmul.f32 %v2157, %v2039
        %v2189 = vmul.f32 %v2159, %v2039
        %v2190 = vmul.f32 %v2161, %v2043
        %v2191 = vmul.f32 %v2163, %v2043
        %v2192 = vmul.f32 %v2165, %v2047
        %v2193 = vmul.f32 %v2167, %v2047
        %v2194 = vmul.f32 %v2169, %v2051
        %v2195 = vmul.f32 %v2171, %v2051
        %v2196 = vmul.f32 %v2173, %v2055
        %v2197 = vmul.f32 %v2175, %v2055
        %v2198 = vmul.f32 %v2177, %v2059
        %v2199 = vmul.f32 %v2179, %v2059
        %v2200 = vadd.f32 %v2180, 1e-06
        %v2201 = vadd.f32 %v2181, 1e-06
        %v2202 = vadd.f32 %v2182, 1e-06
        %v2203 = vadd.f32 %v2183, 1e-06
        %v2204 = vadd.f32 %v2184, 1e-06
        %v2205 = vadd.f32 %v2185, 1e-06
        %v2206 = vadd.f32 %v2186, 1e-06
        %v2207 = vadd.f32 %v2187, 1e-06
        %v2208 = vadd.f32 %v2188, 1e-06
        %v2209 = vadd.f32 %v2189, 1e-06
        %v2210 = vadd.f32 %v2190, 1e-06
        %v2211 = vadd.f32 %v2191, 1e-06
        %v2212 = vadd.f32 %v2192, 1e-06
        %v2213 = vadd.f32 %v2193, 1e-06
        %v2214 = vadd.f32 %v2194, 1e-06
        %v2215 = vadd.f32 %v2195, 1e-06
        %v2216 = vadd.f32 %v2196, 1e-06
        %v2217 = vadd.f32 %v2197, 1e-06
        %v2218 = vadd.f32 %v2198, 1e-06
        %v2219 = vadd.f32 %v2199, 1e-06
        %v2220 = vlog2.pop %v2200
        %v2221 = vmul.f32 %v2220, 0.6931472
        %v2222 = vlog2.pop %v2201
        %v2223 = vmul.f32 %v2222, 0.6931472
        %v2224 = vlog2.pop %v2202
        %v2225 = vmul.f32 %v2224, 0.6931472
        %v2226 = vlog2.pop %v2203
        %v2227 = vmul.f32 %v2226, 0.6931472
        %v2228 = vlog2.pop %v2204
        %v2229 = vmul.f32 %v2228, 0.6931472
        %v2230 = vlog2.pop %v2205
        %v2231 = vmul.f32 %v2230, 0.6931472
        %v2232 = vlog2.pop %v2206
        %v2233 = vmul.f32 %v2232, 0.6931472
        %v2234 = vlog2.pop %v2207
        %v2235 = vmul.f32 %v2234, 0.6931472
        %v2236 = vlog2.pop %v2208
        %v2237 = vmul.f32 %v2236, 0.6931472
        %v2238 = vlog2.pop %v2209
        %v2239 = vmul.f32 %v2238, 0.6931472
        %v2240 = vlog2.pop %v2210
        %v2241 = vmul.f32 %v2240, 0.6931472
        %v2242 = vlog2.pop %v2211
        %v2243 = vmul.f32 %v2242, 0.6931472
        %v2244 = vlog2.pop %v2212
        %v2245 = vmul.f32 %v2244, 0.6931472
        %v2246 = vlog2.pop %v2213
        %v2247 = vmul.f32 %v2246, 0.6931472
        %v2248 = vlog2.pop %v2214
        %v2249 = vmul.f32 %v2248, 0.6931472
        %v2250 = vlog2.pop %v2215
        %v2251 = vmul.f32 %v2250, 0.6931472
        %v2252 = vlog2.pop %v2216
        %v2253 = vmul.f32 %v2252, 0.6931472
        %v2254 = vlog2.pop %v2217
        %v2255 = vmul.f32 %v2254, 0.6931472
        %v2256 = vlog2.pop %v2218
        %v2257 = vmul.f32 %v2256, 0.6931472
        %v2258 = vlog2.pop %v2219
        %v2259 = vmul.f32 %v2258, 0.6931472
        %v2260 = vmul.f32 %v2221, 0.5
        %v2261 = vmul.f32 %v2223, 0.5
        %v2262 = vmul.f32 %v2225, 0.5
        %v2263 = vmul.f32 %v2227, 0.5
        %v2264 = vmul.f32 %v2229, 0.5
        %v2265 = vmul.f32 %v2231, 0.5
        %v2266 = vmul.f32 %v2233, 0.5
        %v2267 = vmul.f32 %v2235, 0.5
        %v2268 = vmul.f32 %v2237, 0.5
        %v2269 = vmul.f32 %v2239, 0.5
        %v2270 = vmul.f32 %v2241, 0.5
        %v2271 = vmul.f32 %v2243, 0.5
        %v2272 = vmul.f32 %v2245, 0.5
        %v2273 = vmul.f32 %v2247, 0.5
        %v2274 = vmul.f32 %v2249, 0.5
        %v2275 = vmul.f32 %v2251, 0.5
        %v2276 = vmul.f32 %v2253, 0.5
        %v2277 = vmul.f32 %v2255, 0.5
        %v2278 = vmul.f32 %v2257, 0.5
        %v2279 = vmul.f32 %v2259, 0.5
        %v2280 = vadd.f32 %v1212, %v2260
        %v2281 = vadd.f32 %v1212, %v2261
        %v2282 = vadd.f32 %v1216, %v2262
        %v2283 = vadd.f32 %v1216, %v2263
        %v2284 = vadd.f32 %v1220, %v2264
        %v2285 = vadd.f32 %v1220, %v2265
        %v2286 = vadd.f32 %v1224, %v2266
        %v2287 = vadd.f32 %v1224, %v2267
        %v2288 = vadd.f32 %v1228, %v2268
        %v2289 = vadd.f32 %v1228, %v2269
        %v2290 = vadd.f32 %v1232, %v2270
        %v2291 = vadd.f32 %v1232, %v2271
        %v2292 = vadd.f32 %v1236, %v2272
        %v2293 = vadd.f32 %v1236, %v2273
        %v2294 = vadd.f32 %v1240, %v2274
        %v2295 = vadd.f32 %v1240, %v2275
        %v2296 = vadd.f32 %v1244, %v2276
        %v2297 = vadd.f32 %v1244, %v2277
        %v2298 = vadd.f32 %v1248, %v2278
        %v2299 = vadd.f32 %v1248, %v2279
        %v2300 = vsel %vm1279, %v2280, 0.0
        %v2301 = vsel %vm1279, %v2281, 0.0
        %v2302 = vadd.f32 %v2300, %v2301
        %v2303 = vrot.slane %v2302, 4
        %v2304 = vadd.f32 %v2302, %v2303
        %v2305 = vrot.slane %v2304, 2
        %v2306 = vadd.f32 %v2304, %v2305
        %v2307 = vrot.slane %v2306, 1
        %v2308 = vadd.f32 %v2306, %v2307
        %v2309 = vsel %vm1279, %v2282, 0.0
        %v2310 = vsel %vm1279, %v2283, 0.0
        %v2311 = vadd.f32 %v2309, %v2310
        %v2312 = vrot.slane %v2311, 4
        %v2313 = vadd.f32 %v2311, %v2312
        %v2314 = vrot.slane %v2313, 2
        %v2315 = vadd.f32 %v2313, %v2314
        %v2316 = vrot.slane %v2315, 1
        %v2317 = vadd.f32 %v2315, %v2316
        %v2318 = vsel %vm1279, %v2284, 0.0
        %v2319 = vsel %vm1279, %v2285, 0.0
        %v2320 = vadd.f32 %v2318, %v2319
        %v2321 = vrot.slane %v2320, 4
        %v2322 = vadd.f32 %v2320, %v2321
        %v2323 = vrot.slane %v2322, 2
        %v2324 = vadd.f32 %v2322, %v2323
        %v2325 = vrot.slane %v2324, 1
        %v2326 = vadd.f32 %v2324, %v2325
        %v2327 = vsel %vm1279, %v2286, 0.0
        %v2328 = vsel %vm1279, %v2287, 0.0
        %v2329 = vadd.f32 %v2327, %v2328
        %v2330 = vrot.slane %v2329, 4
        %v2331 = vadd.f32 %v2329, %v2330
        %v2332 = vrot.slane %v2331, 2
        %v2333 = vadd.f32 %v2331, %v2332
        %v2334 = vrot.slane %v2333, 1
        %v2335 = vadd.f32 %v2333, %v2334
        %v2336 = vsel %vm1279, %v2288, 0.0
        %v2337 = vsel %vm1279, %v2289, 0.0
        %v2338 = vadd.f32 %v2336, %v2337
        %v2339 = vrot.slane %v2338, 4
        %v2340 = vadd.f32 %v2338, %v2339
        %v2341 = vrot.slane %v2340, 2
        %v2342 = vadd.f32 %v2340, %v2341
        %v2343 = vrot.slane %v2342, 1
        %v2344 = vadd.f32 %v2342, %v2343
        %v2345 = vsel %vm1279, %v2290, 0.0
        %v2346 = vsel %vm1279, %v2291, 0.0
        %v2347 = vadd.f32 %v2345, %v2346
        %v2348 = vrot.slane %v2347, 4
        %v2349 = vadd.f32 %v2347, %v2348
        %v2350 = vrot.slane %v2349, 2
        %v2351 = vadd.f32 %v2349, %v2350
        %v2352 = vrot.slane %v2351, 1
        %v2353 = vadd.f32 %v2351, %v2352
        %v2354 = vsel %vm1279, %v2292, 0.0
        %v2355 = vsel %vm1279, %v2293, 0.0
        %v2356 = vadd.f32 %v2354, %v2355
        %v2357 = vrot.slane %v2356, 4
        %v2358 = vadd.f32 %v2356, %v2357
        %v2359 = vrot.slane %v2358, 2
        %v2360 = vadd.f32 %v2358, %v2359
        %v2361 = vrot.slane %v2360, 1
        %v2362 = vadd.f32 %v2360, %v2361
        %v2363 = vsel %vm1279, %v2294, 0.0
        %v2364 = vsel %vm1279, %v2295, 0.0
        %v2365 = vadd.f32 %v2363, %v2364
        %v2366 = vrot.slane %v2365, 4
        %v2367 = vadd.f32 %v2365, %v2366
        %v2368 = vrot.slane %v2367, 2
        %v2369 = vadd.f32 %v2367, %v2368
        %v2370 = vrot.slane %v2369, 1
        %v2371 = vadd.f32 %v2369, %v2370
        %v2372 = vsel %vm1279, %v2296, 0.0
        %v2373 = vsel %vm1279, %v2297, 0.0
        %v2374 = vadd.f32 %v2372, %v2373
        %v2375 = vrot.slane %v2374, 4
        %v2376 = vadd.f32 %v2374, %v2375
        %v2377 = vrot.slane %v2376, 2
        %v2378 = vadd.f32 %v2376, %v2377
        %v2379 = vrot.slane %v2378, 1
        %v2380 = vadd.f32 %v2378, %v2379
        %v2381 = vsel %vm1279, %v2298, 0.0
        %v2382 = vsel %vm1279, %v2299, 0.0
        %v2383 = vadd.f32 %v2381, %v2382
        %v2384 = vrot.slane %v2383, 4
        %v2385 = vadd.f32 %v2383, %v2384
        %v2386 = vrot.slane %v2385, 2
        %v2387 = vadd.f32 %v2385, %v2386
        %v2388 = vrot.slane %v2387, 1
        %v2389 = vadd.f32 %v2387, %v2388
        %v2390 = vmul.f32 %v1900, %v2308
        %v2391 = vmul.f32 %v1901, %v2317
        %v2392 = vmul.f32 %v1902, %v2326
        %v2393 = vmul.f32 %v1903, %v2335
        %v2394 = vmul.f32 %v1904, %v2344
        %v2395 = vmul.f32 %v1905, %v2353
        %v2396 = vmul.f32 %v1906, %v2362
        %v2397 = vmul.f32 %v1907, %v2371
        %v2398 = vmul.f32 %v1908, %v2380
        %v2399 = vmul.f32 %v1909, %v2389
        %v2400 = vsub.f32 %v325, %v2390
        %v2401 = vsub.f32 %v326, %v2391
        %v2402 = vsub.f32 %v327, %v2392
        %v2403 = vsub.f32 %v328, %v2393
        %v2404 = vsub.f32 %v329, %v2394
        %v2405 = vsub.f32 %v330, %v2395
        %v2406 = vsub.f32 %v331, %v2396
        %v2407 = vsub.f32 %v332, %v2397
        %v2408 = vsub.f32 %v333, %v2398
        %v2409 = vsub.f32 %v334, %v2399
        %v2410 = vmul.f32 %v2400, 0.000975
        %v2411 = vmul.f32 %v2401, 0.000975
        %v2412 = vmul.f32 %v2402, 0.000975
        %v2413 = vmul.f32 %v2403, 0.000975
        %v2414 = vmul.f32 %v2404, 0.000975
        %v2415 = vmul.f32 %v2405, 0.000975
        %v2416 = vmul.f32 %v2406, 0.000975
        %v2417 = vmul.f32 %v2407, 0.000975
        %v2418 = vmul.f32 %v2408, 0.000975
        %v2419 = vmul.f32 %v2409, 0.000975
        %v2420 = vxor.u32 %v2410, 2147483648
        %v2421 = vxor.u32 %v2411, 2147483648
        %v2422 = vxor.u32 %v2412, 2147483648
        %v2423 = vxor.u32 %v2413, 2147483648
        %v2424 = vxor.u32 %v2414, 2147483648
        %v2425 = vxor.u32 %v2415, 2147483648
        %v2426 = vxor.u32 %v2416, 2147483648
        %v2427 = vxor.u32 %v2417, 2147483648
        %v2428 = vxor.u32 %v2418, 2147483648
        %v2429 = vxor.u32 %v2419, 2147483648
        %v2430 = vmul.f32 %v2420, 1.442695
        %v2431 = vpow.pop %v2430
        %v2432 = vmul.f32 %v2421, 1.442695
        %v2433 = vpow.pop %v2432
        %v2434 = vmul.f32 %v2422, 1.442695
        %v2435 = vpow.pop %v2434
        %v2436 = vmul.f32 %v2423, 1.442695
        %v2437 = vpow.pop %v2436
        %v2438 = vmul.f32 %v2424, 1.442695
        %v2439 = vpow.pop %v2438
        %v2440 = vmul.f32 %v2425, 1.442695
        %v2441 = vpow.pop %v2440
        %v2442 = vmul.f32 %v2426, 1.442695
        %v2443 = vpow.pop %v2442
        %v2444 = vmul.f32 %v2427, 1.442695
        %v2445 = vpow.pop %v2444
        %v2446 = vmul.f32 %v2428, 1.442695
        %v2447 = vpow.pop %v2446
        %v2448 = vmul.f32 %v2429, 1.442695
        %v2449 = vpow.pop %v2448
        %v2450 = vadd.f32 %v2431, 1.0
        %v2451 = vadd.f32 %v2433, 1.0
        %v2452 = vadd.f32 %v2435, 1.0
        %v2453 = vadd.f32 %v2437, 1.0
        %v2454 = vadd.f32 %v2439, 1.0
        %v2455 = vadd.f32 %v2441, 1.0
        %v2456 = vadd.f32 %v2443, 1.0
        %v2457 = vadd.f32 %v2445, 1.0
        %v2458 = vadd.f32 %v2447, 1.0
        %v2459 = vadd.f32 %v2449, 1.0
        %v2460 = vrcp.pop %v2450
        %v2461 = vmul.f32 1.0, %v2460
        %v2462 = vrcp.pop %v2451
        %v2463 = vmul.f32 1.0, %v2462
        %v2464 = vrcp.pop %v2452
        %v2465 = vmul.f32 1.0, %v2464
        %v2466 = vrcp.pop %v2453
        %v2467 = vmul.f32 1.0, %v2466
        %v2468 = vrcp.pop %v2454
        %v2469 = vmul.f32 1.0, %v2468
        %v2470 = vrcp.pop %v2455
        %v2471 = vmul.f32 1.0, %v2470
        %v2472 = vrcp.pop %v2456
        %v2473 = vmul.f32 1.0, %v2472
        %v2474 = vrcp.pop %v2457
        %v2475 = vmul.f32 1.0, %v2474
        %v2476 = vrcp.pop %v2458
        %v2477 = vmul.f32 1.0, %v2476
        %v2478 = vrcp.pop %v2459
        %v2479 = vmul.f32 1.0, %v2478
        %v2480 = vrcp.pop %v2200
        %v2481 = vrcp.pop %v2201
        %v2482 = vrcp.pop %v2202
        %v2483 = vrcp.pop %v2203
        %v2484 = vrcp.pop %v2204
        %v2485 = vrcp.pop %v2205
        %v2486 = vrcp.pop %v2206
        %v2487 = vrcp.pop %v2207
        %v2488 = vrcp.pop %v2208
        %v2489 = vrcp.pop %v2209
        %v2490 = vrcp.pop %v2210
        %v2491 = vrcp.pop %v2211
        %v2492 = vrcp.pop %v2212
        %v2493 = vrcp.pop %v2213
        %v2494 = vrcp.pop %v2214
        %v2495 = vrcp.pop %v2215
        %v2496 = vrcp.pop %v2216
        %v2497 = vrcp.pop %v2217
        %v2498 = vrcp.pop %v2218
        %v2499 = vrcp.pop %v2219
        %v2500 = vmul.f32 %v2100, %v2480
        %v2501 = vmul.f32 %v2101, %v2481
        %v2502 = vmul.f32 %v2102, %v2482
        %v2503 = vmul.f32 %v2103, %v2483
        %v2504 = vmul.f32 %v2104, %v2484
        %v2505 = vmul.f32 %v2105, %v2485
        %v2506 = vmul.f32 %v2106, %v2486
        %v2507 = vmul.f32 %v2107, %v2487
        %v2508 = vmul.f32 %v2108, %v2488
        %v2509 = vmul.f32 %v2109, %v2489
        %v2510 = vmul.f32 %v2110, %v2490
        %v2511 = vmul.f32 %v2111, %v2491
        %v2512 = vmul.f32 %v2112, %v2492
        %v2513 = vmul.f32 %v2113, %v2493
        %v2514 = vmul.f32 %v2114, %v2494
        %v2515 = vmul.f32 %v2115, %v2495
        %v2516 = vmul.f32 %v2116, %v2496
        %v2517 = vmul.f32 %v2117, %v2497
        %v2518 = vmul.f32 %v2118, %v2498
        %v2519 = vmul.f32 %v2119, %v2499
        %v2520 = vadd.f32 %v2500, %v2501
        %v2521 = vrot.slane %v2520, 4
        %v2522 = vadd.f32 %v2520, %v2521
        %v2523 = vrot.slane %v2522, 2
        %v2524 = vadd.f32 %v2522, %v2523
        %v2525 = vrot.slane %v2524, 1
        %v2526 = vadd.f32 %v2524, %v2525
        %v2527 = vadd.f32 %v2502, %v2503
        %v2528 = vrot.slane %v2527, 4
        %v2529 = vadd.f32 %v2527, %v2528
        %v2530 = vrot.slane %v2529, 2
        %v2531 = vadd.f32 %v2529, %v2530
        %v2532 = vrot.slane %v2531, 1
        %v2533 = vadd.f32 %v2531, %v2532
        %v2534 = vadd.f32 %v2504, %v2505
        %v2535 = vrot.slane %v2534, 4
        %v2536 = vadd.f32 %v2534, %v2535
        %v2537 = vrot.slane %v2536, 2
        %v2538 = vadd.f32 %v2536, %v2537
        %v2539 = vrot.slane %v2538, 1
        %v2540 = vadd.f32 %v2538, %v2539
        %v2541 = vadd.f32 %v2506, %v2507
        %v2542 = vrot.slane %v2541, 4
        %v2543 = vadd.f32 %v2541, %v2542
        %v2544 = vrot.slane %v2543, 2
        %v2545 = vadd.f32 %v2543, %v2544
        %v2546 = vrot.slane %v2545, 1
        %v2547 = vadd.f32 %v2545, %v2546
        %v2548 = vadd.f32 %v2508, %v2509
        %v2549 = vrot.slane %v2548, 4
        %v2550 = vadd.f32 %v2548, %v2549
        %v2551 = vrot.slane %v2550, 2
        %v2552 = vadd.f32 %v2550, %v2551
        %v2553 = vrot.slane %v2552, 1
        %v2554 = vadd.f32 %v2552, %v2553
        %v2555 = vadd.f32 %v2510, %v2511
        %v2556 = vrot.slane %v2555, 4
        %v2557 = vadd.f32 %v2555, %v2556
        %v2558 = vrot.slane %v2557, 2
        %v2559 = vadd.f32 %v2557, %v2558
        %v2560 = vrot.slane %v2559, 1
        %v2561 = vadd.f32 %v2559, %v2560
        %v2562 = vadd.f32 %v2512, %v2513
        %v2563 = vrot.slane %v2562, 4
        %v2564 = vadd.f32 %v2562, %v2563
        %v2565 = vrot.slane %v2564, 2
        %v2566 = vadd.f32 %v2564, %v2565
        %v2567 = vrot.slane %v2566, 1
        %v2568 = vadd.f32 %v2566, %v2567
        %v2569 = vadd.f32 %v2514, %v2515
        %v2570 = vrot.slane %v2569, 4
        %v2571 = vadd.f32 %v2569, %v2570
        %v2572 = vrot.slane %v2571, 2
        %v2573 = vadd.f32 %v2571, %v2572
        %v2574 = vrot.slane %v2573, 1
        %v2575 = vadd.f32 %v2573, %v2574
        %v2576 = vadd.f32 %v2516, %v2517
        %v2577 = vrot.slane %v2576, 4
        %v2578 = vadd.f32 %v2576, %v2577
        %v2579 = vrot.slane %v2578, 2
        %v2580 = vadd.f32 %v2578, %v2579
        %v2581 = vrot.slane %v2580, 1
        %v2582 = vadd.f32 %v2580, %v2581
        %v2583 = vadd.f32 %v2518, %v2519
        %v2584 = vrot.slane %v2583, 4
        %v2585 = vadd.f32 %v2583, %v2584
        %v2586 = vrot.slane %v2585, 2
        %v2587 = vadd.f32 %v2585, %v2586
        %v2588 = vrot.slane %v2587, 1
        %v2589 = vadd.f32 %v2587, %v2588
        %v2590 = vadd.f32 %v2221, %v2223
        %v2591 = vrot.slane %v2590, 4
        %v2592 = vadd.f32 %v2590, %v2591
        %v2593 = vrot.slane %v2592, 2
        %v2594 = vadd.f32 %v2592, %v2593
        %v2595 = vrot.slane %v2594, 1
        %v2596 = vadd.f32 %v2594, %v2595
        %v2597 = vadd.f32 %v2225, %v2227
        %v2598 = vrot.slane %v2597, 4
        %v2599 = vadd.f32 %v2597, %v2598
        %v2600 = vrot.slane %v2599, 2
        %v2601 = vadd.f32 %v2599, %v2600
        %v2602 = vrot.slane %v2601, 1
        %v2603 = vadd.f32 %v2601, %v2602
        %v2604 = vadd.f32 %v2229, %v2231
        %v2605 = vrot.slane %v2604, 4
        %v2606 = vadd.f32 %v2604, %v2605
        %v2607 = vrot.slane %v2606, 2
        %v2608 = vadd.f32 %v2606, %v2607
        %v2609 = vrot.slane %v2608, 1
        %v2610 = vadd.f32 %v2608, %v2609
        %v2611 = vadd.f32 %v2233, %v2235
        %v2612 = vrot.slane %v2611, 4
        %v2613 = vadd.f32 %v2611, %v2612
        %v2614 = vrot.slane %v2613, 2
        %v2615 = vadd.f32 %v2613, %v2614
        %v2616 = vrot.slane %v2615, 1
        %v2617 = vadd.f32 %v2615, %v2616
        %v2618 = vadd.f32 %v2237, %v2239
        %v2619 = vrot.slane %v2618, 4
        %v2620 = vadd.f32 %v2618, %v2619
        %v2621 = vrot.slane %v2620, 2
        %v2622 = vadd.f32 %v2620, %v2621
        %v2623 = vrot.slane %v2622, 1
        %v2624 = vadd.f32 %v2622, %v2623
        %v2625 = vadd.f32 %v2241, %v2243
        %v2626 = vrot.slane %v2625, 4
        %v2627 = vadd.f32 %v2625, %v2626
        %v2628 = vrot.slane %v2627, 2
        %v2629 = vadd.f32 %v2627, %v2628
        %v2630 = vrot.slane %v2629, 1
        %v2631 = vadd.f32 %v2629, %v2630
        %v2632 = vadd.f32 %v2245, %v2247
        %v2633 = vrot.slane %v2632, 4
        %v2634 = vadd.f32 %v2632, %v2633
        %v2635 = vrot.slane %v2634, 2
        %v2636 = vadd.f32 %v2634, %v2635
        %v2637 = vrot.slane %v2636, 1
        %v2638 = vadd.f32 %v2636, %v2637
        %v2639 = vadd.f32 %v2249, %v2251
        %v2640 = vrot.slane %v2639, 4
        %v2641 = vadd.f32 %v2639, %v2640
        %v2642 = vrot.slane %v2641, 2
        %v2643 = vadd.f32 %v2641, %v2642
        %v2644 = vrot.slane %v2643, 1
        %v2645 = vadd.f32 %v2643, %v2644
        %v2646 = vadd.f32 %v2253, %v2255
        %v2647 = vrot.slane %v2646, 4
        %v2648 = vadd.f32 %v2646, %v2647
        %v2649 = vrot.slane %v2648, 2
        %v2650 = vadd.f32 %v2648, %v2649
        %v2651 = vrot.slane %v2650, 1
        %v2652 = vadd.f32 %v2650, %v2651
        %v2653 = vadd.f32 %v2257, %v2259
        %v2654 = vrot.slane %v2653, 4
        %v2655 = vadd.f32 %v2653, %v2654
        %v2656 = vrot.slane %v2655, 2
        %v2657 = vadd.f32 %v2655, %v2656
        %v2658 = vrot.slane %v2657, 1
        %v2659 = vadd.f32 %v2657, %v2658
        %v2660 = vadd.f32 %v2526, %v2596
        %v2661 = vadd.f32 %v2533, %v2603
        %v2662 = vadd.f32 %v2540, %v2610
        %v2663 = vadd.f32 %v2547, %v2617
        %v2664 = vadd.f32 %v2554, %v2624
        %v2665 = vadd.f32 %v2561, %v2631
        %v2666 = vadd.f32 %v2568, %v2638
        %v2667 = vadd.f32 %v2575, %v2645
        %v2668 = vadd.f32 %v2582, %v2652
        %v2669 = vadd.f32 %v2589, %v2659
        %v2670 = vadd.f32 %v2660, 29.406033
        %v2671 = vadd.f32 %v2661, 29.406033
        %v2672 = vadd.f32 %v2662, 29.406033
        %v2673 = vadd.f32 %v2663, 29.406033
        %v2674 = vadd.f32 %v2664, 29.406033
        %v2675 = vadd.f32 %v2665, 29.406033
        %v2676 = vadd.f32 %v2666, 29.406033
        %v2677 = vadd.f32 %v2667, 29.406033
        %v2678 = vadd.f32 %v2668, 29.406033
        %v2679 = vadd.f32 %v2669, 29.406033
        %v2680 = vmul.f32 %v2670, -0.5
        %v2681 = vmul.f32 %v2671, -0.5
        %v2682 = vmul.f32 %v2672, -0.5
        %v2683 = vmul.f32 %v2673, -0.5
        %v2684 = vmul.f32 %v2674, -0.5
        %v2685 = vmul.f32 %v2675, -0.5
        %v2686 = vmul.f32 %v2676, -0.5
        %v2687 = vmul.f32 %v2677, -0.5
        %v2688 = vmul.f32 %v2678, -0.5
        %v2689 = vmul.f32 %v2679, -0.5
        %v2690 = vadd.f32 %v2461, 1e-06
        %v2691 = vadd.f32 %v2463, 1e-06
        %v2692 = vadd.f32 %v2465, 1e-06
        %v2693 = vadd.f32 %v2467, 1e-06
        %v2694 = vadd.f32 %v2469, 1e-06
        %v2695 = vadd.f32 %v2471, 1e-06
        %v2696 = vadd.f32 %v2473, 1e-06
        %v2697 = vadd.f32 %v2475, 1e-06
        %v2698 = vadd.f32 %v2477, 1e-06
        %v2699 = vadd.f32 %v2479, 1e-06
        %v2700 = vlog2.pop %v2690
        %v2701 = vmul.f32 %v2700, 0.6931472
        %v2702 = vlog2.pop %v2691
        %v2703 = vmul.f32 %v2702, 0.6931472
        %v2704 = vlog2.pop %v2692
        %v2705 = vmul.f32 %v2704, 0.6931472
        %v2706 = vlog2.pop %v2693
        %v2707 = vmul.f32 %v2706, 0.6931472
        %v2708 = vlog2.pop %v2694
        %v2709 = vmul.f32 %v2708, 0.6931472
        %v2710 = vlog2.pop %v2695
        %v2711 = vmul.f32 %v2710, 0.6931472
        %v2712 = vlog2.pop %v2696
        %v2713 = vmul.f32 %v2712, 0.6931472
        %v2714 = vlog2.pop %v2697
        %v2715 = vmul.f32 %v2714, 0.6931472
        %v2716 = vlog2.pop %v2698
        %v2717 = vmul.f32 %v2716, 0.6931472
        %v2718 = vlog2.pop %v2699
        %v2719 = vmul.f32 %v2718, 0.6931472
        %2721 = vset.pattern.permute.xlu0 0
        %2722 = vperm.xlu0 %2721, %v2701
        %v2723 = vpop.permute.xlu0 %2722
        %v2725 = vlaneseq
        %v2726 = vshrl.u32 %v2725, 7
        %v2727 = vsub.s32 0, %v2726
        %v2728 = vrot.slane %v2723, %v2727
        %2730 = vset.pattern.permute.xlu0 0
        %2731 = vperm.xlu0 %2730, %v2703
        %v2732 = vpop.permute.xlu0 %2731
        %v2734 = vlaneseq
        %v2735 = vshrl.u32 %v2734, 7
        %v2736 = vsub.s32 0, %v2735
        %v2737 = vrot.slane %v2732, %v2736
        %2739 = vset.pattern.permute.xlu0 0
        %2740 = vperm.xlu0 %2739, %v2705
        %v2741 = vpop.permute.xlu0 %2740
        %v2743 = vlaneseq
        %v2744 = vshrl.u32 %v2743, 7
        %v2745 = vsub.s32 0, %v2744
        %v2746 = vrot.slane %v2741, %v2745
        %2748 = vset.pattern.permute.xlu0 0
        %2749 = vperm.xlu0 %2748, %v2707
        %v2750 = vpop.permute.xlu0 %2749
        %v2752 = vlaneseq
        %v2753 = vshrl.u32 %v2752, 7
        %v2754 = vsub.s32 0, %v2753
        %v2755 = vrot.slane %v2750, %v2754
        %2757 = vset.pattern.permute.xlu0 0
        %2758 = vperm.xlu0 %2757, %v2709
        %v2759 = vpop.permute.xlu0 %2758
        %v2761 = vlaneseq
        %v2762 = vshrl.u32 %v2761, 7
        %v2763 = vsub.s32 0, %v2762
        %v2764 = vrot.slane %v2759, %v2763
        %2766 = vset.pattern.permute.xlu0 0
        %2767 = vperm.xlu0 %2766, %v2711
        %v2768 = vpop.permute.xlu0 %2767
        %v2770 = vlaneseq
        %v2771 = vshrl.u32 %v2770, 7
        %v2772 = vsub.s32 0, %v2771
        %v2773 = vrot.slane %v2768, %v2772
        %2775 = vset.pattern.permute.xlu0 0
        %2776 = vperm.xlu0 %2775, %v2713
        %v2777 = vpop.permute.xlu0 %2776
        %v2779 = vlaneseq
        %v2780 = vshrl.u32 %v2779, 7
        %v2781 = vsub.s32 0, %v2780
        %v2782 = vrot.slane %v2777, %v2781
        %2784 = vset.pattern.permute.xlu0 0
        %2785 = vperm.xlu0 %2784, %v2715
        %v2786 = vpop.permute.xlu0 %2785
        %v2788 = vlaneseq
        %v2789 = vshrl.u32 %v2788, 7
        %v2790 = vsub.s32 0, %v2789
        %v2791 = vrot.slane %v2786, %v2790
        %2793 = vset.pattern.permute.xlu0 0
        %2794 = vperm.xlu0 %2793, %v2717
        %v2795 = vpop.permute.xlu0 %2794
        %v2797 = vlaneseq
        %v2798 = vshrl.u32 %v2797, 7
        %v2799 = vsub.s32 0, %v2798
        %v2800 = vrot.slane %v2795, %v2799
        %2802 = vset.pattern.permute.xlu0 0
        %2803 = vperm.xlu0 %2802, %v2719
        %v2804 = vpop.permute.xlu0 %2803
        %v2806 = vlaneseq
        %v2807 = vshrl.u32 %v2806, 7
        %v2808 = vsub.s32 0, %v2807
        %v2809 = vrot.slane %v2804, %v2808
        %v2810 = vadd.f32 %v2728, %v2680
        %v2811 = vadd.f32 %v2737, %v2681
        %v2812 = vadd.f32 %v2746, %v2682
        %v2813 = vadd.f32 %v2755, %v2683
        %v2814 = vadd.f32 %v2764, %v2684
        %v2815 = vadd.f32 %v2773, %v2685
        %v2816 = vadd.f32 %v2782, %v2686
        %v2817 = vadd.f32 %v2791, %v2687
        %v2818 = vadd.f32 %v2800, %v2688
        %v2819 = vadd.f32 %v2809, %v2689
        %v2820 = vmax.f32 %v2810, %v2814
        %v2821 = vmax.f32 %v2811, %v2815
        %v2822 = vmax.f32 %v2812, %v2816
        %v2823 = vmax.f32 %v2813, %v2817
        %v2824 = vmax.f32 %v2820, %v2818
        %v2825 = vmax.f32 %v2821, %v2819
        %v2826 = vmax.f32 %v2824, %v2825
        %v2827 = vmax.f32 %v2822, %v2823
        %v2828 = vmax.f32 %v2826, %v2827
        %v2829 = vsub.f32 %v2810, %v2828
        %v2830 = vsub.f32 %v2811, %v2828
        %v2831 = vsub.f32 %v2812, %v2828
        %v2832 = vsub.f32 %v2813, %v2828
        %v2833 = vsub.f32 %v2814, %v2828
        %v2834 = vsub.f32 %v2815, %v2828
        %v2835 = vsub.f32 %v2816, %v2828
        %v2836 = vsub.f32 %v2817, %v2828
        %v2837 = vsub.f32 %v2818, %v2828
        %v2838 = vsub.f32 %v2819, %v2828
        %v2839 = vmul.f32 %v2829, 1.442695
        %v2840 = vpow.pop %v2839
        %v2841 = vmul.f32 %v2830, 1.442695
        %v2842 = vpow.pop %v2841
        %v2843 = vmul.f32 %v2831, 1.442695
        %v2844 = vpow.pop %v2843
        %v2845 = vmul.f32 %v2832, 1.442695
        %v2846 = vpow.pop %v2845
        %v2847 = vmul.f32 %v2833, 1.442695
        %v2848 = vpow.pop %v2847
        %v2849 = vmul.f32 %v2834, 1.442695
        %v2850 = vpow.pop %v2849
        %v2851 = vmul.f32 %v2835, 1.442695
        %v2852 = vpow.pop %v2851
        %v2853 = vmul.f32 %v2836, 1.442695
        %v2854 = vpow.pop %v2853
        %v2855 = vmul.f32 %v2837, 1.442695
        %v2856 = vpow.pop %v2855
        %v2857 = vmul.f32 %v2838, 1.442695
        %v2858 = vpow.pop %v2857
        %v2859 = vadd.f32 %v2840, %v2842
        %v2860 = vadd.f32 %v2859, %v2844
        %v2861 = vadd.f32 %v2860, %v2846
        %v2862 = vadd.f32 %v2861, %v2848
        %v2863 = vadd.f32 %v2862, %v2850
        %v2864 = vadd.f32 %v2863, %v2852
        %v2865 = vadd.f32 %v2864, %v2854
        %v2866 = vadd.f32 %v2865, %v2856
        %v2867 = vadd.f32 %v2866, %v2858
        %v2868 = vadd.f32 %v2867, 1e-06
        %v2869 = vrcp.pop %v2868
        %v2870 = vmul.f32 %v2840, %v2869
        %v2871 = vmul.f32 %v2842, %v2869
        %v2872 = vmul.f32 %v2844, %v2869
        %v2873 = vmul.f32 %v2846, %v2869
        %v2874 = vmul.f32 %v2848, %v2869
        %v2875 = vmul.f32 %v2850, %v2869
        %v2876 = vmul.f32 %v2852, %v2869
        %v2877 = vmul.f32 %v2854, %v2869
        %v2878 = vmul.f32 %v2856, %v2869
        %v2879 = vmul.f32 %v2858, %v2869
        %v2880 = vmul.f32 %v2870, %v314
        %v2881 = vmul.f32 %v2871, %v314
        %v2882 = vmul.f32 %v2872, %v314
        %v2883 = vmul.f32 %v2873, %v314
        %v2884 = vmul.f32 %v2874, %v314
        %v2885 = vmul.f32 %v2875, %v314
        %v2886 = vmul.f32 %v2876, %v314
        %v2887 = vmul.f32 %v2877, %v314
        %v2888 = vmul.f32 %v2878, %v314
        %v2889 = vmul.f32 %v2879, %v314
        %v2890 = vsel %vm903, %v2880, 0.0
        %2891 = vadd.xlane.f32.xlu0 %v2890
        %v2892 = vpop.xlane.xlu0 %2891
        %v2893 = vsel %vm903, %v2881, 0.0
        %2894 = vadd.xlane.f32.xlu0 %v2893
        %v2895 = vpop.xlane.xlu0 %2894
        %v2896 = vsel %vm903, %v2882, 0.0
        %2897 = vadd.xlane.f32.xlu0 %v2896
        %v2898 = vpop.xlane.xlu0 %2897
        %v2899 = vsel %vm903, %v2883, 0.0
        %2900 = vadd.xlane.f32.xlu0 %v2899
        %v2901 = vpop.xlane.xlu0 %2900
        %v2902 = vsel %vm903, %v2884, 0.0
        %2903 = vadd.xlane.f32.xlu0 %v2902
        %v2904 = vpop.xlane.xlu0 %2903
        %v2905 = vsel %vm903, %v2885, 0.0
        %2906 = vadd.xlane.f32.xlu0 %v2905
        %v2907 = vpop.xlane.xlu0 %2906
        %v2908 = vsel %vm903, %v2886, 0.0
        %2909 = vadd.xlane.f32.xlu0 %v2908
        %v2910 = vpop.xlane.xlu0 %2909
        %v2911 = vsel %vm903, %v2887, 0.0
        %2912 = vadd.xlane.f32.xlu0 %v2911
        %v2913 = vpop.xlane.xlu0 %2912
        %v2914 = vsel %vm903, %v2888, 0.0
        %2915 = vadd.xlane.f32.xlu0 %v2914
        %v2916 = vpop.xlane.xlu0 %2915
        %v2917 = vsel %vm903, %v2889, 0.0
        %2918 = vadd.xlane.f32.xlu0 %v2917
        %v2919 = vpop.xlane.xlu0 %2918
        %v2920 = vadd.f32 %v2892, 1e-06
        %v2921 = vadd.f32 %v2895, 1e-06
        %v2922 = vadd.f32 %v2898, 1e-06
        %v2923 = vadd.f32 %v2901, 1e-06
        %v2924 = vadd.f32 %v2904, 1e-06
        %v2925 = vadd.f32 %v2907, 1e-06
        %v2926 = vadd.f32 %v2910, 1e-06
        %v2927 = vadd.f32 %v2913, 1e-06
        %v2928 = vadd.f32 %v2916, 1e-06
        %v2929 = vadd.f32 %v2919, 1e-06
        %v2930 = vrcp.pop %v2920
        %v2931 = vrcp.pop %v2921
        %v2932 = vrcp.pop %v2922
        %v2933 = vrcp.pop %v2923
        %v2934 = vrcp.pop %v2924
        %v2935 = vrcp.pop %v2925
        %v2936 = vrcp.pop %v2926
        %v2937 = vrcp.pop %v2927
        %v2938 = vrcp.pop %v2928
        %v2939 = vrcp.pop %v2929
        %v2940 = vlaneseq
        %v2941 = vshrl.u32 %v2940, 7
        %v2942 = vsub.s32 0, %v2941
        %v2943 = vrot.slane %v2880, %v2942
        %v2944 = vlaneseq
        %v2945 = vshrl.u32 %v2944, 7
        %v2946 = vsub.s32 0, %v2945
        %v2947 = vrot.slane %v2881, %v2946
        %v2948 = vlaneseq
        %v2949 = vshrl.u32 %v2948, 7
        %v2950 = vsub.s32 0, %v2949
        %v2951 = vrot.slane %v2882, %v2950
        %v2952 = vlaneseq
        %v2953 = vshrl.u32 %v2952, 7
        %v2954 = vsub.s32 0, %v2953
        %v2955 = vrot.slane %v2883, %v2954
        %v2956 = vlaneseq
        %v2957 = vshrl.u32 %v2956, 7
        %v2958 = vsub.s32 0, %v2957
        %v2959 = vrot.slane %v2884, %v2958
        %v2960 = vlaneseq
        %v2961 = vshrl.u32 %v2960, 7
        %v2962 = vsub.s32 0, %v2961
        %v2963 = vrot.slane %v2885, %v2962
        %v2964 = vlaneseq
        %v2965 = vshrl.u32 %v2964, 7
        %v2966 = vsub.s32 0, %v2965
        %v2967 = vrot.slane %v2886, %v2966
        %v2968 = vlaneseq
        %v2969 = vshrl.u32 %v2968, 7
        %v2970 = vsub.s32 0, %v2969
        %v2971 = vrot.slane %v2887, %v2970
        %v2972 = vlaneseq
        %v2973 = vshrl.u32 %v2972, 7
        %v2974 = vsub.s32 0, %v2973
        %v2975 = vrot.slane %v2888, %v2974
        %v2976 = vlaneseq
        %v2977 = vshrl.u32 %v2976, 7
        %v2978 = vsub.s32 0, %v2977
        %v2979 = vrot.slane %v2889, %v2978
        %v2980 = vmul.f32 %v2943, %v882
        %v2981 = vmul.f32 %v2943, %v883
        %v2982 = vmul.f32 %v2947, %v884
        %v2983 = vmul.f32 %v2947, %v885
        %v2984 = vmul.f32 %v2951, %v886
        %v2985 = vmul.f32 %v2951, %v887
        %v2986 = vmul.f32 %v2955, %v888
        %v2987 = vmul.f32 %v2955, %v889
        %v2988 = vmul.f32 %v2959, %v890
        %v2989 = vmul.f32 %v2959, %v891
        %v2990 = vmul.f32 %v2963, %v892
        %v2991 = vmul.f32 %v2963, %v893
        %v2992 = vmul.f32 %v2967, %v894
        %v2993 = vmul.f32 %v2967, %v895
        %v2994 = vmul.f32 %v2971, %v896
        %v2995 = vmul.f32 %v2971, %v897
        %v2996 = vmul.f32 %v2975, %v898
        %v2997 = vmul.f32 %v2975, %v899
        %v2998 = vmul.f32 %v2979, %v900
        %v2999 = vmul.f32 %v2979, %v901
        %3000 = vadd.xlane.f32.xlu0 %v2980
        %v3001 = vpop.xlane.xlu0 %3000
        %3002 = vadd.xlane.f32.xlu0 %v2981
        %v3003 = vpop.xlane.xlu0 %3002
        %3004 = vadd.xlane.f32.xlu0 %v2982
        %v3005 = vpop.xlane.xlu0 %3004
        %3006 = vadd.xlane.f32.xlu0 %v2983
        %v3007 = vpop.xlane.xlu0 %3006
        %3008 = vadd.xlane.f32.xlu0 %v2984
        %v3009 = vpop.xlane.xlu0 %3008
        %3010 = vadd.xlane.f32.xlu0 %v2985
        %v3011 = vpop.xlane.xlu0 %3010
        %3012 = vadd.xlane.f32.xlu0 %v2986
        %v3013 = vpop.xlane.xlu0 %3012
        %3014 = vadd.xlane.f32.xlu0 %v2987
        %v3015 = vpop.xlane.xlu0 %3014
        %3016 = vadd.xlane.f32.xlu0 %v2988
        %v3017 = vpop.xlane.xlu0 %3016
        %3018 = vadd.xlane.f32.xlu0 %v2989
        %v3019 = vpop.xlane.xlu0 %3018
        %3020 = vadd.xlane.f32.xlu0 %v2990
        %v3021 = vpop.xlane.xlu0 %3020
        %3022 = vadd.xlane.f32.xlu0 %v2991
        %v3023 = vpop.xlane.xlu0 %3022
        %3024 = vadd.xlane.f32.xlu0 %v2992
        %v3025 = vpop.xlane.xlu0 %3024
        %3026 = vadd.xlane.f32.xlu0 %v2993
        %v3027 = vpop.xlane.xlu0 %3026
        %3028 = vadd.xlane.f32.xlu0 %v2994
        %v3029 = vpop.xlane.xlu0 %3028
        %3030 = vadd.xlane.f32.xlu0 %v2995
        %v3031 = vpop.xlane.xlu0 %3030
        %3032 = vadd.xlane.f32.xlu0 %v2996
        %v3033 = vpop.xlane.xlu0 %3032
        %3034 = vadd.xlane.f32.xlu0 %v2997
        %v3035 = vpop.xlane.xlu0 %3034
        %3036 = vadd.xlane.f32.xlu0 %v2998
        %v3037 = vpop.xlane.xlu0 %3036
        %3038 = vadd.xlane.f32.xlu0 %v2999
        %v3039 = vpop.xlane.xlu0 %3038
        %v3040 = vlaneseq
        %v3041 = vshrl.u32 %v3040, 7
        %v3042 = vsub.s32 0, %v3041
        %v3043 = vrot.slane %v2930, %v3042
        %v3044 = vlaneseq
        %v3045 = vshrl.u32 %v3044, 7
        %v3046 = vsub.s32 0, %v3045
        %v3047 = vrot.slane %v2931, %v3046
        %v3048 = vlaneseq
        %v3049 = vshrl.u32 %v3048, 7
        %v3050 = vsub.s32 0, %v3049
        %v3051 = vrot.slane %v2932, %v3050
        %v3052 = vlaneseq
        %v3053 = vshrl.u32 %v3052, 7
        %v3054 = vsub.s32 0, %v3053
        %v3055 = vrot.slane %v2933, %v3054
        %v3056 = vlaneseq
        %v3057 = vshrl.u32 %v3056, 7
        %v3058 = vsub.s32 0, %v3057
        %v3059 = vrot.slane %v2934, %v3058
        %v3060 = vlaneseq
        %v3061 = vshrl.u32 %v3060, 7
        %v3062 = vsub.s32 0, %v3061
        %v3063 = vrot.slane %v2935, %v3062
        %v3064 = vlaneseq
        %v3065 = vshrl.u32 %v3064, 7
        %v3066 = vsub.s32 0, %v3065
        %v3067 = vrot.slane %v2936, %v3066
        %v3068 = vlaneseq
        %v3069 = vshrl.u32 %v3068, 7
        %v3070 = vsub.s32 0, %v3069
        %v3071 = vrot.slane %v2937, %v3070
        %v3072 = vlaneseq
        %v3073 = vshrl.u32 %v3072, 7
        %v3074 = vsub.s32 0, %v3073
        %v3075 = vrot.slane %v2938, %v3074
        %v3076 = vlaneseq
        %v3077 = vshrl.u32 %v3076, 7
        %v3078 = vsub.s32 0, %v3077
        %v3079 = vrot.slane %v2939, %v3078
        %v3080 = vmul.f32 %v3001, %v3043
        %v3081 = vmul.f32 %v3003, %v3043
        %v3082 = vmul.f32 %v3005, %v3047
        %v3083 = vmul.f32 %v3007, %v3047
        %v3084 = vmul.f32 %v3009, %v3051
        %v3085 = vmul.f32 %v3011, %v3051
        %v3086 = vmul.f32 %v3013, %v3055
        %v3087 = vmul.f32 %v3015, %v3055
        %v3088 = vmul.f32 %v3017, %v3059
        %v3089 = vmul.f32 %v3019, %v3059
        %v3090 = vmul.f32 %v3021, %v3063
        %v3091 = vmul.f32 %v3023, %v3063
        %v3092 = vmul.f32 %v3025, %v3067
        %v3093 = vmul.f32 %v3027, %v3067
        %v3094 = vmul.f32 %v3029, %v3071
        %v3095 = vmul.f32 %v3031, %v3071
        %v3096 = vmul.f32 %v3033, %v3075
        %v3097 = vmul.f32 %v3035, %v3075
        %v3098 = vmul.f32 %v3037, %v3079
        %v3099 = vmul.f32 %v3039, %v3079
        %v3100 = vsub.f32 %v882, %v3080
        %v3101 = vsub.f32 %v883, %v3081
        %v3102 = vsub.f32 %v884, %v3082
        %v3103 = vsub.f32 %v885, %v3083
        %v3104 = vsub.f32 %v886, %v3084
        %v3105 = vsub.f32 %v887, %v3085
        %v3106 = vsub.f32 %v888, %v3086
        %v3107 = vsub.f32 %v889, %v3087
        %v3108 = vsub.f32 %v890, %v3088
        %v3109 = vsub.f32 %v891, %v3089
        %v3110 = vsub.f32 %v892, %v3090
        %v3111 = vsub.f32 %v893, %v3091
        %v3112 = vsub.f32 %v894, %v3092
        %v3113 = vsub.f32 %v895, %v3093
        %v3114 = vsub.f32 %v896, %v3094
        %v3115 = vsub.f32 %v897, %v3095
        %v3116 = vsub.f32 %v898, %v3096
        %v3117 = vsub.f32 %v899, %v3097
        %v3118 = vsub.f32 %v900, %v3098
        %v3119 = vsub.f32 %v901, %v3099
        %v3120 = vmul.f32 %v3100, %v3100
        %v3121 = vmul.f32 %v3101, %v3101
        %v3122 = vmul.f32 %v3102, %v3102
        %v3123 = vmul.f32 %v3103, %v3103
        %v3124 = vmul.f32 %v3104, %v3104
        %v3125 = vmul.f32 %v3105, %v3105
        %v3126 = vmul.f32 %v3106, %v3106
        %v3127 = vmul.f32 %v3107, %v3107
        %v3128 = vmul.f32 %v3108, %v3108
        %v3129 = vmul.f32 %v3109, %v3109
        %v3130 = vmul.f32 %v3110, %v3110
        %v3131 = vmul.f32 %v3111, %v3111
        %v3132 = vmul.f32 %v3112, %v3112
        %v3133 = vmul.f32 %v3113, %v3113
        %v3134 = vmul.f32 %v3114, %v3114
        %v3135 = vmul.f32 %v3115, %v3115
        %v3136 = vmul.f32 %v3116, %v3116
        %v3137 = vmul.f32 %v3117, %v3117
        %v3138 = vmul.f32 %v3118, %v3118
        %v3139 = vmul.f32 %v3119, %v3119
        %v3140 = vmul.f32 %v2943, %v3120
        %v3141 = vmul.f32 %v2943, %v3121
        %v3142 = vmul.f32 %v2947, %v3122
        %v3143 = vmul.f32 %v2947, %v3123
        %v3144 = vmul.f32 %v2951, %v3124
        %v3145 = vmul.f32 %v2951, %v3125
        %v3146 = vmul.f32 %v2955, %v3126
        %v3147 = vmul.f32 %v2955, %v3127
        %v3148 = vmul.f32 %v2959, %v3128
        %v3149 = vmul.f32 %v2959, %v3129
        %v3150 = vmul.f32 %v2963, %v3130
        %v3151 = vmul.f32 %v2963, %v3131
        %v3152 = vmul.f32 %v2967, %v3132
        %v3153 = vmul.f32 %v2967, %v3133
        %v3154 = vmul.f32 %v2971, %v3134
        %v3155 = vmul.f32 %v2971, %v3135
        %v3156 = vmul.f32 %v2975, %v3136
        %v3157 = vmul.f32 %v2975, %v3137
        %v3158 = vmul.f32 %v2979, %v3138
        %v3159 = vmul.f32 %v2979, %v3139
        %3160 = vadd.xlane.f32.xlu0 %v3140
        %v3161 = vpop.xlane.xlu0 %3160
        %3162 = vadd.xlane.f32.xlu0 %v3141
        %v3163 = vpop.xlane.xlu0 %3162
        %3164 = vadd.xlane.f32.xlu0 %v3142
        %v3165 = vpop.xlane.xlu0 %3164
        %3166 = vadd.xlane.f32.xlu0 %v3143
        %v3167 = vpop.xlane.xlu0 %3166
        %3168 = vadd.xlane.f32.xlu0 %v3144
        %v3169 = vpop.xlane.xlu0 %3168
        %3170 = vadd.xlane.f32.xlu0 %v3145
        %v3171 = vpop.xlane.xlu0 %3170
        %3172 = vadd.xlane.f32.xlu0 %v3146
        %v3173 = vpop.xlane.xlu0 %3172
        %3174 = vadd.xlane.f32.xlu0 %v3147
        %v3175 = vpop.xlane.xlu0 %3174
        %3176 = vadd.xlane.f32.xlu0 %v3148
        %v3177 = vpop.xlane.xlu0 %3176
        %3178 = vadd.xlane.f32.xlu0 %v3149
        %v3179 = vpop.xlane.xlu0 %3178
        %3180 = vadd.xlane.f32.xlu0 %v3150
        %v3181 = vpop.xlane.xlu0 %3180
        %3182 = vadd.xlane.f32.xlu0 %v3151
        %v3183 = vpop.xlane.xlu0 %3182
        %3184 = vadd.xlane.f32.xlu0 %v3152
        %v3185 = vpop.xlane.xlu0 %3184
        %3186 = vadd.xlane.f32.xlu0 %v3153
        %v3187 = vpop.xlane.xlu0 %3186
        %3188 = vadd.xlane.f32.xlu0 %v3154
        %v3189 = vpop.xlane.xlu0 %3188
        %3190 = vadd.xlane.f32.xlu0 %v3155
        %v3191 = vpop.xlane.xlu0 %3190
        %3192 = vadd.xlane.f32.xlu0 %v3156
        %v3193 = vpop.xlane.xlu0 %3192
        %3194 = vadd.xlane.f32.xlu0 %v3157
        %v3195 = vpop.xlane.xlu0 %3194
        %3196 = vadd.xlane.f32.xlu0 %v3158
        %v3197 = vpop.xlane.xlu0 %3196
        %3198 = vadd.xlane.f32.xlu0 %v3159
        %v3199 = vpop.xlane.xlu0 %3198
        %v3200 = vmul.f32 %v3161, %v3043
        %v3201 = vmul.f32 %v3163, %v3043
        %v3202 = vmul.f32 %v3165, %v3047
        %v3203 = vmul.f32 %v3167, %v3047
        %v3204 = vmul.f32 %v3169, %v3051
        %v3205 = vmul.f32 %v3171, %v3051
        %v3206 = vmul.f32 %v3173, %v3055
        %v3207 = vmul.f32 %v3175, %v3055
        %v3208 = vmul.f32 %v3177, %v3059
        %v3209 = vmul.f32 %v3179, %v3059
        %v3210 = vmul.f32 %v3181, %v3063
        %v3211 = vmul.f32 %v3183, %v3063
        %v3212 = vmul.f32 %v3185, %v3067
        %v3213 = vmul.f32 %v3187, %v3067
        %v3214 = vmul.f32 %v3189, %v3071
        %v3215 = vmul.f32 %v3191, %v3071
        %v3216 = vmul.f32 %v3193, %v3075
        %v3217 = vmul.f32 %v3195, %v3075
        %v3218 = vmul.f32 %v3197, %v3079
        %v3219 = vmul.f32 %v3199, %v3079
        %v3220 = vadd.f32 %v3200, 1e-06
        %v3221 = vadd.f32 %v3201, 1e-06
        %v3222 = vadd.f32 %v3202, 1e-06
        %v3223 = vadd.f32 %v3203, 1e-06
        %v3224 = vadd.f32 %v3204, 1e-06
        %v3225 = vadd.f32 %v3205, 1e-06
        %v3226 = vadd.f32 %v3206, 1e-06
        %v3227 = vadd.f32 %v3207, 1e-06
        %v3228 = vadd.f32 %v3208, 1e-06
        %v3229 = vadd.f32 %v3209, 1e-06
        %v3230 = vadd.f32 %v3210, 1e-06
        %v3231 = vadd.f32 %v3211, 1e-06
        %v3232 = vadd.f32 %v3212, 1e-06
        %v3233 = vadd.f32 %v3213, 1e-06
        %v3234 = vadd.f32 %v3214, 1e-06
        %v3235 = vadd.f32 %v3215, 1e-06
        %v3236 = vadd.f32 %v3216, 1e-06
        %v3237 = vadd.f32 %v3217, 1e-06
        %v3238 = vadd.f32 %v3218, 1e-06
        %v3239 = vadd.f32 %v3219, 1e-06
        %v3240 = vlog2.pop %v3220
        %v3241 = vmul.f32 %v3240, 0.6931472
        %v3242 = vlog2.pop %v3221
        %v3243 = vmul.f32 %v3242, 0.6931472
        %v3244 = vlog2.pop %v3222
        %v3245 = vmul.f32 %v3244, 0.6931472
        %v3246 = vlog2.pop %v3223
        %v3247 = vmul.f32 %v3246, 0.6931472
        %v3248 = vlog2.pop %v3224
        %v3249 = vmul.f32 %v3248, 0.6931472
        %v3250 = vlog2.pop %v3225
        %v3251 = vmul.f32 %v3250, 0.6931472
        %v3252 = vlog2.pop %v3226
        %v3253 = vmul.f32 %v3252, 0.6931472
        %v3254 = vlog2.pop %v3227
        %v3255 = vmul.f32 %v3254, 0.6931472
        %v3256 = vlog2.pop %v3228
        %v3257 = vmul.f32 %v3256, 0.6931472
        %v3258 = vlog2.pop %v3229
        %v3259 = vmul.f32 %v3258, 0.6931472
        %v3260 = vlog2.pop %v3230
        %v3261 = vmul.f32 %v3260, 0.6931472
        %v3262 = vlog2.pop %v3231
        %v3263 = vmul.f32 %v3262, 0.6931472
        %v3264 = vlog2.pop %v3232
        %v3265 = vmul.f32 %v3264, 0.6931472
        %v3266 = vlog2.pop %v3233
        %v3267 = vmul.f32 %v3266, 0.6931472
        %v3268 = vlog2.pop %v3234
        %v3269 = vmul.f32 %v3268, 0.6931472
        %v3270 = vlog2.pop %v3235
        %v3271 = vmul.f32 %v3270, 0.6931472
        %v3272 = vlog2.pop %v3236
        %v3273 = vmul.f32 %v3272, 0.6931472
        %v3274 = vlog2.pop %v3237
        %v3275 = vmul.f32 %v3274, 0.6931472
        %v3276 = vlog2.pop %v3238
        %v3277 = vmul.f32 %v3276, 0.6931472
        %v3278 = vlog2.pop %v3239
        %v3279 = vmul.f32 %v3278, 0.6931472
        %v3280 = vmul.f32 %v3241, 0.5
        %v3281 = vmul.f32 %v3243, 0.5
        %v3282 = vmul.f32 %v3245, 0.5
        %v3283 = vmul.f32 %v3247, 0.5
        %v3284 = vmul.f32 %v3249, 0.5
        %v3285 = vmul.f32 %v3251, 0.5
        %v3286 = vmul.f32 %v3253, 0.5
        %v3287 = vmul.f32 %v3255, 0.5
        %v3288 = vmul.f32 %v3257, 0.5
        %v3289 = vmul.f32 %v3259, 0.5
        %v3290 = vmul.f32 %v3261, 0.5
        %v3291 = vmul.f32 %v3263, 0.5
        %v3292 = vmul.f32 %v3265, 0.5
        %v3293 = vmul.f32 %v3267, 0.5
        %v3294 = vmul.f32 %v3269, 0.5
        %v3295 = vmul.f32 %v3271, 0.5
        %v3296 = vmul.f32 %v3273, 0.5
        %v3297 = vmul.f32 %v3275, 0.5
        %v3298 = vmul.f32 %v3277, 0.5
        %v3299 = vmul.f32 %v3279, 0.5
        %v3300 = vadd.f32 %v1212, %v3280
        %v3301 = vadd.f32 %v1212, %v3281
        %v3302 = vadd.f32 %v1216, %v3282
        %v3303 = vadd.f32 %v1216, %v3283
        %v3304 = vadd.f32 %v1220, %v3284
        %v3305 = vadd.f32 %v1220, %v3285
        %v3306 = vadd.f32 %v1224, %v3286
        %v3307 = vadd.f32 %v1224, %v3287
        %v3308 = vadd.f32 %v1228, %v3288
        %v3309 = vadd.f32 %v1228, %v3289
        %v3310 = vadd.f32 %v1232, %v3290
        %v3311 = vadd.f32 %v1232, %v3291
        %v3312 = vadd.f32 %v1236, %v3292
        %v3313 = vadd.f32 %v1236, %v3293
        %v3314 = vadd.f32 %v1240, %v3294
        %v3315 = vadd.f32 %v1240, %v3295
        %v3316 = vadd.f32 %v1244, %v3296
        %v3317 = vadd.f32 %v1244, %v3297
        %v3318 = vadd.f32 %v1248, %v3298
        %v3319 = vadd.f32 %v1248, %v3299
        %v3320 = vsel %vm1279, %v3300, 0.0
        %v3321 = vsel %vm1279, %v3301, 0.0
        %v3322 = vadd.f32 %v3320, %v3321
        %v3323 = vrot.slane %v3322, 4
        %v3324 = vadd.f32 %v3322, %v3323
        %v3325 = vrot.slane %v3324, 2
        %v3326 = vadd.f32 %v3324, %v3325
        %v3327 = vrot.slane %v3326, 1
        %v3328 = vadd.f32 %v3326, %v3327
        %v3329 = vsel %vm1279, %v3302, 0.0
        %v3330 = vsel %vm1279, %v3303, 0.0
        %v3331 = vadd.f32 %v3329, %v3330
        %v3332 = vrot.slane %v3331, 4
        %v3333 = vadd.f32 %v3331, %v3332
        %v3334 = vrot.slane %v3333, 2
        %v3335 = vadd.f32 %v3333, %v3334
        %v3336 = vrot.slane %v3335, 1
        %v3337 = vadd.f32 %v3335, %v3336
        %v3338 = vsel %vm1279, %v3304, 0.0
        %v3339 = vsel %vm1279, %v3305, 0.0
        %v3340 = vadd.f32 %v3338, %v3339
        %v3341 = vrot.slane %v3340, 4
        %v3342 = vadd.f32 %v3340, %v3341
        %v3343 = vrot.slane %v3342, 2
        %v3344 = vadd.f32 %v3342, %v3343
        %v3345 = vrot.slane %v3344, 1
        %v3346 = vadd.f32 %v3344, %v3345
        %v3347 = vsel %vm1279, %v3306, 0.0
        %v3348 = vsel %vm1279, %v3307, 0.0
        %v3349 = vadd.f32 %v3347, %v3348
        %v3350 = vrot.slane %v3349, 4
        %v3351 = vadd.f32 %v3349, %v3350
        %v3352 = vrot.slane %v3351, 2
        %v3353 = vadd.f32 %v3351, %v3352
        %v3354 = vrot.slane %v3353, 1
        %v3355 = vadd.f32 %v3353, %v3354
        %v3356 = vsel %vm1279, %v3308, 0.0
        %v3357 = vsel %vm1279, %v3309, 0.0
        %v3358 = vadd.f32 %v3356, %v3357
        %v3359 = vrot.slane %v3358, 4
        %v3360 = vadd.f32 %v3358, %v3359
        %v3361 = vrot.slane %v3360, 2
        %v3362 = vadd.f32 %v3360, %v3361
        %v3363 = vrot.slane %v3362, 1
        %v3364 = vadd.f32 %v3362, %v3363
        %v3365 = vsel %vm1279, %v3310, 0.0
        %v3366 = vsel %vm1279, %v3311, 0.0
        %v3367 = vadd.f32 %v3365, %v3366
        %v3368 = vrot.slane %v3367, 4
        %v3369 = vadd.f32 %v3367, %v3368
        %v3370 = vrot.slane %v3369, 2
        %v3371 = vadd.f32 %v3369, %v3370
        %v3372 = vrot.slane %v3371, 1
        %v3373 = vadd.f32 %v3371, %v3372
        %v3374 = vsel %vm1279, %v3312, 0.0
        %v3375 = vsel %vm1279, %v3313, 0.0
        %v3376 = vadd.f32 %v3374, %v3375
        %v3377 = vrot.slane %v3376, 4
        %v3378 = vadd.f32 %v3376, %v3377
        %v3379 = vrot.slane %v3378, 2
        %v3380 = vadd.f32 %v3378, %v3379
        %v3381 = vrot.slane %v3380, 1
        %v3382 = vadd.f32 %v3380, %v3381
        %v3383 = vsel %vm1279, %v3314, 0.0
        %v3384 = vsel %vm1279, %v3315, 0.0
        %v3385 = vadd.f32 %v3383, %v3384
        %v3386 = vrot.slane %v3385, 4
        %v3387 = vadd.f32 %v3385, %v3386
        %v3388 = vrot.slane %v3387, 2
        %v3389 = vadd.f32 %v3387, %v3388
        %v3390 = vrot.slane %v3389, 1
        %v3391 = vadd.f32 %v3389, %v3390
        %v3392 = vsel %vm1279, %v3316, 0.0
        %v3393 = vsel %vm1279, %v3317, 0.0
        %v3394 = vadd.f32 %v3392, %v3393
        %v3395 = vrot.slane %v3394, 4
        %v3396 = vadd.f32 %v3394, %v3395
        %v3397 = vrot.slane %v3396, 2
        %v3398 = vadd.f32 %v3396, %v3397
        %v3399 = vrot.slane %v3398, 1
        %v3400 = vadd.f32 %v3398, %v3399
        %v3401 = vsel %vm1279, %v3318, 0.0
        %v3402 = vsel %vm1279, %v3319, 0.0
        %v3403 = vadd.f32 %v3401, %v3402
        %v3404 = vrot.slane %v3403, 4
        %v3405 = vadd.f32 %v3403, %v3404
        %v3406 = vrot.slane %v3405, 2
        %v3407 = vadd.f32 %v3405, %v3406
        %v3408 = vrot.slane %v3407, 1
        %v3409 = vadd.f32 %v3407, %v3408
        %v3410 = vmul.f32 %v2920, %v3328
        %v3411 = vmul.f32 %v2921, %v3337
        %v3412 = vmul.f32 %v2922, %v3346
        %v3413 = vmul.f32 %v2923, %v3355
        %v3414 = vmul.f32 %v2924, %v3364
        %v3415 = vmul.f32 %v2925, %v3373
        %v3416 = vmul.f32 %v2926, %v3382
        %v3417 = vmul.f32 %v2927, %v3391
        %v3418 = vmul.f32 %v2928, %v3400
        %v3419 = vmul.f32 %v2929, %v3409
        %v3420 = vsub.f32 %v325, %v3410
        %v3421 = vsub.f32 %v326, %v3411
        %v3422 = vsub.f32 %v327, %v3412
        %v3423 = vsub.f32 %v328, %v3413
        %v3424 = vsub.f32 %v329, %v3414
        %v3425 = vsub.f32 %v330, %v3415
        %v3426 = vsub.f32 %v331, %v3416
        %v3427 = vsub.f32 %v332, %v3417
        %v3428 = vsub.f32 %v333, %v3418
        %v3429 = vsub.f32 %v334, %v3419
        %v3430 = vmul.f32 %v3420, 0.00142625
        %v3431 = vmul.f32 %v3421, 0.00142625
        %v3432 = vmul.f32 %v3422, 0.00142625
        %v3433 = vmul.f32 %v3423, 0.00142625
        %v3434 = vmul.f32 %v3424, 0.00142625
        %v3435 = vmul.f32 %v3425, 0.00142625
        %v3436 = vmul.f32 %v3426, 0.00142625
        %v3437 = vmul.f32 %v3427, 0.00142625
        %v3438 = vmul.f32 %v3428, 0.00142625
        %v3439 = vmul.f32 %v3429, 0.00142625
        %v3440 = vxor.u32 %v3430, 2147483648
        %v3441 = vxor.u32 %v3431, 2147483648
        %v3442 = vxor.u32 %v3432, 2147483648
        %v3443 = vxor.u32 %v3433, 2147483648
        %v3444 = vxor.u32 %v3434, 2147483648
        %v3445 = vxor.u32 %v3435, 2147483648
        %v3446 = vxor.u32 %v3436, 2147483648
        %v3447 = vxor.u32 %v3437, 2147483648
        %v3448 = vxor.u32 %v3438, 2147483648
        %v3449 = vxor.u32 %v3439, 2147483648
        %v3450 = vmul.f32 %v3440, 1.442695
        %v3451 = vpow.pop %v3450
        %v3452 = vmul.f32 %v3441, 1.442695
        %v3453 = vpow.pop %v3452
        %v3454 = vmul.f32 %v3442, 1.442695
        %v3455 = vpow.pop %v3454
        %v3456 = vmul.f32 %v3443, 1.442695
        %v3457 = vpow.pop %v3456
        %v3458 = vmul.f32 %v3444, 1.442695
        %v3459 = vpow.pop %v3458
        %v3460 = vmul.f32 %v3445, 1.442695
        %v3461 = vpow.pop %v3460
        %v3462 = vmul.f32 %v3446, 1.442695
        %v3463 = vpow.pop %v3462
        %v3464 = vmul.f32 %v3447, 1.442695
        %v3465 = vpow.pop %v3464
        %v3466 = vmul.f32 %v3448, 1.442695
        %v3467 = vpow.pop %v3466
        %v3468 = vmul.f32 %v3449, 1.442695
        %v3469 = vpow.pop %v3468
        %v3470 = vadd.f32 %v3451, 1.0
        %v3471 = vadd.f32 %v3453, 1.0
        %v3472 = vadd.f32 %v3455, 1.0
        %v3473 = vadd.f32 %v3457, 1.0
        %v3474 = vadd.f32 %v3459, 1.0
        %v3475 = vadd.f32 %v3461, 1.0
        %v3476 = vadd.f32 %v3463, 1.0
        %v3477 = vadd.f32 %v3465, 1.0
        %v3478 = vadd.f32 %v3467, 1.0
        %v3479 = vadd.f32 %v3469, 1.0
        %v3480 = vrcp.pop %v3470
        %v3481 = vmul.f32 1.0, %v3480
        %v3482 = vrcp.pop %v3471
        %v3483 = vmul.f32 1.0, %v3482
        %v3484 = vrcp.pop %v3472
        %v3485 = vmul.f32 1.0, %v3484
        %v3486 = vrcp.pop %v3473
        %v3487 = vmul.f32 1.0, %v3486
        %v3488 = vrcp.pop %v3474
        %v3489 = vmul.f32 1.0, %v3488
        %v3490 = vrcp.pop %v3475
        %v3491 = vmul.f32 1.0, %v3490
        %v3492 = vrcp.pop %v3476
        %v3493 = vmul.f32 1.0, %v3492
        %v3494 = vrcp.pop %v3477
        %v3495 = vmul.f32 1.0, %v3494
        %v3496 = vrcp.pop %v3478
        %v3497 = vmul.f32 1.0, %v3496
        %v3498 = vrcp.pop %v3479
        %v3499 = vmul.f32 1.0, %v3498
        %3500 = vst.msk [vmem:[%s307] sm:$0xff] %vm1279, %v3080
        %3501 = vst.msk [vmem:[%s307 + $0x8] sm:$0xff] %vm1279, %v3081
        %3502 = vst.msk [vmem:[%s307 + $0x10] sm:$0xff] %vm1279, %v3082
        %3503 = vst.msk [vmem:[%s307 + $0x18] sm:$0xff] %vm1279, %v3083
        %3504 = vst.msk [vmem:[%s307 + $0x20] sm:$0xff] %vm1279, %v3084
        %3505 = vst.msk [vmem:[%s307 + $0x28] sm:$0xff] %vm1279, %v3085
        %3506 = vst.msk [vmem:[%s307 + $0x30] sm:$0xff] %vm1279, %v3086
        %3507 = vst.msk [vmem:[%s307 + $0x38] sm:$0xff] %vm1279, %v3087
        %3508 = vst.msk [vmem:[%s307 + $0x40] sm:$0xff] %vm1279, %v3088
        %3509 = vst.msk [vmem:[%s307 + $0x48] sm:$0xff] %vm1279, %v3089
        %3510 = vst.msk [vmem:[%s307 + $0x50] sm:$0xff] %vm1279, %v3090
        %3511 = vst.msk [vmem:[%s307 + $0x58] sm:$0xff] %vm1279, %v3091
        %3512 = vst.msk [vmem:[%s307 + $0x60] sm:$0xff] %vm1279, %v3092
        %3513 = vst.msk [vmem:[%s307 + $0x68] sm:$0xff] %vm1279, %v3093
        %3514 = vst.msk [vmem:[%s307 + $0x70] sm:$0xff] %vm1279, %v3094
        %3515 = vst.msk [vmem:[%s307 + $0x78] sm:$0xff] %vm1279, %v3095
        %3516 = vst.msk [vmem:[%s307 + $0x80] sm:$0xff] %vm1279, %v3096
        %3517 = vst.msk [vmem:[%s307 + $0x88] sm:$0xff] %vm1279, %v3097
        %3518 = vst.msk [vmem:[%s307 + $0x90] sm:$0xff] %vm1279, %v3098
        %3519 = vst.msk [vmem:[%s307 + $0x98] sm:$0xff] %vm1279, %v3099
        %vm3520 = vcmask 0
        %3521 = vst.msk [vmem:[%s311] sm:$0x1] %vm3520, %v3481
        %3522 = vst.msk [vmem:[%s311 + $0x1] sm:$0x1] %vm3520, %v3483
        %3523 = vst.msk [vmem:[%s311 + $0x2] sm:$0x1] %vm3520, %v3485
        %3524 = vst.msk [vmem:[%s311 + $0x3] sm:$0x1] %vm3520, %v3487
        %3525 = vst.msk [vmem:[%s311 + $0x4] sm:$0x1] %vm3520, %v3489
        %3526 = vst.msk [vmem:[%s311 + $0x5] sm:$0x1] %vm3520, %v3491
        %3527 = vst.msk [vmem:[%s311 + $0x6] sm:$0x1] %vm3520, %v3493
        %3528 = vst.msk [vmem:[%s311 + $0x7] sm:$0x1] %vm3520, %v3495
        %3529 = vst.msk [vmem:[%s311 + $0x8] sm:$0x1] %vm3520, %v3497
        %3530 = vst.msk [vmem:[%s311 + $0x9] sm:$0x1] %vm3520, %v3499
        %p3531 = scmp.lt.s32.totalorder %s22, 1
        %s3532 = scalar_select %p3531, %s22, 1
        %s3533 = smul.addr %s3532, 20
        %s3534 = smul.addr %s3533, 8
        %s3535 = scalar_lea.vmem %s5, %s3534
        %p3536 = scmp.lt.s32.totalorder %s22, 1
        %s3537 = scalar_select %p3536, %s22, 1
        %s3538 = smul.addr %s3537, 10
        %s3539 = scalar_lea.vmem %s6, %s3538
        // Predicated region
        $region49: #{tpu_custom_call.1} parent=39 // pred_check
          %p3540 = pneg %p155
        $region50: #{tpu_custom_call.1} parent=39 // pred_check_branch
          %3542 = sbr.rel (%p3540) target = $region52
        $region51: #{tpu_custom_call.1} parent=39 // pred_region
          _
        $region52: #{tpu_custom_call.1} parent=39 // pred_fallthru
          _
        // Predicated region
        $region53: #{tpu_custom_call.1} parent=39 // pred_check
          %p3543 = pneg %p181
        $region54: #{tpu_custom_call.1} parent=39 // pred_check_branch
          %3545 = sbr.rel (%p3543) target = $region56
        $region55: #{tpu_custom_call.1} parent=39 // pred_region
          _
        $region56: #{tpu_custom_call.1} parent=39 // pred_fallthru
          _
      $region40: #{tpu_custom_call.1} parent=5 // pred_fallthru
        _
      %p3546 = scmp.le.s32.totalorder 2, %s17
      // Predicated region
      $region57: #{tpu_custom_call.1} parent=5 // pred_check
        %p3547 = pneg %p3546
      $region58: #{tpu_custom_call.1} parent=5 // pred_check_branch
        %3549 = sbr.rel (%p3547) target = $region60
      $region59: #{tpu_custom_call.1} parent=5 // pred_region
        %s3550 = ssub.s32 %s17, 2
        // Predicated region
        $region61: #{tpu_custom_call.1} parent=59 // pred_check
          %p3551 = pneg %p161
        $region62: #{tpu_custom_call.1} parent=59 // pred_check_branch
          %3553 = sbr.rel (%p3551) target = $region64
        $region63: #{tpu_custom_call.1} parent=59 // pred_region
          %p3554 = scmp.lt.s32.totalorder %s23, 1
          %s3555 = scalar_select %p3554, %s23, 1
          %s3556 = smul.addr %s3555, 20
          %s3557 = smul.addr %s3556, 8
          %s3558 = scalar_lea.vmem %s5, %s3557
        $region64: #{tpu_custom_call.1} parent=59 // pred_fallthru
          _
        // Predicated region
        $region65: #{tpu_custom_call.1} parent=59 // pred_check
          %p3559 = pneg %p187
        $region66: #{tpu_custom_call.1} parent=59 // pred_check_branch
          %3561 = sbr.rel (%p3559) target = $region68
        $region67: #{tpu_custom_call.1} parent=59 // pred_region
          %p3562 = scmp.lt.s32.totalorder %s23, 1
          %s3563 = scalar_select %p3562, %s23, 1
          %s3564 = smul.addr %s3563, 10
          %s3565 = scalar_lea.vmem %s6, %s3564
        $region68: #{tpu_custom_call.1} parent=59 // pred_fallthru
          _
      $region60: #{tpu_custom_call.1} parent=5 // pred_fallthru
        _
    $region6: #{tpu_custom_call.1} parent=1 // loop_footer
      %s21 = sadd.s32 1, %s17
    $region7: #{tpu_custom_call.1} parent=1 // loop_footer_branch
      %16 = sbr.rel target = $region3
    $region8: #{tpu_custom_call.1} parent=1 // loop_exit
      _
    %3566 = vsyncpa [#allocation4], 1
    %s3567 = scalar_lea.sflag [#allocation4], 1
    %3568 = vsyncpa %s3567, 1
    %3569 = vsyncpa [#allocation6], 1

</llo_original>
